<compile_context>
chip_gen: v5e
topology: v5e:2x2
jax: 0.10.0
libtpu: 0.0.40
codegen_flags: <defaults>
</compile_context>

<pallas_src>
import jax
import jax.numpy as jnp
from jax.experimental import pallas as pl
from jax.experimental.pallas import tpu as pltpu

# ---- hyperparameters (module fixes n_embed = 384; keep batch/seq small) ----
N_EMBED = 384
HIDDEN = 4 * N_EMBED          # 1536
BATCH = 2
SEQ = 8


def ffn_kernel(x_ref, w1_ref, b1_ref, w2_ref, b2_ref, o_ref):
    """Single grid step == all B*T tokens. Fused Linear -> ReLU -> Linear."""
    x = x_ref[...]                                                     # (M, C) bf16
    h = jnp.dot(x, w1_ref[...], preferred_element_type=jnp.float32)    # (M, 4C) f32 acc
    h = jnp.maximum(h + b1_ref[...], 0.0)                              # bias + ReLU in f32
    h = h.astype(jnp.bfloat16)                                         # bf16 into second MXU pass
    y = jnp.dot(h, w2_ref[...], preferred_element_type=jnp.float32)    # (M, C) f32 acc
    y = y + b2_ref[...]
    o_ref[...] = y.astype(o_ref.dtype)                                 # Dropout: identity (eval mode)


def prepare_params(w1, b1, w2, b2):
    """One-time (param-init) conversion from PyTorch nn.Linear layout.

    w1: (4C, C), b1: (4C,), w2: (C, 4C), b2: (C,)  ->
    W1^T (C, 4C) bf16, b1 (1, 4C) f32, W2^T (4C, C) bf16, b2 (1, C) f32.
    """
    return (
        w1.T.astype(jnp.bfloat16),
        b1.reshape(1, -1).astype(jnp.float32),
        w2.T.astype(jnp.bfloat16),
        b2.reshape(1, -1).astype(jnp.float32),
    )


def feed_forward(x, params):
    """x: (B, T, C) float32. params from prepare_params()."""
    w1t, b1r, w2t, b2r = params
    B, T, C = x.shape
    H = w1t.shape[1]
    M = B * T
    assert M % 8 == 0, "row count must be a multiple of 8 (sublane tiling)"

    # Fold batch+seq into one GEMM row axis; bf16 activations into the MXU.
    x2d = x.reshape(M, C).astype(jnp.bfloat16)

    cost = pl.CostEstimate(
        flops=4 * M * C * H,                                   # two GEMMs
        transcendentals=0,
        bytes_accessed=(2 * (M * C + C * H + H * C)            # bf16 x, W1^T, W2^T
                        + 4 * (H + C)                          # f32 biases
                        + 4 * M * C),                          # f32 output
    )

    out2d = pl.pallas_call(
        ffn_kernel,
        out_shape=jax.ShapeDtypeStruct((M, C), x.dtype),
        grid_spec=pltpu.PrefetchScalarGridSpec(
            num_scalar_prefetch=0,
            grid=(1,),                                          # single step: weights fetched once
            in_specs=[
                pl.BlockSpec((M, C), lambda i: (0, 0)),         # x (all tokens)
                pl.BlockSpec((C, H), lambda i: (0, 0)),         # W1^T
                pl.BlockSpec((1, H), lambda i: (0, 0)),         # b1
                pl.BlockSpec((H, C), lambda i: (0, 0)),         # W2^T
                pl.BlockSpec((1, C), lambda i: (0, 0)),         # b2
            ],
            out_specs=pl.BlockSpec((M, C), lambda i: (0, 0)),
        ),
        compiler_params=pltpu.CompilerParams(
            dimension_semantics=("arbitrary",),                 # no megacore weight re-fetch
        ),
        cost_estimate=cost,
    )(x2d, w1t, b1r, w2t, b2r)

    return out2d.reshape(B, T, C)


def reference(x, w1, b1, w2, b2):
    """Pure-JAX f32 reference mirroring the PyTorch forward (eval mode)."""
    h = jnp.maximum(x @ w1.T + b1, 0.0)
    return h @ w2.T + b2


if __name__ == "__main__":
    key = jax.random.PRNGKey(0)
    kx, k1, kb1, k2, kb2 = jax.random.split(key, 5)

    x = jax.random.normal(kx, (BATCH, SEQ, N_EMBED), dtype=jnp.float32)
    # Synthetic deterministic parameters; shapes follow nn.Linear (out_features, in_features).
    w1 = 0.05 * jax.random.normal(k1, (HIDDEN, N_EMBED), dtype=jnp.float32)
    b1 = 0.01 * jax.random.normal(kb1, (HIDDEN,), dtype=jnp.float32)
    w2 = 0.05 * jax.random.normal(k2, (N_EMBED, HIDDEN), dtype=jnp.float32)
    b2 = 0.01 * jax.random.normal(kb2, (N_EMBED,), dtype=jnp.float32)

    params = prepare_params(w1, b1, w2, b2)     # one-time: transpose + bf16 cast

    out = feed_forward(x, params)
    out = jax.block_until_ready(out)

    ref = reference(x, w1, b1, w2, b2)
    assert out.shape == (BATCH, SEQ, N_EMBED)
    # Tolerance covers bf16 weight/activation quantization (f32 accumulation).
    assert jnp.allclose(out, ref, rtol=2e-2, atol=2e-2), "mismatch vs reference"

    print("KERNEL_OK")
</pallas_src>

<mosaic_0001>
module attributes {stable_mosaic.version = 11 : i64} {
  func.func @ffn_kernel(%arg0: i32, %arg1: memref<16x384xbf16, #tpu.memory_space<vmem>>, %arg2: memref<384x1536xbf16, #tpu.memory_space<vmem>>, %arg3: memref<1x1536xf32, #tpu.memory_space<vmem>>, %arg4: memref<1536x384xbf16, #tpu.memory_space<vmem>>, %arg5: memref<1x384xf32, #tpu.memory_space<vmem>>, %arg6: memref<16x384xf32, #tpu.memory_space<vmem>>) attributes {dimension_semantics = [#tpu.dimension_semantics<arbitrary>], iteration_bounds = array<i64: 1>, scalar_prefetch = 0 : i64, scratch_operands = 0 : i64, tpu.core_type = #tpu.core_type<tc>, window_params = [{pipeline_mode = #tpu.pipeline_mode<synchronous>, transform_indices = @transform_0, window_bounds = array<i64: 16, 384>}, {pipeline_mode = #tpu.pipeline_mode<synchronous>, transform_indices = @transform_1, window_bounds = array<i64: 384, 1536>}, {pipeline_mode = #tpu.pipeline_mode<synchronous>, transform_indices = @transform_2, window_bounds = array<i64: 1, 1536>}, {pipeline_mode = #tpu.pipeline_mode<synchronous>, transform_indices = @transform_3, window_bounds = array<i64: 1536, 384>}, {pipeline_mode = #tpu.pipeline_mode<synchronous>, transform_indices = @transform_4, window_bounds = array<i64: 1, 384>}, {pipeline_mode = #tpu.pipeline_mode<synchronous>, transform_indices = @transform_5, window_bounds = array<i64: 16, 384>}]} {
    %c0 = arith.constant 0 : index
    %c0_0 = arith.constant 0 : index
    %0 = vector.load %arg1[%c0, %c0_0] : memref<16x384xbf16, #tpu.memory_space<vmem>>, vector<16x384xbf16>
    %c0_1 = arith.constant 0 : index
    %c0_2 = arith.constant 0 : index
    %1 = vector.load %arg2[%c0_1, %c0_2] : memref<384x1536xbf16, #tpu.memory_space<vmem>>, vector<384x1536xbf16>
    %cst = arith.constant dense<0.000000e+00> : vector<16x1536xf32>
    %2 = tpu.matmul %0, %1, %cst {dimension_numbers = #tpu.dot_dimension_numbers<[1], [0], [0], [1], [0, 0, 1, 1], [], []>} : vector<16x384xbf16>, vector<384x1536xbf16>, vector<16x1536xf32> -> vector<16x1536xf32>
    %c0_3 = arith.constant 0 : index
    %c0_4 = arith.constant 0 : index
    %3 = vector.load %arg3[%c0_3, %c0_4] : memref<1x1536xf32, #tpu.memory_space<vmem>>, vector<1x1536xf32>
    %4 = vector.broadcast %3 : vector<1x1536xf32> to vector<16x1536xf32>
    %5 = arith.addf %2, %4 : vector<16x1536xf32>
    %cst_5 = arith.constant 0.000000e+00 : f32
    %6 = vector.broadcast %cst_5 : f32 to vector<16x1536xf32>
    %7 = arith.maximumf %5, %6 : vector<16x1536xf32>
    %8 = arith.truncf %7 : vector<16x1536xf32> to vector<16x1536xbf16>
    %c0_6 = arith.constant 0 : index
    %c0_7 = arith.constant 0 : index
    %9 = vector.load %arg4[%c0_6, %c0_7] : memref<1536x384xbf16, #tpu.memory_space<vmem>>, vector<1536x384xbf16>
    %cst_8 = arith.constant dense<0.000000e+00> : vector<16x384xf32>
    %10 = tpu.matmul %8, %9, %cst_8 {dimension_numbers = #tpu.dot_dimension_numbers<[1], [0], [0], [1], [0, 0, 1, 1], [], []>} : vector<16x1536xbf16>, vector<1536x384xbf16>, vector<16x384xf32> -> vector<16x384xf32>
    %c0_9 = arith.constant 0 : index
    %c0_10 = arith.constant 0 : index
    %11 = vector.load %arg5[%c0_9, %c0_10] : memref<1x384xf32, #tpu.memory_space<vmem>>, vector<1x384xf32>
    %12 = vector.broadcast %11 : vector<1x384xf32> to vector<16x384xf32>
    %13 = arith.addf %10, %12 : vector<16x384xf32>
    %c0_11 = arith.constant 0 : index
    %c0_12 = arith.constant 0 : index
    %14 = vector.load %arg6[%c0_11, %c0_12] : memref<16x384xf32, #tpu.memory_space<vmem>>, vector<16x384xf32>
    tpu.vector_store %arg6[%c0_11, %c0_12], %13 {strides = array<i32>} : memref<16x384xf32, #tpu.memory_space<vmem>>, vector<16x384xf32>,
    return
  }
  func.func @transform_0(%arg0: i32) -> (i32, i32) {
    %c0_i32 = arith.constant 0 : i32
    %c0_i32_0 = arith.constant 0 : i32
    %c0_i32_1 = arith.constant 0 : i32
    return %c0_i32, %c0_i32_0 : i32, i32
  }
  func.func @transform_1(%arg0: i32) -> (i32, i32) {
    %c0_i32 = arith.constant 0 : i32
    %c0_i32_0 = arith.constant 0 : i32
    %c0_i32_1 = arith.constant 0 : i32
    return %c0_i32, %c0_i32_0 : i32, i32
  }
  func.func @transform_2(%arg0: i32) -> (i32, i32) {
    %c0_i32 = arith.constant 0 : i32
    %c0_i32_0 = arith.constant 0 : i32
    %c0_i32_1 = arith.constant 0 : i32
    return %c0_i32, %c0_i32_0 : i32, i32
  }
  func.func @transform_3(%arg0: i32) -> (i32, i32) {
    %c0_i32 = arith.constant 0 : i32
    %c0_i32_0 = arith.constant 0 : i32
    %c0_i32_1 = arith.constant 0 : i32
    return %c0_i32, %c0_i32_0 : i32, i32
  }
  func.func @transform_4(%arg0: i32) -> (i32, i32) {
    %c0_i32 = arith.constant 0 : i32
    %c0_i32_0 = arith.constant 0 : i32
    %c0_i32_1 = arith.constant 0 : i32
    return %c0_i32, %c0_i32_0 : i32, i32
  }
  func.func @transform_5(%arg0: i32) -> (i32, i32) {
    %c0_i32 = arith.constant 0 : i32
    %c0_i32_0 = arith.constant 0 : i32
    %c0_i32_1 = arith.constant 0 : i32
    return %c0_i32, %c0_i32_0 : i32, i32
  }
}

</mosaic_0001>

<llo_original>
// kernel: tpu_custom_call.1
$region0: #{tpu_custom_call.1}
  #allocation0 [shape = 'u32[]', space=smem, size = 0x4, offset = 0x4, fixed_abs, tag = 'smem constant byte address 0x4 - core index']
  #allocation1 [shape = 'u32[72,128]{1,0:T(1,128)}', space=vmem, size = 0x9000, scoped, tag = 'internal scratch']
  %s0 = inlined_call_operand.hbm [shape: bf16[16,384], index: 0, kind: input, shape index: {}]
  %s1 = inlined_call_operand.hbm [shape: bf16[384,1536], index: 1, kind: input, shape index: {}]
  %s2 = inlined_call_operand.hbm [shape: f32[1,1536], index: 2, kind: input, shape index: {}]
  %s3 = inlined_call_operand.hbm [shape: bf16[1536,384], index: 3, kind: input, shape index: {}]
  %s4 = inlined_call_operand.hbm [shape: f32[1,384], index: 4, kind: input, shape index: {}]
  %s5 = inlined_call_operand.hbm [shape: f32[16,384], index: 5, kind: output, shape index: {}]
  %s6 = sld [smem:[#allocation0]]
  $region50: #{tpu_custom_call.1} parent=0
    _
  %s8 = ssub.s32 1, %s6
  %s9 = scalar_select 0, %s8, %s6
  $region1: #{tpu_custom_call.1} parent=0
    #allocation2 [shape = 'u8[12288]{0}', space=vmem, size = 0x3000, scoped, tag = 'input window, operand 0, single buffered']
    #allocation3 [shape = 's32[1]{0}', space=sflag, size = 0x4, scoped, tag = 'scoped memory for tpu_custom_call.1']
    #allocation4 [shape = 's32[1]{0}', space=sflag, size = 0x4, scoped, tag = 'scoped memory for tpu_custom_call.1']
    #allocation5 [shape = 'u8[1179648]{0}', space=vmem, size = 0x120000, scoped, tag = 'input window, operand 1, single buffered']
    #allocation6 [shape = 's32[1]{0}', space=sflag, size = 0x4, scoped, tag = 'scoped memory for tpu_custom_call.1']
    #allocation7 [shape = 'u8[6144]{0}', space=vmem, size = 0x1800, scoped, tag = 'input window, operand 2, single buffered']
    #allocation8 [shape = 'u8[1179648]{0}', space=vmem, size = 0x120000, scoped, tag = 'input window, operand 3, single buffered']
    #allocation9 [shape = 's32[1]{0}', space=sflag, size = 0x4, scoped, tag = 'scoped memory for tpu_custom_call.1']
    #allocation10 [shape = 'u8[1536]{0}', space=vmem, size = 0x800, scoped, tag = 'input window, operand 4, single buffered']
    #allocation11 [shape = 'u8[24576]{0}', space=vmem, size = 0x6000, scoped, tag = 'output window, operand 0, single buffered']
    %10 = vsyncpa [#allocation3], 0
    %11 = vsyncpa [#allocation6], 0
    %12 = vsyncpa [#allocation9], 0
    %13 = vsyncpa [#allocation4], 0
    // Predicated region
    $region2: #{tpu_custom_call.1} parent=1 // pred_check
      _
    $region3: #{tpu_custom_call.1} parent=1 // pred_check_branch
      %15 = sbr.rel (0) target = $region5
    $region4: #{tpu_custom_call.1} parent=1 // pred_region
      %17 = vsyncadd [#allocation3], 0
      %s18 = sshll.u32 %s0, 4
      %s19 = int_to_ptr.hbm [resolvable:$true] %s18
      %s20 = sshll.u32 [#allocation2], 4
      %s21 = int_to_ptr.vmem [resolvable:$true] %s20
      %26 = dma.hbm_to_vmem [thread:$0]  %s19, 384, %s21, [#allocation3], 192, 192, 12
    $region5: #{tpu_custom_call.1} parent=1 // pred_fallthru
      _
    // Predicated region
    $region6: #{tpu_custom_call.1} parent=1 // pred_check
      _
    $region7: #{tpu_custom_call.1} parent=1 // pred_check_branch
      %28 = sbr.rel (0) target = $region9
    $region8: #{tpu_custom_call.1} parent=1 // pred_region
      %30 = vsyncadd [#allocation6], 0
      %s31 = sshll.u32 %s1, 4
      %s32 = int_to_ptr.hbm [resolvable:$true] %s31
      %s33 = sshll.u32 [#allocation5], 4
      %s34 = int_to_ptr.vmem [resolvable:$true] %s33
      %39 = dma.hbm_to_vmem [thread:$0]  %s32, 36864, %s34, [#allocation6], 768, 768, 48
    $region9: #{tpu_custom_call.1} parent=1 // pred_fallthru
      _
    // Predicated region
    $region10: #{tpu_custom_call.1} parent=1 // pred_check
      _
    $region11: #{tpu_custom_call.1} parent=1 // pred_check_branch
      %41 = sbr.rel (0) target = $region13
    $region12: #{tpu_custom_call.1} parent=1 // pred_region
      %43 = vsyncadd [#allocation6], 0
      %s45 = sshll.u32 %s2, 4
      %s46 = int_to_ptr.hbm [resolvable:$true] %s45
      %s47 = sshll.u32 [#allocation7], 4
      %s48 = int_to_ptr.vmem [resolvable:$true] %s47
      %50 = dma.hbm_to_vmem [thread:$0]  %s46, 192, %s48, [#allocation6]
    $region13: #{tpu_custom_call.1} parent=1 // pred_fallthru
      _
    // Predicated region
    $region14: #{tpu_custom_call.1} parent=1 // pred_check
      _
    $region15: #{tpu_custom_call.1} parent=1 // pred_check_branch
      %52 = sbr.rel (0) target = $region17
    $region16: #{tpu_custom_call.1} parent=1 // pred_region
      %54 = vsyncadd [#allocation9], 0
      %s55 = sshll.u32 %s3, 4
      %s56 = int_to_ptr.hbm [resolvable:$true] %s55
      %s57 = sshll.u32 [#allocation8], 4
      %s58 = int_to_ptr.vmem [resolvable:$true] %s57
      %63 = dma.hbm_to_vmem [thread:$0]  %s56, 36864, %s58, [#allocation9], 192, 192, 12
    $region17: #{tpu_custom_call.1} parent=1 // pred_fallthru
      _
    // Predicated region
    $region18: #{tpu_custom_call.1} parent=1 // pred_check
      _
    $region19: #{tpu_custom_call.1} parent=1 // pred_check_branch
      %65 = sbr.rel (0) target = $region21
    $region20: #{tpu_custom_call.1} parent=1 // pred_region
      %67 = vsyncadd [#allocation9], 0
      %s69 = sshll.u32 %s4, 4
      %s70 = int_to_ptr.hbm [resolvable:$true] %s69
      %s71 = sshll.u32 [#allocation10], 4
      %s72 = int_to_ptr.vmem [resolvable:$true] %s71
      %74 = dma.hbm_to_vmem [thread:$0]  %s70, 48, %s72, [#allocation9]
    $region21: #{tpu_custom_call.1} parent=1 // pred_fallthru
      _
    // Predicated region
    $region22: #{tpu_custom_call.1} parent=1 // pred_check
      _
    $region23: #{tpu_custom_call.1} parent=1 // pred_check_branch
      %76 = sbr.rel (0) target = $region25
    $region24: #{tpu_custom_call.1} parent=1 // pred_region
      %78 = dma.done [#allocation3], 384
    $region25: #{tpu_custom_call.1} parent=1 // pred_fallthru
      _
    // Predicated region
    $region26: #{tpu_custom_call.1} parent=1 // pred_check
      _
    $region27: #{tpu_custom_call.1} parent=1 // pred_check_branch
      %80 = sbr.rel (0) target = $region29
    $region28: #{tpu_custom_call.1} parent=1 // pred_region
      %82 = dma.done [#allocation6], 36864
    $region29: #{tpu_custom_call.1} parent=1 // pred_fallthru
      _
    // Predicated region
    $region30: #{tpu_custom_call.1} parent=1 // pred_check
      _
    $region31: #{tpu_custom_call.1} parent=1 // pred_check_branch
      %84 = sbr.rel (0) target = $region33
    $region32: #{tpu_custom_call.1} parent=1 // pred_region
      %86 = dma.done [#allocation6], 192
    $region33: #{tpu_custom_call.1} parent=1 // pred_fallthru
      _
    // Predicated region
    $region34: #{tpu_custom_call.1} parent=1 // pred_check
      _
    $region35: #{tpu_custom_call.1} parent=1 // pred_check_branch
      %88 = sbr.rel (0) target = $region37
    $region36: #{tpu_custom_call.1} parent=1 // pred_region
      %90 = dma.done [#allocation9], 36864
    $region37: #{tpu_custom_call.1} parent=1 // pred_fallthru
      _
    // Predicated region
    $region38: #{tpu_custom_call.1} parent=1 // pred_check
      _
    $region39: #{tpu_custom_call.1} parent=1 // pred_check_branch
      %92 = sbr.rel (0) target = $region41
    $region40: #{tpu_custom_call.1} parent=1 // pred_region
      %94 = dma.done [#allocation9], 48
    $region41: #{tpu_custom_call.1} parent=1 // pred_fallthru
      _
    %v95 = vld [vmem:[#allocation2] sm:$0xff]
    %v96 = vld [vmem:[#allocation2 + $0x8] sm:$0xf]
    %v97 = vld [vmem:[#allocation2 + $0xc] sm:$0xff]
    %v98 = vld [vmem:[#allocation2 + $0x14] sm:$0xf]
    %v99 = vld [vmem:[#allocation5] sm:$0xff]
    %v100 = vld [vmem:[#allocation5 + $0x8] sm:$0xff]
    %v101 = vld [vmem:[#allocation5 + $0x10] sm:$0xff]
    %v102 = vld [vmem:[#allocation5 + $0x18] sm:$0xff]
    %v103 = vld [vmem:[#allocation5 + $0x20] sm:$0xff]
    %v104 = vld [vmem:[#allocation5 + $0x28] sm:$0xff]
    %v105 = vld [vmem:[#allocation5 + $0x30] sm:$0xff]
    %v106 = vld [vmem:[#allocation5 + $0x38] sm:$0xff]
    %v107 = vld [vmem:[#allocation5 + $0x40] sm:$0xff]
    %v108 = vld [vmem:[#allocation5 + $0x48] sm:$0xff]
    %v109 = vld [vmem:[#allocation5 + $0x50] sm:$0xff]
    %v110 = vld [vmem:[#allocation5 + $0x58] sm:$0xff]
    %v111 = vld [vmem:[#allocation5 + $0x60] sm:$0xff]
    %v112 = vld [vmem:[#allocation5 + $0x68] sm:$0xff]
    %v113 = vld [vmem:[#allocation5 + $0x70] sm:$0xff]
    %v114 = vld [vmem:[#allocation5 + $0x78] sm:$0xff]
    %v115 = vld [vmem:[#allocation5 + $0x80] sm:$0xff]
    %v116 = vld [vmem:[#allocation5 + $0x88] sm:$0xff]
    %v117 = vld [vmem:[#allocation5 + $0x90] sm:$0xff]
    %v118 = vld [vmem:[#allocation5 + $0x98] sm:$0xff]
    %v119 = vld [vmem:[#allocation5 + $0xa0] sm:$0xff]
    %v120 = vld [vmem:[#allocation5 + $0xa8] sm:$0xff]
    %v121 = vld [vmem:[#allocation5 + $0xb0] sm:$0xff]
    %v122 = vld [vmem:[#allocation5 + $0xb8] sm:$0xff]
    %v123 = vld [vmem:[#allocation5 + $0xc0] sm:$0xff]
    %v124 = vld [vmem:[#allocation5 + $0xc8] sm:$0xff]
    %v125 = vld [vmem:[#allocation5 + $0xd0] sm:$0xff]
    %v126 = vld [vmem:[#allocation5 + $0xd8] sm:$0xff]
    %v127 = vld [vmem:[#allocation5 + $0xe0] sm:$0xff]
    %v128 = vld [vmem:[#allocation5 + $0xe8] sm:$0xff]
    %v129 = vld [vmem:[#allocation5 + $0xf0] sm:$0xff]
    %v130 = vld [vmem:[#allocation5 + $0xf8] sm:$0xff]
    %v131 = vld [vmem:[#allocation5 + $0x100] sm:$0xff]
    %v132 = vld [vmem:[#allocation5 + $0x108] sm:$0xff]
    %v133 = vld [vmem:[#allocation5 + $0x110] sm:$0xff]
    %v134 = vld [vmem:[#allocation5 + $0x118] sm:$0xff]
    %v135 = vld [vmem:[#allocation5 + $0x120] sm:$0xff]
    %v136 = vld [vmem:[#allocation5 + $0x128] sm:$0xff]
    %v137 = vld [vmem:[#allocation5 + $0x130] sm:$0xff]
    %v138 = vld [vmem:[#allocation5 + $0x138] sm:$0xff]
    %v139 = vld [vmem:[#allocation5 + $0x140] sm:$0xff]
    %v140 = vld [vmem:[#allocation5 + $0x148] sm:$0xff]
    %v141 = vld [vmem:[#allocation5 + $0x150] sm:$0xff]
    %v142 = vld [vmem:[#allocation5 + $0x158] sm:$0xff]
    %v143 = vld [vmem:[#allocation5 + $0x160] sm:$0xff]
    %v144 = vld [vmem:[#allocation5 + $0x168] sm:$0xff]
    %v145 = vld [vmem:[#allocation5 + $0x170] sm:$0xff]
    %v146 = vld [vmem:[#allocation5 + $0x178] sm:$0xff]
    %v147 = vld [vmem:[#allocation5 + $0x180] sm:$0xff]
    %v148 = vld [vmem:[#allocation5 + $0x188] sm:$0xff]
    %v149 = vld [vmem:[#allocation5 + $0x190] sm:$0xff]
    %v150 = vld [vmem:[#allocation5 + $0x198] sm:$0xff]
    %v151 = vld [vmem:[#allocation5 + $0x1a0] sm:$0xff]
    %v152 = vld [vmem:[#allocation5 + $0x1a8] sm:$0xff]
    %v153 = vld [vmem:[#allocation5 + $0x1b0] sm:$0xff]
    %v154 = vld [vmem:[#allocation5 + $0x1b8] sm:$0xff]
    %v155 = vld [vmem:[#allocation5 + $0x1c0] sm:$0xff]
    %v156 = vld [vmem:[#allocation5 + $0x1c8] sm:$0xff]
    %v157 = vld [vmem:[#allocation5 + $0x1d0] sm:$0xff]
    %v158 = vld [vmem:[#allocation5 + $0x1d8] sm:$0xff]
    %v159 = vld [vmem:[#allocation5 + $0x1e0] sm:$0xff]
    %v160 = vld [vmem:[#allocation5 + $0x1e8] sm:$0xff]
    %v161 = vld [vmem:[#allocation5 + $0x1f0] sm:$0xff]
    %v162 = vld [vmem:[#allocation5 + $0x1f8] sm:$0xff]
    %v163 = vld [vmem:[#allocation5 + $0x200] sm:$0xff]
    %v164 = vld [vmem:[#allocation5 + $0x208] sm:$0xff]
    %v165 = vld [vmem:[#allocation5 + $0x210] sm:$0xff]
    %v166 = vld [vmem:[#allocation5 + $0x218] sm:$0xff]
    %v167 = vld [vmem:[#allocation5 + $0x220] sm:$0xff]
    %v168 = vld [vmem:[#allocation5 + $0x228] sm:$0xff]
    %v169 = vld [vmem:[#allocation5 + $0x230] sm:$0xff]
    %v170 = vld [vmem:[#allocation5 + $0x238] sm:$0xff]
    %v171 = vld [vmem:[#allocation5 + $0x240] sm:$0xff]
    %v172 = vld [vmem:[#allocation5 + $0x248] sm:$0xff]
    %v173 = vld [vmem:[#allocation5 + $0x250] sm:$0xff]
    %v174 = vld [vmem:[#allocation5 + $0x258] sm:$0xff]
    %v175 = vld [vmem:[#allocation5 + $0x260] sm:$0xff]
    %v176 = vld [vmem:[#allocation5 + $0x268] sm:$0xff]
    %v177 = vld [vmem:[#allocation5 + $0x270] sm:$0xff]
    %v178 = vld [vmem:[#allocation5 + $0x278] sm:$0xff]
    %v179 = vld [vmem:[#allocation5 + $0x280] sm:$0xff]
    %v180 = vld [vmem:[#allocation5 + $0x288] sm:$0xff]
    %v181 = vld [vmem:[#allocation5 + $0x290] sm:$0xff]
    %v182 = vld [vmem:[#allocation5 + $0x298] sm:$0xff]
    %v183 = vld [vmem:[#allocation5 + $0x2a0] sm:$0xff]
    %v184 = vld [vmem:[#allocation5 + $0x2a8] sm:$0xff]
    %v185 = vld [vmem:[#allocation5 + $0x2b0] sm:$0xff]
    %v186 = vld [vmem:[#allocation5 + $0x2b8] sm:$0xff]
    %v187 = vld [vmem:[#allocation5 + $0x2c0] sm:$0xff]
    %v188 = vld [vmem:[#allocation5 + $0x2c8] sm:$0xff]
    %v189 = vld [vmem:[#allocation5 + $0x2d0] sm:$0xff]
    %v190 = vld [vmem:[#allocation5 + $0x2d8] sm:$0xff]
    %v191 = vld [vmem:[#allocation5 + $0x2e0] sm:$0xff]
    %v192 = vld [vmem:[#allocation5 + $0x2e8] sm:$0xff]
    %v193 = vld [vmem:[#allocation5 + $0x2f0] sm:$0xff]
    %v194 = vld [vmem:[#allocation5 + $0x2f8] sm:$0xff]
    %v195 = vld [vmem:[#allocation5 + $0x300] sm:$0xff]
    %v196 = vld [vmem:[#allocation5 + $0x308] sm:$0xff]
    %v197 = vld [vmem:[#allocation5 + $0x310] sm:$0xff]
    %v198 = vld [vmem:[#allocation5 + $0x318] sm:$0xff]
    %v199 = vld [vmem:[#allocation5 + $0x320] sm:$0xff]
    %v200 = vld [vmem:[#allocation5 + $0x328] sm:$0xff]
    %v201 = vld [vmem:[#allocation5 + $0x330] sm:$0xff]
    %v202 = vld [vmem:[#allocation5 + $0x338] sm:$0xff]
    %v203 = vld [vmem:[#allocation5 + $0x340] sm:$0xff]
    %v204 = vld [vmem:[#allocation5 + $0x348] sm:$0xff]
    %v205 = vld [vmem:[#allocation5 + $0x350] sm:$0xff]
    %v206 = vld [vmem:[#allocation5 + $0x358] sm:$0xff]
    %v207 = vld [vmem:[#allocation5 + $0x360] sm:$0xff]
    %v208 = vld [vmem:[#allocation5 + $0x368] sm:$0xff]
    %v209 = vld [vmem:[#allocation5 + $0x370] sm:$0xff]
    %v210 = vld [vmem:[#allocation5 + $0x378] sm:$0xff]
    %v211 = vld [vmem:[#allocation5 + $0x380] sm:$0xff]
    %v212 = vld [vmem:[#allocation5 + $0x388] sm:$0xff]
    %v213 = vld [vmem:[#allocation5 + $0x390] sm:$0xff]
    %v214 = vld [vmem:[#allocation5 + $0x398] sm:$0xff]
    %v215 = vld [vmem:[#allocation5 + $0x3a0] sm:$0xff]
    %v216 = vld [vmem:[#allocation5 + $0x3a8] sm:$0xff]
    %v217 = vld [vmem:[#allocation5 + $0x3b0] sm:$0xff]
    %v218 = vld [vmem:[#allocation5 + $0x3b8] sm:$0xff]
    %v219 = vld [vmem:[#allocation5 + $0x3c0] sm:$0xff]
    %v220 = vld [vmem:[#allocation5 + $0x3c8] sm:$0xff]
    %v221 = vld [vmem:[#allocation5 + $0x3d0] sm:$0xff]
    %v222 = vld [vmem:[#allocation5 + $0x3d8] sm:$0xff]
    %v223 = vld [vmem:[#allocation5 + $0x3e0] sm:$0xff]
    %v224 = vld [vmem:[#allocation5 + $0x3e8] sm:$0xff]
    %v225 = vld [vmem:[#allocation5 + $0x3f0] sm:$0xff]
    %v226 = vld [vmem:[#allocation5 + $0x3f8] sm:$0xff]
    %v227 = vld [vmem:[#allocation5 + $0x400] sm:$0xff]
    %v228 = vld [vmem:[#allocation5 + $0x408] sm:$0xff]
    %v229 = vld [vmem:[#allocation5 + $0x410] sm:$0xff]
    %v230 = vld [vmem:[#allocation5 + $0x418] sm:$0xff]
    %v231 = vld [vmem:[#allocation5 + $0x420] sm:$0xff]
    %v232 = vld [vmem:[#allocation5 + $0x428] sm:$0xff]
    %v233 = vld [vmem:[#allocation5 + $0x430] sm:$0xff]
    %v234 = vld [vmem:[#allocation5 + $0x438] sm:$0xff]
    %v235 = vld [vmem:[#allocation5 + $0x440] sm:$0xff]
    %v236 = vld [vmem:[#allocation5 + $0x448] sm:$0xff]
    %v237 = vld [vmem:[#allocation5 + $0x450] sm:$0xff]
    %v238 = vld [vmem:[#allocation5 + $0x458] sm:$0xff]
    %v239 = vld [vmem:[#allocation5 + $0x460] sm:$0xff]
    %v240 = vld [vmem:[#allocation5 + $0x468] sm:$0xff]
    %v241 = vld [vmem:[#allocation5 + $0x470] sm:$0xff]
    %v242 = vld [vmem:[#allocation5 + $0x478] sm:$0xff]
    %v243 = vld [vmem:[#allocation5 + $0x480] sm:$0xff]
    %v244 = vld [vmem:[#allocation5 + $0x488] sm:$0xff]
    %v245 = vld [vmem:[#allocation5 + $0x490] sm:$0xff]
    %v246 = vld [vmem:[#allocation5 + $0x498] sm:$0xff]
    %v247 = vld [vmem:[#allocation5 + $0x4a0] sm:$0xff]
    %v248 = vld [vmem:[#allocation5 + $0x4a8] sm:$0xff]
    %v249 = vld [vmem:[#allocation5 + $0x4b0] sm:$0xff]
    %v250 = vld [vmem:[#allocation5 + $0x4b8] sm:$0xff]
    %v251 = vld [vmem:[#allocation5 + $0x4c0] sm:$0xff]
    %v252 = vld [vmem:[#allocation5 + $0x4c8] sm:$0xff]
    %v253 = vld [vmem:[#allocation5 + $0x4d0] sm:$0xff]
    %v254 = vld [vmem:[#allocation5 + $0x4d8] sm:$0xff]
    %v255 = vld [vmem:[#allocation5 + $0x4e0] sm:$0xff]
    %v256 = vld [vmem:[#allocation5 + $0x4e8] sm:$0xff]
    %v257 = vld [vmem:[#allocation5 + $0x4f0] sm:$0xff]
    %v258 = vld [vmem:[#allocation5 + $0x4f8] sm:$0xff]
    %v259 = vld [vmem:[#allocation5 + $0x500] sm:$0xff]
    %v260 = vld [vmem:[#allocation5 + $0x508] sm:$0xff]
    %v261 = vld [vmem:[#allocation5 + $0x510] sm:$0xff]
    %v262 = vld [vmem:[#allocation5 + $0x518] sm:$0xff]
    %v263 = vld [vmem:[#allocation5 + $0x520] sm:$0xff]
    %v264 = vld [vmem:[#allocation5 + $0x528] sm:$0xff]
    %v265 = vld [vmem:[#allocation5 + $0x530] sm:$0xff]
    %v266 = vld [vmem:[#allocation5 + $0x538] sm:$0xff]
    %v267 = vld [vmem:[#allocation5 + $0x540] sm:$0xff]
    %v268 = vld [vmem:[#allocation5 + $0x548] sm:$0xff]
    %v269 = vld [vmem:[#allocation5 + $0x550] sm:$0xff]
    %v270 = vld [vmem:[#allocation5 + $0x558] sm:$0xff]
    %v271 = vld [vmem:[#allocation5 + $0x560] sm:$0xff]
    %v272 = vld [vmem:[#allocation5 + $0x568] sm:$0xff]
    %v273 = vld [vmem:[#allocation5 + $0x570] sm:$0xff]
    %v274 = vld [vmem:[#allocation5 + $0x578] sm:$0xff]
    %v275 = vld [vmem:[#allocation5 + $0x580] sm:$0xff]
    %v276 = vld [vmem:[#allocation5 + $0x588] sm:$0xff]
    %v277 = vld [vmem:[#allocation5 + $0x590] sm:$0xff]
    %v278 = vld [vmem:[#allocation5 + $0x598] sm:$0xff]
    %v279 = vld [vmem:[#allocation5 + $0x5a0] sm:$0xff]
    %v280 = vld [vmem:[#allocation5 + $0x5a8] sm:$0xff]
    %v281 = vld [vmem:[#allocation5 + $0x5b0] sm:$0xff]
    %v282 = vld [vmem:[#allocation5 + $0x5b8] sm:$0xff]
    %v283 = vld [vmem:[#allocation5 + $0x5c0] sm:$0xff]
    %v284 = vld [vmem:[#allocation5 + $0x5c8] sm:$0xff]
    %v285 = vld [vmem:[#allocation5 + $0x5d0] sm:$0xff]
    %v286 = vld [vmem:[#allocation5 + $0x5d8] sm:$0xff]
    %v287 = vld [vmem:[#allocation5 + $0x5e0] sm:$0xff]
    %v288 = vld [vmem:[#allocation5 + $0x5e8] sm:$0xff]
    %v289 = vld [vmem:[#allocation5 + $0x5f0] sm:$0xff]
    %v290 = vld [vmem:[#allocation5 + $0x5f8] sm:$0xff]
    %v291 = vld [vmem:[#allocation5 + $0x600] sm:$0xff]
    %v292 = vld [vmem:[#allocation5 + $0x608] sm:$0xff]
    %v293 = vld [vmem:[#allocation5 + $0x610] sm:$0xff]
    %v294 = vld [vmem:[#allocation5 + $0x618] sm:$0xff]
    %v295 = vld [vmem:[#allocation5 + $0x620] sm:$0xff]
    %v296 = vld [vmem:[#allocation5 + $0x628] sm:$0xff]
    %v297 = vld [vmem:[#allocation5 + $0x630] sm:$0xff]
    %v298 = vld [vmem:[#allocation5 + $0x638] sm:$0xff]
    %v299 = vld [vmem:[#allocation5 + $0x640] sm:$0xff]
    %v300 = vld [vmem:[#allocation5 + $0x648] sm:$0xff]
    %v301 = vld [vmem:[#allocation5 + $0x650] sm:$0xff]
    %v302 = vld [vmem:[#allocation5 + $0x658] sm:$0xff]
    %v303 = vld [vmem:[#allocation5 + $0x660] sm:$0xff]
    %v304 = vld [vmem:[#allocation5 + $0x668] sm:$0xff]
    %v305 = vld [vmem:[#allocation5 + $0x670] sm:$0xff]
    %v306 = vld [vmem:[#allocation5 + $0x678] sm:$0xff]
    %v307 = vld [vmem:[#allocation5 + $0x680] sm:$0xff]
    %v308 = vld [vmem:[#allocation5 + $0x688] sm:$0xff]
    %v309 = vld [vmem:[#allocation5 + $0x690] sm:$0xff]
    %v310 = vld [vmem:[#allocation5 + $0x698] sm:$0xff]
    %v311 = vld [vmem:[#allocation5 + $0x6a0] sm:$0xff]
    %v312 = vld [vmem:[#allocation5 + $0x6a8] sm:$0xff]
    %v313 = vld [vmem:[#allocation5 + $0x6b0] sm:$0xff]
    %v314 = vld [vmem:[#allocation5 + $0x6b8] sm:$0xff]
    %v315 = vld [vmem:[#allocation5 + $0x6c0] sm:$0xff]
    %v316 = vld [vmem:[#allocation5 + $0x6c8] sm:$0xff]
    %v317 = vld [vmem:[#allocation5 + $0x6d0] sm:$0xff]
    %v318 = vld [vmem:[#allocation5 + $0x6d8] sm:$0xff]
    %v319 = vld [vmem:[#allocation5 + $0x6e0] sm:$0xff]
    %v320 = vld [vmem:[#allocation5 + $0x6e8] sm:$0xff]
    %v321 = vld [vmem:[#allocation5 + $0x6f0] sm:$0xff]
    %v322 = vld [vmem:[#allocation5 + $0x6f8] sm:$0xff]
    %v323 = vld [vmem:[#allocation5 + $0x700] sm:$0xff]
    %v324 = vld [vmem:[#allocation5 + $0x708] sm:$0xff]
    %v325 = vld [vmem:[#allocation5 + $0x710] sm:$0xff]
    %v326 = vld [vmem:[#allocation5 + $0x718] sm:$0xff]
    %v327 = vld [vmem:[#allocation5 + $0x720] sm:$0xff]
    %v328 = vld [vmem:[#allocation5 + $0x728] sm:$0xff]
    %v329 = vld [vmem:[#allocation5 + $0x730] sm:$0xff]
    %v330 = vld [vmem:[#allocation5 + $0x738] sm:$0xff]
    %v331 = vld [vmem:[#allocation5 + $0x740] sm:$0xff]
    %v332 = vld [vmem:[#allocation5 + $0x748] sm:$0xff]
    %v333 = vld [vmem:[#allocation5 + $0x750] sm:$0xff]
    %v334 = vld [vmem:[#allocation5 + $0x758] sm:$0xff]
    %v335 = vld [vmem:[#allocation5 + $0x760] sm:$0xff]
    %v336 = vld [vmem:[#allocation5 + $0x768] sm:$0xff]
    %v337 = vld [vmem:[#allocation5 + $0x770] sm:$0xff]
    %v338 = vld [vmem:[#allocation5 + $0x778] sm:$0xff]
    %v339 = vld [vmem:[#allocation5 + $0x780] sm:$0xff]
    %v340 = vld [vmem:[#allocation5 + $0x788] sm:$0xff]
    %v341 = vld [vmem:[#allocation5 + $0x790] sm:$0xff]
    %v342 = vld [vmem:[#allocation5 + $0x798] sm:$0xff]
    %v343 = vld [vmem:[#allocation5 + $0x7a0] sm:$0xff]
    %v344 = vld [vmem:[#allocation5 + $0x7a8] sm:$0xff]
    %v345 = vld [vmem:[#allocation5 + $0x7b0] sm:$0xff]
    %v346 = vld [vmem:[#allocation5 + $0x7b8] sm:$0xff]
    %v347 = vld [vmem:[#allocation5 + $0x7c0] sm:$0xff]
    %v348 = vld [vmem:[#allocation5 + $0x7c8] sm:$0xff]
    %v349 = vld [vmem:[#allocation5 + $0x7d0] sm:$0xff]
    %v350 = vld [vmem:[#allocation5 + $0x7d8] sm:$0xff]
    %v351 = vld [vmem:[#allocation5 + $0x7e0] sm:$0xff]
    %v352 = vld [vmem:[#allocation5 + $0x7e8] sm:$0xff]
    %v353 = vld [vmem:[#allocation5 + $0x7f0] sm:$0xff]
    %v354 = vld [vmem:[#allocation5 + $0x7f8] sm:$0xff]
    %v355 = vld [vmem:[#allocation5 + $0x800] sm:$0xff]
    %v356 = vld [vmem:[#allocation5 + $0x808] sm:$0xff]
    %v357 = vld [vmem:[#allocation5 + $0x810] sm:$0xff]
    %v358 = vld [vmem:[#allocation5 + $0x818] sm:$0xff]
    %v359 = vld [vmem:[#allocation5 + $0x820] sm:$0xff]
    %v360 = vld [vmem:[#allocation5 + $0x828] sm:$0xff]
    %v361 = vld [vmem:[#allocation5 + $0x830] sm:$0xff]
    %v362 = vld [vmem:[#allocation5 + $0x838] sm:$0xff]
    %v363 = vld [vmem:[#allocation5 + $0x840] sm:$0xff]
    %v364 = vld [vmem:[#allocation5 + $0x848] sm:$0xff]
    %v365 = vld [vmem:[#allocation5 + $0x850] sm:$0xff]
    %v366 = vld [vmem:[#allocation5 + $0x858] sm:$0xff]
    %v367 = vld [vmem:[#allocation5 + $0x860] sm:$0xff]
    %v368 = vld [vmem:[#allocation5 + $0x868] sm:$0xff]
    %v369 = vld [vmem:[#allocation5 + $0x870] sm:$0xff]
    %v370 = vld [vmem:[#allocation5 + $0x878] sm:$0xff]
    %v371 = vld [vmem:[#allocation5 + $0x880] sm:$0xff]
    %v372 = vld [vmem:[#allocation5 + $0x888] sm:$0xff]
    %v373 = vld [vmem:[#allocation5 + $0x890] sm:$0xff]
    %v374 = vld [vmem:[#allocation5 + $0x898] sm:$0xff]
    %v375 = vld [vmem:[#allocation5 + $0x8a0] sm:$0xff]
    %v376 = vld [vmem:[#allocation5 + $0x8a8] sm:$0xff]
    %v377 = vld [vmem:[#allocation5 + $0x8b0] sm:$0xff]
    %v378 = vld [vmem:[#allocation5 + $0x8b8] sm:$0xff]
    %v379 = vld [vmem:[#allocation5 + $0x8c0] sm:$0xff]
    %v380 = vld [vmem:[#allocation5 + $0x8c8] sm:$0xff]
    %v381 = vld [vmem:[#allocation5 + $0x8d0] sm:$0xff]
    %v382 = vld [vmem:[#allocation5 + $0x8d8] sm:$0xff]
    %v383 = vld [vmem:[#allocation5 + $0x8e0] sm:$0xff]
    %v384 = vld [vmem:[#allocation5 + $0x8e8] sm:$0xff]
    %v385 = vld [vmem:[#allocation5 + $0x8f0] sm:$0xff]
    %v386 = vld [vmem:[#allocation5 + $0x8f8] sm:$0xff]
    %v387 = vld [vmem:[#allocation7] sm:$0xff]
    %v388 = vld [vmem:[#allocation7 + $0x8] sm:$0xf]
    %v391 = vperm.slane %v387, 0
    %v392 = vperm.slane %v387, 1
    %v393 = vperm.slane %v387, 2
    %v394 = vperm.slane %v387, 3
    %v395 = vperm.slane %v387, 4
    %v396 = vperm.slane %v387, 5
    %v397 = vperm.slane %v387, 6
    %v398 = vperm.slane %v387, 7
    %v399 = vperm.slane %v388, 0
    %v400 = vperm.slane %v388, 1
    %v401 = vperm.slane %v388, 2
    %v402 = vperm.slane %v388, 3
    %v419 = vunpack.c.l.b16 %v95
    %v420 = vunpack.c.h.b16 %v95
    %v421 = vunpack.c.l.b16 %v96
    %v422 = vunpack.c.l.b16 %v97
    %v423 = vunpack.c.h.b16 %v97
    %v424 = vunpack.c.l.b16 %v98
    %v425 = vpack.c.b16 %v422, %v419
    %v426 = vpack.c.b16 %v423, %v420
    %v427 = vpack.c.b16 %v424, %v421
    %v719 = vunpack.c.l.b16 %v99
    %v720 = vunpack.c.h.b16 %v99
    %v721 = vunpack.c.l.b16 %v100
    %v722 = vunpack.c.h.b16 %v100
    %v723 = vunpack.c.l.b16 %v101
    %v724 = vunpack.c.h.b16 %v101
    %v725 = vunpack.c.l.b16 %v102
    %v726 = vunpack.c.h.b16 %v102
    %v727 = vunpack.c.l.b16 %v103
    %v728 = vunpack.c.h.b16 %v103
    %v729 = vunpack.c.l.b16 %v104
    %v730 = vunpack.c.h.b16 %v104
    %v731 = vunpack.c.l.b16 %v105
    %v732 = vunpack.c.h.b16 %v105
    %v733 = vunpack.c.l.b16 %v106
    %v734 = vunpack.c.h.b16 %v106
    %v735 = vunpack.c.l.b16 %v107
    %v736 = vunpack.c.h.b16 %v107
    %v737 = vunpack.c.l.b16 %v108
    %v738 = vunpack.c.h.b16 %v108
    %v739 = vunpack.c.l.b16 %v109
    %v740 = vunpack.c.h.b16 %v109
    %v741 = vunpack.c.l.b16 %v110
    %v742 = vunpack.c.h.b16 %v110
    %v743 = vunpack.c.l.b16 %v111
    %v744 = vunpack.c.h.b16 %v111
    %v745 = vunpack.c.l.b16 %v112
    %v746 = vunpack.c.h.b16 %v112
    %v747 = vunpack.c.l.b16 %v113
    %v748 = vunpack.c.h.b16 %v113
    %v749 = vunpack.c.l.b16 %v114
    %v750 = vunpack.c.h.b16 %v114
    %v751 = vunpack.c.l.b16 %v115
    %v752 = vunpack.c.h.b16 %v115
    %v753 = vunpack.c.l.b16 %v116
    %v754 = vunpack.c.h.b16 %v116
    %v755 = vunpack.c.l.b16 %v117
    %v756 = vunpack.c.h.b16 %v117
    %v757 = vunpack.c.l.b16 %v118
    %v758 = vunpack.c.h.b16 %v118
    %v759 = vunpack.c.l.b16 %v119
    %v760 = vunpack.c.h.b16 %v119
    %v761 = vunpack.c.l.b16 %v120
    %v762 = vunpack.c.h.b16 %v120
    %v763 = vunpack.c.l.b16 %v121
    %v764 = vunpack.c.h.b16 %v121
    %v765 = vunpack.c.l.b16 %v122
    %v766 = vunpack.c.h.b16 %v122
    %v767 = vunpack.c.l.b16 %v123
    %v768 = vunpack.c.h.b16 %v123
    %v769 = vunpack.c.l.b16 %v124
    %v770 = vunpack.c.h.b16 %v124
    %v771 = vunpack.c.l.b16 %v125
    %v772 = vunpack.c.h.b16 %v125
    %v773 = vunpack.c.l.b16 %v126
    %v774 = vunpack.c.h.b16 %v126
    %v775 = vunpack.c.l.b16 %v127
    %v776 = vunpack.c.h.b16 %v127
    %v777 = vunpack.c.l.b16 %v128
    %v778 = vunpack.c.h.b16 %v128
    %v779 = vunpack.c.l.b16 %v129
    %v780 = vunpack.c.h.b16 %v129
    %v781 = vunpack.c.l.b16 %v130
    %v782 = vunpack.c.h.b16 %v130
    %v783 = vunpack.c.l.b16 %v131
    %v784 = vunpack.c.h.b16 %v131
    %v785 = vunpack.c.l.b16 %v132
    %v786 = vunpack.c.h.b16 %v132
    %v787 = vunpack.c.l.b16 %v133
    %v788 = vunpack.c.h.b16 %v133
    %v789 = vunpack.c.l.b16 %v134
    %v790 = vunpack.c.h.b16 %v134
    %v791 = vunpack.c.l.b16 %v135
    %v792 = vunpack.c.h.b16 %v135
    %v793 = vunpack.c.l.b16 %v136
    %v794 = vunpack.c.h.b16 %v136
    %v795 = vunpack.c.l.b16 %v137
    %v796 = vunpack.c.h.b16 %v137
    %v797 = vunpack.c.l.b16 %v138
    %v798 = vunpack.c.h.b16 %v138
    %v799 = vunpack.c.l.b16 %v139
    %v800 = vunpack.c.h.b16 %v139
    %v801 = vunpack.c.l.b16 %v140
    %v802 = vunpack.c.h.b16 %v140
    %v803 = vunpack.c.l.b16 %v141
    %v804 = vunpack.c.h.b16 %v141
    %v805 = vunpack.c.l.b16 %v142
    %v806 = vunpack.c.h.b16 %v142
    %v807 = vunpack.c.l.b16 %v143
    %v808 = vunpack.c.h.b16 %v143
    %v809 = vunpack.c.l.b16 %v144
    %v810 = vunpack.c.h.b16 %v144
    %v811 = vunpack.c.l.b16 %v145
    %v812 = vunpack.c.h.b16 %v145
    %v813 = vunpack.c.l.b16 %v146
    %v814 = vunpack.c.h.b16 %v146
    %v815 = vunpack.c.l.b16 %v147
    %v816 = vunpack.c.h.b16 %v147
    %v817 = vunpack.c.l.b16 %v148
    %v818 = vunpack.c.h.b16 %v148
    %v819 = vunpack.c.l.b16 %v149
    %v820 = vunpack.c.h.b16 %v149
    %v821 = vunpack.c.l.b16 %v150
    %v822 = vunpack.c.h.b16 %v150
    %v823 = vunpack.c.l.b16 %v151
    %v824 = vunpack.c.h.b16 %v151
    %v825 = vunpack.c.l.b16 %v152
    %v826 = vunpack.c.h.b16 %v152
    %v827 = vunpack.c.l.b16 %v153
    %v828 = vunpack.c.h.b16 %v153
    %v829 = vunpack.c.l.b16 %v154
    %v830 = vunpack.c.h.b16 %v154
    %v831 = vunpack.c.l.b16 %v155
    %v832 = vunpack.c.h.b16 %v155
    %v833 = vunpack.c.l.b16 %v156
    %v834 = vunpack.c.h.b16 %v156
    %v835 = vunpack.c.l.b16 %v157
    %v836 = vunpack.c.h.b16 %v157
    %v837 = vunpack.c.l.b16 %v158
    %v838 = vunpack.c.h.b16 %v158
    %v839 = vunpack.c.l.b16 %v159
    %v840 = vunpack.c.h.b16 %v159
    %v841 = vunpack.c.l.b16 %v160
    %v842 = vunpack.c.h.b16 %v160
    %v843 = vunpack.c.l.b16 %v161
    %v844 = vunpack.c.h.b16 %v161
    %v845 = vunpack.c.l.b16 %v162
    %v846 = vunpack.c.h.b16 %v162
    %v847 = vunpack.c.l.b16 %v163
    %v848 = vunpack.c.h.b16 %v163
    %v849 = vunpack.c.l.b16 %v164
    %v850 = vunpack.c.h.b16 %v164
    %v851 = vunpack.c.l.b16 %v165
    %v852 = vunpack.c.h.b16 %v165
    %v853 = vunpack.c.l.b16 %v166
    %v854 = vunpack.c.h.b16 %v166
    %v855 = vunpack.c.l.b16 %v167
    %v856 = vunpack.c.h.b16 %v167
    %v857 = vunpack.c.l.b16 %v168
    %v858 = vunpack.c.h.b16 %v168
    %v859 = vunpack.c.l.b16 %v169
    %v860 = vunpack.c.h.b16 %v169
    %v861 = vunpack.c.l.b16 %v170
    %v862 = vunpack.c.h.b16 %v170
    %v863 = vunpack.c.l.b16 %v171
    %v864 = vunpack.c.h.b16 %v171
    %v865 = vunpack.c.l.b16 %v172
    %v866 = vunpack.c.h.b16 %v172
    %v867 = vunpack.c.l.b16 %v173
    %v868 = vunpack.c.h.b16 %v173
    %v869 = vunpack.c.l.b16 %v174
    %v870 = vunpack.c.h.b16 %v174
    %v871 = vunpack.c.l.b16 %v175
    %v872 = vunpack.c.h.b16 %v175
    %v873 = vunpack.c.l.b16 %v176
    %v874 = vunpack.c.h.b16 %v176
    %v875 = vunpack.c.l.b16 %v177
    %v876 = vunpack.c.h.b16 %v177
    %v877 = vunpack.c.l.b16 %v178
    %v878 = vunpack.c.h.b16 %v178
    %v879 = vunpack.c.l.b16 %v179
    %v880 = vunpack.c.h.b16 %v179
    %v881 = vunpack.c.l.b16 %v180
    %v882 = vunpack.c.h.b16 %v180
    %v883 = vunpack.c.l.b16 %v181
    %v884 = vunpack.c.h.b16 %v181
    %v885 = vunpack.c.l.b16 %v182
    %v886 = vunpack.c.h.b16 %v182
    %v887 = vunpack.c.l.b16 %v183
    %v888 = vunpack.c.h.b16 %v183
    %v889 = vunpack.c.l.b16 %v184
    %v890 = vunpack.c.h.b16 %v184
    %v891 = vunpack.c.l.b16 %v185
    %v892 = vunpack.c.h.b16 %v185
    %v893 = vunpack.c.l.b16 %v186
    %v894 = vunpack.c.h.b16 %v186
    %v895 = vunpack.c.l.b16 %v187
    %v896 = vunpack.c.h.b16 %v187
    %v897 = vunpack.c.l.b16 %v188
    %v898 = vunpack.c.h.b16 %v188
    %v899 = vunpack.c.l.b16 %v189
    %v900 = vunpack.c.h.b16 %v189
    %v901 = vunpack.c.l.b16 %v190
    %v902 = vunpack.c.h.b16 %v190
    %v903 = vunpack.c.l.b16 %v191
    %v904 = vunpack.c.h.b16 %v191
    %v905 = vunpack.c.l.b16 %v192
    %v906 = vunpack.c.h.b16 %v192
    %v907 = vunpack.c.l.b16 %v193
    %v908 = vunpack.c.h.b16 %v193
    %v909 = vunpack.c.l.b16 %v194
    %v910 = vunpack.c.h.b16 %v194
    %v911 = vunpack.c.l.b16 %v195
    %v912 = vunpack.c.h.b16 %v195
    %v913 = vunpack.c.l.b16 %v196
    %v914 = vunpack.c.h.b16 %v196
    %v915 = vunpack.c.l.b16 %v197
    %v916 = vunpack.c.h.b16 %v197
    %v917 = vunpack.c.l.b16 %v198
    %v918 = vunpack.c.h.b16 %v198
    %v919 = vunpack.c.l.b16 %v199
    %v920 = vunpack.c.h.b16 %v199
    %v921 = vunpack.c.l.b16 %v200
    %v922 = vunpack.c.h.b16 %v200
    %v923 = vunpack.c.l.b16 %v201
    %v924 = vunpack.c.h.b16 %v201
    %v925 = vunpack.c.l.b16 %v202
    %v926 = vunpack.c.h.b16 %v202
    %v927 = vunpack.c.l.b16 %v203
    %v928 = vunpack.c.h.b16 %v203
    %v929 = vunpack.c.l.b16 %v204
    %v930 = vunpack.c.h.b16 %v204
    %v931 = vunpack.c.l.b16 %v205
    %v932 = vunpack.c.h.b16 %v205
    %v933 = vunpack.c.l.b16 %v206
    %v934 = vunpack.c.h.b16 %v206
    %v935 = vunpack.c.l.b16 %v207
    %v936 = vunpack.c.h.b16 %v207
    %v937 = vunpack.c.l.b16 %v208
    %v938 = vunpack.c.h.b16 %v208
    %v939 = vunpack.c.l.b16 %v209
    %v940 = vunpack.c.h.b16 %v209
    %v941 = vunpack.c.l.b16 %v210
    %v942 = vunpack.c.h.b16 %v210
    %v943 = vunpack.c.l.b16 %v211
    %v944 = vunpack.c.h.b16 %v211
    %v945 = vunpack.c.l.b16 %v212
    %v946 = vunpack.c.h.b16 %v212
    %v947 = vunpack.c.l.b16 %v213
    %v948 = vunpack.c.h.b16 %v213
    %v949 = vunpack.c.l.b16 %v214
    %v950 = vunpack.c.h.b16 %v214
    %v951 = vunpack.c.l.b16 %v215
    %v952 = vunpack.c.h.b16 %v215
    %v953 = vunpack.c.l.b16 %v216
    %v954 = vunpack.c.h.b16 %v216
    %v955 = vunpack.c.l.b16 %v217
    %v956 = vunpack.c.h.b16 %v217
    %v957 = vunpack.c.l.b16 %v218
    %v958 = vunpack.c.h.b16 %v218
    %v959 = vunpack.c.l.b16 %v219
    %v960 = vunpack.c.h.b16 %v219
    %v961 = vunpack.c.l.b16 %v220
    %v962 = vunpack.c.h.b16 %v220
    %v963 = vunpack.c.l.b16 %v221
    %v964 = vunpack.c.h.b16 %v221
    %v965 = vunpack.c.l.b16 %v222
    %v966 = vunpack.c.h.b16 %v222
    %v967 = vunpack.c.l.b16 %v223
    %v968 = vunpack.c.h.b16 %v223
    %v969 = vunpack.c.l.b16 %v224
    %v970 = vunpack.c.h.b16 %v224
    %v971 = vunpack.c.l.b16 %v225
    %v972 = vunpack.c.h.b16 %v225
    %v973 = vunpack.c.l.b16 %v226
    %v974 = vunpack.c.h.b16 %v226
    %v975 = vunpack.c.l.b16 %v227
    %v976 = vunpack.c.h.b16 %v227
    %v977 = vunpack.c.l.b16 %v228
    %v978 = vunpack.c.h.b16 %v228
    %v979 = vunpack.c.l.b16 %v229
    %v980 = vunpack.c.h.b16 %v229
    %v981 = vunpack.c.l.b16 %v230
    %v982 = vunpack.c.h.b16 %v230
    %v983 = vunpack.c.l.b16 %v231
    %v984 = vunpack.c.h.b16 %v231
    %v985 = vunpack.c.l.b16 %v232
    %v986 = vunpack.c.h.b16 %v232
    %v987 = vunpack.c.l.b16 %v233
    %v988 = vunpack.c.h.b16 %v233
    %v989 = vunpack.c.l.b16 %v234
    %v990 = vunpack.c.h.b16 %v234
    %v991 = vunpack.c.l.b16 %v235
    %v992 = vunpack.c.h.b16 %v235
    %v993 = vunpack.c.l.b16 %v236
    %v994 = vunpack.c.h.b16 %v236
    %v995 = vunpack.c.l.b16 %v237
    %v996 = vunpack.c.h.b16 %v237
    %v997 = vunpack.c.l.b16 %v238
    %v998 = vunpack.c.h.b16 %v238
    %v999 = vunpack.c.l.b16 %v239
    %v1000 = vunpack.c.h.b16 %v239
    %v1001 = vunpack.c.l.b16 %v240
    %v1002 = vunpack.c.h.b16 %v240
    %v1003 = vunpack.c.l.b16 %v241
    %v1004 = vunpack.c.h.b16 %v241
    %v1005 = vunpack.c.l.b16 %v242
    %v1006 = vunpack.c.h.b16 %v242
    %v1007 = vunpack.c.l.b16 %v243
    %v1008 = vunpack.c.h.b16 %v243
    %v1009 = vunpack.c.l.b16 %v244
    %v1010 = vunpack.c.h.b16 %v244
    %v1011 = vunpack.c.l.b16 %v245
    %v1012 = vunpack.c.h.b16 %v245
    %v1013 = vunpack.c.l.b16 %v246
    %v1014 = vunpack.c.h.b16 %v246
    %v1015 = vunpack.c.l.b16 %v247
    %v1016 = vunpack.c.h.b16 %v247
    %v1017 = vunpack.c.l.b16 %v248
    %v1018 = vunpack.c.h.b16 %v248
    %v1019 = vunpack.c.l.b16 %v249
    %v1020 = vunpack.c.h.b16 %v249
    %v1021 = vunpack.c.l.b16 %v250
    %v1022 = vunpack.c.h.b16 %v250
    %v1023 = vunpack.c.l.b16 %v251
    %v1024 = vunpack.c.h.b16 %v251
    %v1025 = vunpack.c.l.b16 %v252
    %v1026 = vunpack.c.h.b16 %v252
    %v1027 = vunpack.c.l.b16 %v253
    %v1028 = vunpack.c.h.b16 %v253
    %v1029 = vunpack.c.l.b16 %v254
    %v1030 = vunpack.c.h.b16 %v254
    %v1031 = vunpack.c.l.b16 %v255
    %v1032 = vunpack.c.h.b16 %v255
    %v1033 = vunpack.c.l.b16 %v256
    %v1034 = vunpack.c.h.b16 %v256
    %v1035 = vunpack.c.l.b16 %v257
    %v1036 = vunpack.c.h.b16 %v257
    %v1037 = vunpack.c.l.b16 %v258
    %v1038 = vunpack.c.h.b16 %v258
    %v1039 = vunpack.c.l.b16 %v259
    %v1040 = vunpack.c.h.b16 %v259
    %v1041 = vunpack.c.l.b16 %v260
    %v1042 = vunpack.c.h.b16 %v260
    %v1043 = vunpack.c.l.b16 %v261
    %v1044 = vunpack.c.h.b16 %v261
    %v1045 = vunpack.c.l.b16 %v262
    %v1046 = vunpack.c.h.b16 %v262
    %v1047 = vunpack.c.l.b16 %v263
    %v1048 = vunpack.c.h.b16 %v263
    %v1049 = vunpack.c.l.b16 %v264
    %v1050 = vunpack.c.h.b16 %v264
    %v1051 = vunpack.c.l.b16 %v265
    %v1052 = vunpack.c.h.b16 %v265
    %v1053 = vunpack.c.l.b16 %v266
    %v1054 = vunpack.c.h.b16 %v266
    %v1055 = vunpack.c.l.b16 %v267
    %v1056 = vunpack.c.h.b16 %v267
    %v1057 = vunpack.c.l.b16 %v268
    %v1058 = vunpack.c.h.b16 %v268
    %v1059 = vunpack.c.l.b16 %v269
    %v1060 = vunpack.c.h.b16 %v269
    %v1061 = vunpack.c.l.b16 %v270
    %v1062 = vunpack.c.h.b16 %v270
    %v1063 = vunpack.c.l.b16 %v271
    %v1064 = vunpack.c.h.b16 %v271
    %v1065 = vunpack.c.l.b16 %v272
    %v1066 = vunpack.c.h.b16 %v272
    %v1067 = vunpack.c.l.b16 %v273
    %v1068 = vunpack.c.h.b16 %v273
    %v1069 = vunpack.c.l.b16 %v274
    %v1070 = vunpack.c.h.b16 %v274
    %v1071 = vunpack.c.l.b16 %v275
    %v1072 = vunpack.c.h.b16 %v275
    %v1073 = vunpack.c.l.b16 %v276
    %v1074 = vunpack.c.h.b16 %v276
    %v1075 = vunpack.c.l.b16 %v277
    %v1076 = vunpack.c.h.b16 %v277
    %v1077 = vunpack.c.l.b16 %v278
    %v1078 = vunpack.c.h.b16 %v278
    %v1079 = vunpack.c.l.b16 %v279
    %v1080 = vunpack.c.h.b16 %v279
    %v1081 = vunpack.c.l.b16 %v280
    %v1082 = vunpack.c.h.b16 %v280
    %v1083 = vunpack.c.l.b16 %v281
    %v1084 = vunpack.c.h.b16 %v281
    %v1085 = vunpack.c.l.b16 %v282
    %v1086 = vunpack.c.h.b16 %v282
    %v1087 = vunpack.c.l.b16 %v283
    %v1088 = vunpack.c.h.b16 %v283
    %v1089 = vunpack.c.l.b16 %v284
    %v1090 = vunpack.c.h.b16 %v284
    %v1091 = vunpack.c.l.b16 %v285
    %v1092 = vunpack.c.h.b16 %v285
    %v1093 = vunpack.c.l.b16 %v286
    %v1094 = vunpack.c.h.b16 %v286
    %v1095 = vunpack.c.l.b16 %v287
    %v1096 = vunpack.c.h.b16 %v287
    %v1097 = vunpack.c.l.b16 %v288
    %v1098 = vunpack.c.h.b16 %v288
    %v1099 = vunpack.c.l.b16 %v289
    %v1100 = vunpack.c.h.b16 %v289
    %v1101 = vunpack.c.l.b16 %v290
    %v1102 = vunpack.c.h.b16 %v290
    %v1103 = vunpack.c.l.b16 %v291
    %v1104 = vunpack.c.h.b16 %v291
    %v1105 = vunpack.c.l.b16 %v292
    %v1106 = vunpack.c.h.b16 %v292
    %v1107 = vunpack.c.l.b16 %v293
    %v1108 = vunpack.c.h.b16 %v293
    %v1109 = vunpack.c.l.b16 %v294
    %v1110 = vunpack.c.h.b16 %v294
    %v1111 = vunpack.c.l.b16 %v295
    %v1112 = vunpack.c.h.b16 %v295
    %v1113 = vunpack.c.l.b16 %v296
    %v1114 = vunpack.c.h.b16 %v296
    %v1115 = vunpack.c.l.b16 %v297
    %v1116 = vunpack.c.h.b16 %v297
    %v1117 = vunpack.c.l.b16 %v298
    %v1118 = vunpack.c.h.b16 %v298
    %v1119 = vunpack.c.l.b16 %v299
    %v1120 = vunpack.c.h.b16 %v299
    %v1121 = vunpack.c.l.b16 %v300
    %v1122 = vunpack.c.h.b16 %v300
    %v1123 = vunpack.c.l.b16 %v301
    %v1124 = vunpack.c.h.b16 %v301
    %v1125 = vunpack.c.l.b16 %v302
    %v1126 = vunpack.c.h.b16 %v302
    %v1127 = vunpack.c.l.b16 %v303
    %v1128 = vunpack.c.h.b16 %v303
    %v1129 = vunpack.c.l.b16 %v304
    %v1130 = vunpack.c.h.b16 %v304
    %v1131 = vunpack.c.l.b16 %v305
    %v1132 = vunpack.c.h.b16 %v305
    %v1133 = vunpack.c.l.b16 %v306
    %v1134 = vunpack.c.h.b16 %v306
    %v1135 = vunpack.c.l.b16 %v307
    %v1136 = vunpack.c.h.b16 %v307
    %v1137 = vunpack.c.l.b16 %v308
    %v1138 = vunpack.c.h.b16 %v308
    %v1139 = vunpack.c.l.b16 %v309
    %v1140 = vunpack.c.h.b16 %v309
    %v1141 = vunpack.c.l.b16 %v310
    %v1142 = vunpack.c.h.b16 %v310
    %v1143 = vunpack.c.l.b16 %v311
    %v1144 = vunpack.c.h.b16 %v311
    %v1145 = vunpack.c.l.b16 %v312
    %v1146 = vunpack.c.h.b16 %v312
    %v1147 = vunpack.c.l.b16 %v313
    %v1148 = vunpack.c.h.b16 %v313
    %v1149 = vunpack.c.l.b16 %v314
    %v1150 = vunpack.c.h.b16 %v314
    %v1151 = vunpack.c.l.b16 %v315
    %v1152 = vunpack.c.h.b16 %v315
    %v1153 = vunpack.c.l.b16 %v316
    %v1154 = vunpack.c.h.b16 %v316
    %v1155 = vunpack.c.l.b16 %v317
    %v1156 = vunpack.c.h.b16 %v317
    %v1157 = vunpack.c.l.b16 %v318
    %v1158 = vunpack.c.h.b16 %v318
    %v1159 = vunpack.c.l.b16 %v319
    %v1160 = vunpack.c.h.b16 %v319
    %v1161 = vunpack.c.l.b16 %v320
    %v1162 = vunpack.c.h.b16 %v320
    %v1163 = vunpack.c.l.b16 %v321
    %v1164 = vunpack.c.h.b16 %v321
    %v1165 = vunpack.c.l.b16 %v322
    %v1166 = vunpack.c.h.b16 %v322
    %v1167 = vunpack.c.l.b16 %v323
    %v1168 = vunpack.c.h.b16 %v323
    %v1169 = vunpack.c.l.b16 %v324
    %v1170 = vunpack.c.h.b16 %v324
    %v1171 = vunpack.c.l.b16 %v325
    %v1172 = vunpack.c.h.b16 %v325
    %v1173 = vunpack.c.l.b16 %v326
    %v1174 = vunpack.c.h.b16 %v326
    %v1175 = vunpack.c.l.b16 %v327
    %v1176 = vunpack.c.h.b16 %v327
    %v1177 = vunpack.c.l.b16 %v328
    %v1178 = vunpack.c.h.b16 %v328
    %v1179 = vunpack.c.l.b16 %v329
    %v1180 = vunpack.c.h.b16 %v329
    %v1181 = vunpack.c.l.b16 %v330
    %v1182 = vunpack.c.h.b16 %v330
    %v1183 = vunpack.c.l.b16 %v331
    %v1184 = vunpack.c.h.b16 %v331
    %v1185 = vunpack.c.l.b16 %v332
    %v1186 = vunpack.c.h.b16 %v332
    %v1187 = vunpack.c.l.b16 %v333
    %v1188 = vunpack.c.h.b16 %v333
    %v1189 = vunpack.c.l.b16 %v334
    %v1190 = vunpack.c.h.b16 %v334
    %v1191 = vunpack.c.l.b16 %v335
    %v1192 = vunpack.c.h.b16 %v335
    %v1193 = vunpack.c.l.b16 %v336
    %v1194 = vunpack.c.h.b16 %v336
    %v1195 = vunpack.c.l.b16 %v337
    %v1196 = vunpack.c.h.b16 %v337
    %v1197 = vunpack.c.l.b16 %v338
    %v1198 = vunpack.c.h.b16 %v338
    %v1199 = vunpack.c.l.b16 %v339
    %v1200 = vunpack.c.h.b16 %v339
    %v1201 = vunpack.c.l.b16 %v340
    %v1202 = vunpack.c.h.b16 %v340
    %v1203 = vunpack.c.l.b16 %v341
    %v1204 = vunpack.c.h.b16 %v341
    %v1205 = vunpack.c.l.b16 %v342
    %v1206 = vunpack.c.h.b16 %v342
    %v1207 = vunpack.c.l.b16 %v343
    %v1208 = vunpack.c.h.b16 %v343
    %v1209 = vunpack.c.l.b16 %v344
    %v1210 = vunpack.c.h.b16 %v344
    %v1211 = vunpack.c.l.b16 %v345
    %v1212 = vunpack.c.h.b16 %v345
    %v1213 = vunpack.c.l.b16 %v346
    %v1214 = vunpack.c.h.b16 %v346
    %v1215 = vunpack.c.l.b16 %v347
    %v1216 = vunpack.c.h.b16 %v347
    %v1217 = vunpack.c.l.b16 %v348
    %v1218 = vunpack.c.h.b16 %v348
    %v1219 = vunpack.c.l.b16 %v349
    %v1220 = vunpack.c.h.b16 %v349
    %v1221 = vunpack.c.l.b16 %v350
    %v1222 = vunpack.c.h.b16 %v350
    %v1223 = vunpack.c.l.b16 %v351
    %v1224 = vunpack.c.h.b16 %v351
    %v1225 = vunpack.c.l.b16 %v352
    %v1226 = vunpack.c.h.b16 %v352
    %v1227 = vunpack.c.l.b16 %v353
    %v1228 = vunpack.c.h.b16 %v353
    %v1229 = vunpack.c.l.b16 %v354
    %v1230 = vunpack.c.h.b16 %v354
    %v1231 = vunpack.c.l.b16 %v355
    %v1232 = vunpack.c.h.b16 %v355
    %v1233 = vunpack.c.l.b16 %v356
    %v1234 = vunpack.c.h.b16 %v356
    %v1235 = vunpack.c.l.b16 %v357
    %v1236 = vunpack.c.h.b16 %v357
    %v1237 = vunpack.c.l.b16 %v358
    %v1238 = vunpack.c.h.b16 %v358
    %v1239 = vunpack.c.l.b16 %v359
    %v1240 = vunpack.c.h.b16 %v359
    %v1241 = vunpack.c.l.b16 %v360
    %v1242 = vunpack.c.h.b16 %v360
    %v1243 = vunpack.c.l.b16 %v361
    %v1244 = vunpack.c.h.b16 %v361
    %v1245 = vunpack.c.l.b16 %v362
    %v1246 = vunpack.c.h.b16 %v362
    %v1247 = vunpack.c.l.b16 %v363
    %v1248 = vunpack.c.h.b16 %v363
    %v1249 = vunpack.c.l.b16 %v364
    %v1250 = vunpack.c.h.b16 %v364
    %v1251 = vunpack.c.l.b16 %v365
    %v1252 = vunpack.c.h.b16 %v365
    %v1253 = vunpack.c.l.b16 %v366
    %v1254 = vunpack.c.h.b16 %v366
    %v1255 = vunpack.c.l.b16 %v367
    %v1256 = vunpack.c.h.b16 %v367
    %v1257 = vunpack.c.l.b16 %v368
    %v1258 = vunpack.c.h.b16 %v368
    %v1259 = vunpack.c.l.b16 %v369
    %v1260 = vunpack.c.h.b16 %v369
    %v1261 = vunpack.c.l.b16 %v370
    %v1262 = vunpack.c.h.b16 %v370
    %v1263 = vunpack.c.l.b16 %v371
    %v1264 = vunpack.c.h.b16 %v371
    %v1265 = vunpack.c.l.b16 %v372
    %v1266 = vunpack.c.h.b16 %v372
    %v1267 = vunpack.c.l.b16 %v373
    %v1268 = vunpack.c.h.b16 %v373
    %v1269 = vunpack.c.l.b16 %v374
    %v1270 = vunpack.c.h.b16 %v374
    %v1271 = vunpack.c.l.b16 %v375
    %v1272 = vunpack.c.h.b16 %v375
    %v1273 = vunpack.c.l.b16 %v376
    %v1274 = vunpack.c.h.b16 %v376
    %v1275 = vunpack.c.l.b16 %v377
    %v1276 = vunpack.c.h.b16 %v377
    %v1277 = vunpack.c.l.b16 %v378
    %v1278 = vunpack.c.h.b16 %v378
    %v1279 = vunpack.c.l.b16 %v379
    %v1280 = vunpack.c.h.b16 %v379
    %v1281 = vunpack.c.l.b16 %v380
    %v1282 = vunpack.c.h.b16 %v380
    %v1283 = vunpack.c.l.b16 %v381
    %v1284 = vunpack.c.h.b16 %v381
    %v1285 = vunpack.c.l.b16 %v382
    %v1286 = vunpack.c.h.b16 %v382
    %v1287 = vunpack.c.l.b16 %v383
    %v1288 = vunpack.c.h.b16 %v383
    %v1289 = vunpack.c.l.b16 %v384
    %v1290 = vunpack.c.h.b16 %v384
    %v1291 = vunpack.c.l.b16 %v385
    %v1292 = vunpack.c.h.b16 %v385
    %v1293 = vunpack.c.l.b16 %v386
    %v1294 = vunpack.c.h.b16 %v386
    %v1295 = vpack.c.b16 %v731, %v719
    %v1296 = vpack.c.b16 %v732, %v720
    %v1297 = vpack.c.b16 %v733, %v721
    %v1298 = vpack.c.b16 %v734, %v722
    %v1299 = vpack.c.b16 %v735, %v723
    %v1300 = vpack.c.b16 %v736, %v724
    %v1301 = vpack.c.b16 %v737, %v725
    %v1302 = vpack.c.b16 %v738, %v726
    %v1303 = vpack.c.b16 %v739, %v727
    %v1304 = vpack.c.b16 %v740, %v728
    %v1305 = vpack.c.b16 %v741, %v729
    %v1306 = vpack.c.b16 %v742, %v730
    %v1307 = vpack.c.b16 %v755, %v743
    %v1308 = vpack.c.b16 %v756, %v744
    %v1309 = vpack.c.b16 %v757, %v745
    %v1310 = vpack.c.b16 %v758, %v746
    %v1311 = vpack.c.b16 %v759, %v747
    %v1312 = vpack.c.b16 %v760, %v748
    %v1313 = vpack.c.b16 %v761, %v749
    %v1314 = vpack.c.b16 %v762, %v750
    %v1315 = vpack.c.b16 %v763, %v751
    %v1316 = vpack.c.b16 %v764, %v752
    %v1317 = vpack.c.b16 %v765, %v753
    %v1318 = vpack.c.b16 %v766, %v754
    %v1319 = vpack.c.b16 %v779, %v767
    %v1320 = vpack.c.b16 %v780, %v768
    %v1321 = vpack.c.b16 %v781, %v769
    %v1322 = vpack.c.b16 %v782, %v770
    %v1323 = vpack.c.b16 %v783, %v771
    %v1324 = vpack.c.b16 %v784, %v772
    %v1325 = vpack.c.b16 %v785, %v773
    %v1326 = vpack.c.b16 %v786, %v774
    %v1327 = vpack.c.b16 %v787, %v775
    %v1328 = vpack.c.b16 %v788, %v776
    %v1329 = vpack.c.b16 %v789, %v777
    %v1330 = vpack.c.b16 %v790, %v778
    %v1331 = vpack.c.b16 %v803, %v791
    %v1332 = vpack.c.b16 %v804, %v792
    %v1333 = vpack.c.b16 %v805, %v793
    %v1334 = vpack.c.b16 %v806, %v794
    %v1335 = vpack.c.b16 %v807, %v795
    %v1336 = vpack.c.b16 %v808, %v796
    %v1337 = vpack.c.b16 %v809, %v797
    %v1338 = vpack.c.b16 %v810, %v798
    %v1339 = vpack.c.b16 %v811, %v799
    %v1340 = vpack.c.b16 %v812, %v800
    %v1341 = vpack.c.b16 %v813, %v801
    %v1342 = vpack.c.b16 %v814, %v802
    %v1343 = vpack.c.b16 %v827, %v815
    %v1344 = vpack.c.b16 %v828, %v816
    %v1345 = vpack.c.b16 %v829, %v817
    %v1346 = vpack.c.b16 %v830, %v818
    %v1347 = vpack.c.b16 %v831, %v819
    %v1348 = vpack.c.b16 %v832, %v820
    %v1349 = vpack.c.b16 %v833, %v821
    %v1350 = vpack.c.b16 %v834, %v822
    %v1351 = vpack.c.b16 %v835, %v823
    %v1352 = vpack.c.b16 %v836, %v824
    %v1353 = vpack.c.b16 %v837, %v825
    %v1354 = vpack.c.b16 %v838, %v826
    %v1355 = vpack.c.b16 %v851, %v839
    %v1356 = vpack.c.b16 %v852, %v840
    %v1357 = vpack.c.b16 %v853, %v841
    %v1358 = vpack.c.b16 %v854, %v842
    %v1359 = vpack.c.b16 %v855, %v843
    %v1360 = vpack.c.b16 %v856, %v844
    %v1361 = vpack.c.b16 %v857, %v845
    %v1362 = vpack.c.b16 %v858, %v846
    %v1363 = vpack.c.b16 %v859, %v847
    %v1364 = vpack.c.b16 %v860, %v848
    %v1365 = vpack.c.b16 %v861, %v849
    %v1366 = vpack.c.b16 %v862, %v850
    %v1367 = vpack.c.b16 %v875, %v863
    %v1368 = vpack.c.b16 %v876, %v864
    %v1369 = vpack.c.b16 %v877, %v865
    %v1370 = vpack.c.b16 %v878, %v866
    %v1371 = vpack.c.b16 %v879, %v867
    %v1372 = vpack.c.b16 %v880, %v868
    %v1373 = vpack.c.b16 %v881, %v869
    %v1374 = vpack.c.b16 %v882, %v870
    %v1375 = vpack.c.b16 %v883, %v871
    %v1376 = vpack.c.b16 %v884, %v872
    %v1377 = vpack.c.b16 %v885, %v873
    %v1378 = vpack.c.b16 %v886, %v874
    %v1379 = vpack.c.b16 %v899, %v887
    %v1380 = vpack.c.b16 %v900, %v888
    %v1381 = vpack.c.b16 %v901, %v889
    %v1382 = vpack.c.b16 %v902, %v890
    %v1383 = vpack.c.b16 %v903, %v891
    %v1384 = vpack.c.b16 %v904, %v892
    %v1385 = vpack.c.b16 %v905, %v893
    %v1386 = vpack.c.b16 %v906, %v894
    %v1387 = vpack.c.b16 %v907, %v895
    %v1388 = vpack.c.b16 %v908, %v896
    %v1389 = vpack.c.b16 %v909, %v897
    %v1390 = vpack.c.b16 %v910, %v898
    %v1391 = vpack.c.b16 %v923, %v911
    %v1392 = vpack.c.b16 %v924, %v912
    %v1393 = vpack.c.b16 %v925, %v913
    %v1394 = vpack.c.b16 %v926, %v914
    %v1395 = vpack.c.b16 %v927, %v915
    %v1396 = vpack.c.b16 %v928, %v916
    %v1397 = vpack.c.b16 %v929, %v917
    %v1398 = vpack.c.b16 %v930, %v918
    %v1399 = vpack.c.b16 %v931, %v919
    %v1400 = vpack.c.b16 %v932, %v920
    %v1401 = vpack.c.b16 %v933, %v921
    %v1402 = vpack.c.b16 %v934, %v922
    %v1403 = vpack.c.b16 %v947, %v935
    %v1404 = vpack.c.b16 %v948, %v936
    %v1405 = vpack.c.b16 %v949, %v937
    %v1406 = vpack.c.b16 %v950, %v938
    %v1407 = vpack.c.b16 %v951, %v939
    %v1408 = vpack.c.b16 %v952, %v940
    %v1409 = vpack.c.b16 %v953, %v941
    %v1410 = vpack.c.b16 %v954, %v942
    %v1411 = vpack.c.b16 %v955, %v943
    %v1412 = vpack.c.b16 %v956, %v944
    %v1413 = vpack.c.b16 %v957, %v945
    %v1414 = vpack.c.b16 %v958, %v946
    %v1415 = vpack.c.b16 %v971, %v959
    %v1416 = vpack.c.b16 %v972, %v960
    %v1417 = vpack.c.b16 %v973, %v961
    %v1418 = vpack.c.b16 %v974, %v962
    %v1419 = vpack.c.b16 %v975, %v963
    %v1420 = vpack.c.b16 %v976, %v964
    %v1421 = vpack.c.b16 %v977, %v965
    %v1422 = vpack.c.b16 %v978, %v966
    %v1423 = vpack.c.b16 %v979, %v967
    %v1424 = vpack.c.b16 %v980, %v968
    %v1425 = vpack.c.b16 %v981, %v969
    %v1426 = vpack.c.b16 %v982, %v970
    %v1427 = vpack.c.b16 %v995, %v983
    %v1428 = vpack.c.b16 %v996, %v984
    %v1429 = vpack.c.b16 %v997, %v985
    %v1430 = vpack.c.b16 %v998, %v986
    %v1431 = vpack.c.b16 %v999, %v987
    %v1432 = vpack.c.b16 %v1000, %v988
    %v1433 = vpack.c.b16 %v1001, %v989
    %v1434 = vpack.c.b16 %v1002, %v990
    %v1435 = vpack.c.b16 %v1003, %v991
    %v1436 = vpack.c.b16 %v1004, %v992
    %v1437 = vpack.c.b16 %v1005, %v993
    %v1438 = vpack.c.b16 %v1006, %v994
    %v1439 = vpack.c.b16 %v1019, %v1007
    %v1440 = vpack.c.b16 %v1020, %v1008
    %v1441 = vpack.c.b16 %v1021, %v1009
    %v1442 = vpack.c.b16 %v1022, %v1010
    %v1443 = vpack.c.b16 %v1023, %v1011
    %v1444 = vpack.c.b16 %v1024, %v1012
    %v1445 = vpack.c.b16 %v1025, %v1013
    %v1446 = vpack.c.b16 %v1026, %v1014
    %v1447 = vpack.c.b16 %v1027, %v1015
    %v1448 = vpack.c.b16 %v1028, %v1016
    %v1449 = vpack.c.b16 %v1029, %v1017
    %v1450 = vpack.c.b16 %v1030, %v1018
    %v1451 = vpack.c.b16 %v1043, %v1031
    %v1452 = vpack.c.b16 %v1044, %v1032
    %v1453 = vpack.c.b16 %v1045, %v1033
    %v1454 = vpack.c.b16 %v1046, %v1034
    %v1455 = vpack.c.b16 %v1047, %v1035
    %v1456 = vpack.c.b16 %v1048, %v1036
    %v1457 = vpack.c.b16 %v1049, %v1037
    %v1458 = vpack.c.b16 %v1050, %v1038
    %v1459 = vpack.c.b16 %v1051, %v1039
    %v1460 = vpack.c.b16 %v1052, %v1040
    %v1461 = vpack.c.b16 %v1053, %v1041
    %v1462 = vpack.c.b16 %v1054, %v1042
    %v1463 = vpack.c.b16 %v1067, %v1055
    %v1464 = vpack.c.b16 %v1068, %v1056
    %v1465 = vpack.c.b16 %v1069, %v1057
    %v1466 = vpack.c.b16 %v1070, %v1058
    %v1467 = vpack.c.b16 %v1071, %v1059
    %v1468 = vpack.c.b16 %v1072, %v1060
    %v1469 = vpack.c.b16 %v1073, %v1061
    %v1470 = vpack.c.b16 %v1074, %v1062
    %v1471 = vpack.c.b16 %v1075, %v1063
    %v1472 = vpack.c.b16 %v1076, %v1064
    %v1473 = vpack.c.b16 %v1077, %v1065
    %v1474 = vpack.c.b16 %v1078, %v1066
    %v1475 = vpack.c.b16 %v1091, %v1079
    %v1476 = vpack.c.b16 %v1092, %v1080
    %v1477 = vpack.c.b16 %v1093, %v1081
    %v1478 = vpack.c.b16 %v1094, %v1082
    %v1479 = vpack.c.b16 %v1095, %v1083
    %v1480 = vpack.c.b16 %v1096, %v1084
    %v1481 = vpack.c.b16 %v1097, %v1085
    %v1482 = vpack.c.b16 %v1098, %v1086
    %v1483 = vpack.c.b16 %v1099, %v1087
    %v1484 = vpack.c.b16 %v1100, %v1088
    %v1485 = vpack.c.b16 %v1101, %v1089
    %v1486 = vpack.c.b16 %v1102, %v1090
    %v1487 = vpack.c.b16 %v1115, %v1103
    %v1488 = vpack.c.b16 %v1116, %v1104
    %v1489 = vpack.c.b16 %v1117, %v1105
    %v1490 = vpack.c.b16 %v1118, %v1106
    %v1491 = vpack.c.b16 %v1119, %v1107
    %v1492 = vpack.c.b16 %v1120, %v1108
    %v1493 = vpack.c.b16 %v1121, %v1109
    %v1494 = vpack.c.b16 %v1122, %v1110
    %v1495 = vpack.c.b16 %v1123, %v1111
    %v1496 = vpack.c.b16 %v1124, %v1112
    %v1497 = vpack.c.b16 %v1125, %v1113
    %v1498 = vpack.c.b16 %v1126, %v1114
    %v1499 = vpack.c.b16 %v1139, %v1127
    %v1500 = vpack.c.b16 %v1140, %v1128
    %v1501 = vpack.c.b16 %v1141, %v1129
    %v1502 = vpack.c.b16 %v1142, %v1130
    %v1503 = vpack.c.b16 %v1143, %v1131
    %v1504 = vpack.c.b16 %v1144, %v1132
    %v1505 = vpack.c.b16 %v1145, %v1133
    %v1506 = vpack.c.b16 %v1146, %v1134
    %v1507 = vpack.c.b16 %v1147, %v1135
    %v1508 = vpack.c.b16 %v1148, %v1136
    %v1509 = vpack.c.b16 %v1149, %v1137
    %v1510 = vpack.c.b16 %v1150, %v1138
    %v1511 = vpack.c.b16 %v1163, %v1151
    %v1512 = vpack.c.b16 %v1164, %v1152
    %v1513 = vpack.c.b16 %v1165, %v1153
    %v1514 = vpack.c.b16 %v1166, %v1154
    %v1515 = vpack.c.b16 %v1167, %v1155
    %v1516 = vpack.c.b16 %v1168, %v1156
    %v1517 = vpack.c.b16 %v1169, %v1157
    %v1518 = vpack.c.b16 %v1170, %v1158
    %v1519 = vpack.c.b16 %v1171, %v1159
    %v1520 = vpack.c.b16 %v1172, %v1160
    %v1521 = vpack.c.b16 %v1173, %v1161
    %v1522 = vpack.c.b16 %v1174, %v1162
    %v1523 = vpack.c.b16 %v1187, %v1175
    %v1524 = vpack.c.b16 %v1188, %v1176
    %v1525 = vpack.c.b16 %v1189, %v1177
    %v1526 = vpack.c.b16 %v1190, %v1178
    %v1527 = vpack.c.b16 %v1191, %v1179
    %v1528 = vpack.c.b16 %v1192, %v1180
    %v1529 = vpack.c.b16 %v1193, %v1181
    %v1530 = vpack.c.b16 %v1194, %v1182
    %v1531 = vpack.c.b16 %v1195, %v1183
    %v1532 = vpack.c.b16 %v1196, %v1184
    %v1533 = vpack.c.b16 %v1197, %v1185
    %v1534 = vpack.c.b16 %v1198, %v1186
    %v1535 = vpack.c.b16 %v1211, %v1199
    %v1536 = vpack.c.b16 %v1212, %v1200
    %v1537 = vpack.c.b16 %v1213, %v1201
    %v1538 = vpack.c.b16 %v1214, %v1202
    %v1539 = vpack.c.b16 %v1215, %v1203
    %v1540 = vpack.c.b16 %v1216, %v1204
    %v1541 = vpack.c.b16 %v1217, %v1205
    %v1542 = vpack.c.b16 %v1218, %v1206
    %v1543 = vpack.c.b16 %v1219, %v1207
    %v1544 = vpack.c.b16 %v1220, %v1208
    %v1545 = vpack.c.b16 %v1221, %v1209
    %v1546 = vpack.c.b16 %v1222, %v1210
    %v1547 = vpack.c.b16 %v1235, %v1223
    %v1548 = vpack.c.b16 %v1236, %v1224
    %v1549 = vpack.c.b16 %v1237, %v1225
    %v1550 = vpack.c.b16 %v1238, %v1226
    %v1551 = vpack.c.b16 %v1239, %v1227
    %v1552 = vpack.c.b16 %v1240, %v1228
    %v1553 = vpack.c.b16 %v1241, %v1229
    %v1554 = vpack.c.b16 %v1242, %v1230
    %v1555 = vpack.c.b16 %v1243, %v1231
    %v1556 = vpack.c.b16 %v1244, %v1232
    %v1557 = vpack.c.b16 %v1245, %v1233
    %v1558 = vpack.c.b16 %v1246, %v1234
    %v1559 = vpack.c.b16 %v1259, %v1247
    %v1560 = vpack.c.b16 %v1260, %v1248
    %v1561 = vpack.c.b16 %v1261, %v1249
    %v1562 = vpack.c.b16 %v1262, %v1250
    %v1563 = vpack.c.b16 %v1263, %v1251
    %v1564 = vpack.c.b16 %v1264, %v1252
    %v1565 = vpack.c.b16 %v1265, %v1253
    %v1566 = vpack.c.b16 %v1266, %v1254
    %v1567 = vpack.c.b16 %v1267, %v1255
    %v1568 = vpack.c.b16 %v1268, %v1256
    %v1569 = vpack.c.b16 %v1269, %v1257
    %v1570 = vpack.c.b16 %v1270, %v1258
    %v1571 = vpack.c.b16 %v1283, %v1271
    %v1572 = vpack.c.b16 %v1284, %v1272
    %v1573 = vpack.c.b16 %v1285, %v1273
    %v1574 = vpack.c.b16 %v1286, %v1274
    %v1575 = vpack.c.b16 %v1287, %v1275
    %v1576 = vpack.c.b16 %v1288, %v1276
    %v1577 = vpack.c.b16 %v1289, %v1277
    %v1578 = vpack.c.b16 %v1290, %v1278
    %v1579 = vpack.c.b16 %v1291, %v1279
    %v1580 = vpack.c.b16 %v1292, %v1280
    %v1581 = vpack.c.b16 %v1293, %v1281
    %v1582 = vpack.c.b16 %v1294, %v1282
    %1871 = vmatpush.bf16.msra.mxu0 %v1379
    %1872 = vmatpush.bf16.msra.mxu0 %v1367
    %1873 = vmatpush.bf16.msra.mxu0 %v1355
    %1874 = vmatpush.bf16.msra.mxu0 %v1343
    %1875 = vmatpush.bf16.msra.mxu0 %v1331
    %1876 = vmatpush.bf16.msra.mxu0 %v1319
    %1877 = vmatpush.bf16.msra.mxu0 %v1307
    %1878 = vmatpush.bf16.msra.mxu0 %v1295
    %1879 = vmatmul.bf16.gmra.mxu0 %v425
    %v1880 = vpop.f32.mrf.mxu0
    %v1881 = vadd.f32 %v391, %v1880
    %v1882 = vpop.f32.mrf.mxu0
    %v1883 = vadd.f32 %v391, %v1882
    %1884 = vdwg.mxu0
    %1885 = vmatpush.bf16.msra.mxu0 %v1475
    %1886 = vmatpush.bf16.msra.mxu0 %v1463
    %1887 = vmatpush.bf16.msra.mxu0 %v1451
    %1888 = vmatpush.bf16.msra.mxu0 %v1439
    %1889 = vmatpush.bf16.msra.mxu0 %v1427
    %1890 = vmatpush.bf16.msra.mxu0 %v1415
    %1891 = vmatpush.bf16.msra.mxu0 %v1403
    %1892 = vmatpush.bf16.msra.mxu0 %v1391
    %1893 = vmatmul.bf16.gmra.mxu0 %v426
    %v1894 = vpop.f32.mrf.mxu0
    %v1895 = vadd.f32 %v1881, %v1894
    %v1896 = vpop.f32.mrf.mxu0
    %v1897 = vadd.f32 %v1883, %v1896
    %1898 = vdwg.mxu0
    %1899 = vmatpush.bf16.msra.mxu0 %v1571
    %1900 = vmatpush.bf16.msra.mxu0 %v1559
    %1901 = vmatpush.bf16.msra.mxu0 %v1547
    %1902 = vmatpush.bf16.msra.mxu0 %v1535
    %1903 = vmatpush.bf16.msra.mxu0 %v1523
    %1904 = vmatpush.bf16.msra.mxu0 %v1511
    %1905 = vmatpush.bf16.msra.mxu0 %v1499
    %1906 = vmatpush.bf16.msra.mxu0 %v1487
    %1907 = vmatmul.bf16.gmra.mxu0 %v427
    %v1908 = vpop.f32.mrf.mxu0
    %v1909 = vadd.f32 %v1895, %v1908
    %v1910 = vpop.f32.mrf.mxu0
    %v1911 = vadd.f32 %v1897, %v1910
    %1912 = vdwg.mxu0
    %1913 = vmatpush.bf16.msra.mxu0 %v1380
    %1914 = vmatpush.bf16.msra.mxu0 %v1368
    %1915 = vmatpush.bf16.msra.mxu0 %v1356
    %1916 = vmatpush.bf16.msra.mxu0 %v1344
    %1917 = vmatpush.bf16.msra.mxu0 %v1332
    %1918 = vmatpush.bf16.msra.mxu0 %v1320
    %1919 = vmatpush.bf16.msra.mxu0 %v1308
    %1920 = vmatpush.bf16.msra.mxu0 %v1296
    %1921 = vmatmul.bf16.gmra.mxu0 %v425
    %v1922 = vpop.f32.mrf.mxu0
    %v1923 = vadd.f32 %v392, %v1922
    %v1924 = vpop.f32.mrf.mxu0
    %v1925 = vadd.f32 %v392, %v1924
    %1926 = vdwg.mxu0
    %1927 = vmatpush.bf16.msra.mxu0 %v1476
    %1928 = vmatpush.bf16.msra.mxu0 %v1464
    %1929 = vmatpush.bf16.msra.mxu0 %v1452
    %1930 = vmatpush.bf16.msra.mxu0 %v1440
    %1931 = vmatpush.bf16.msra.mxu0 %v1428
    %1932 = vmatpush.bf16.msra.mxu0 %v1416
    %1933 = vmatpush.bf16.msra.mxu0 %v1404
    %1934 = vmatpush.bf16.msra.mxu0 %v1392
    %1935 = vmatmul.bf16.gmra.mxu0 %v426
    %v1936 = vpop.f32.mrf.mxu0
    %v1937 = vadd.f32 %v1923, %v1936
    %v1938 = vpop.f32.mrf.mxu0
    %v1939 = vadd.f32 %v1925, %v1938
    %1940 = vdwg.mxu0
    %1941 = vmatpush.bf16.msra.mxu0 %v1572
    %1942 = vmatpush.bf16.msra.mxu0 %v1560
    %1943 = vmatpush.bf16.msra.mxu0 %v1548
    %1944 = vmatpush.bf16.msra.mxu0 %v1536
    %1945 = vmatpush.bf16.msra.mxu0 %v1524
    %1946 = vmatpush.bf16.msra.mxu0 %v1512
    %1947 = vmatpush.bf16.msra.mxu0 %v1500
    %1948 = vmatpush.bf16.msra.mxu0 %v1488
    %1949 = vmatmul.bf16.gmra.mxu0 %v427
    %v1950 = vpop.f32.mrf.mxu0
    %v1951 = vadd.f32 %v1937, %v1950
    %v1952 = vpop.f32.mrf.mxu0
    %v1953 = vadd.f32 %v1939, %v1952
    %1954 = vdwg.mxu0
    %1955 = vmatpush.bf16.msra.mxu0 %v1381
    %1956 = vmatpush.bf16.msra.mxu0 %v1369
    %1957 = vmatpush.bf16.msra.mxu0 %v1357
    %1958 = vmatpush.bf16.msra.mxu0 %v1345
    %1959 = vmatpush.bf16.msra.mxu0 %v1333
    %1960 = vmatpush.bf16.msra.mxu0 %v1321
    %1961 = vmatpush.bf16.msra.mxu0 %v1309
    %1962 = vmatpush.bf16.msra.mxu0 %v1297
    %1963 = vmatmul.bf16.gmra.mxu0 %v425
    %v1964 = vpop.f32.mrf.mxu0
    %v1965 = vadd.f32 %v393, %v1964
    %v1966 = vpop.f32.mrf.mxu0
    %v1967 = vadd.f32 %v393, %v1966
    %1968 = vdwg.mxu0
    %1969 = vmatpush.bf16.msra.mxu0 %v1477
    %1970 = vmatpush.bf16.msra.mxu0 %v1465
    %1971 = vmatpush.bf16.msra.mxu0 %v1453
    %1972 = vmatpush.bf16.msra.mxu0 %v1441
    %1973 = vmatpush.bf16.msra.mxu0 %v1429
    %1974 = vmatpush.bf16.msra.mxu0 %v1417
    %1975 = vmatpush.bf16.msra.mxu0 %v1405
    %1976 = vmatpush.bf16.msra.mxu0 %v1393
    %1977 = vmatmul.bf16.gmra.mxu0 %v426
    %v1978 = vpop.f32.mrf.mxu0
    %v1979 = vadd.f32 %v1965, %v1978
    %v1980 = vpop.f32.mrf.mxu0
    %v1981 = vadd.f32 %v1967, %v1980
    %1982 = vdwg.mxu0
    %1983 = vmatpush.bf16.msra.mxu0 %v1573
    %1984 = vmatpush.bf16.msra.mxu0 %v1561
    %1985 = vmatpush.bf16.msra.mxu0 %v1549
    %1986 = vmatpush.bf16.msra.mxu0 %v1537
    %1987 = vmatpush.bf16.msra.mxu0 %v1525
    %1988 = vmatpush.bf16.msra.mxu0 %v1513
    %1989 = vmatpush.bf16.msra.mxu0 %v1501
    %1990 = vmatpush.bf16.msra.mxu0 %v1489
    %1991 = vmatmul.bf16.gmra.mxu0 %v427
    %v1992 = vpop.f32.mrf.mxu0
    %v1993 = vadd.f32 %v1979, %v1992
    %v1994 = vpop.f32.mrf.mxu0
    %v1995 = vadd.f32 %v1981, %v1994
    %1996 = vdwg.mxu0
    %1997 = vmatpush.bf16.msra.mxu0 %v1382
    %1998 = vmatpush.bf16.msra.mxu0 %v1370
    %1999 = vmatpush.bf16.msra.mxu0 %v1358
    %2000 = vmatpush.bf16.msra.mxu0 %v1346
    %2001 = vmatpush.bf16.msra.mxu0 %v1334
    %2002 = vmatpush.bf16.msra.mxu0 %v1322
    %2003 = vmatpush.bf16.msra.mxu0 %v1310
    %2004 = vmatpush.bf16.msra.mxu0 %v1298
    %2005 = vmatmul.bf16.gmra.mxu0 %v425
    %v2006 = vpop.f32.mrf.mxu0
    %v2007 = vadd.f32 %v394, %v2006
    %v2008 = vpop.f32.mrf.mxu0
    %v2009 = vadd.f32 %v394, %v2008
    %2010 = vdwg.mxu0
    %2011 = vmatpush.bf16.msra.mxu0 %v1478
    %2012 = vmatpush.bf16.msra.mxu0 %v1466
    %2013 = vmatpush.bf16.msra.mxu0 %v1454
    %2014 = vmatpush.bf16.msra.mxu0 %v1442
    %2015 = vmatpush.bf16.msra.mxu0 %v1430
    %2016 = vmatpush.bf16.msra.mxu0 %v1418
    %2017 = vmatpush.bf16.msra.mxu0 %v1406
    %2018 = vmatpush.bf16.msra.mxu0 %v1394
    %2019 = vmatmul.bf16.gmra.mxu0 %v426
    %v2020 = vpop.f32.mrf.mxu0
    %v2021 = vadd.f32 %v2007, %v2020
    %v2022 = vpop.f32.mrf.mxu0
    %v2023 = vadd.f32 %v2009, %v2022
    %2024 = vdwg.mxu0
    %2025 = vmatpush.bf16.msra.mxu0 %v1574
    %2026 = vmatpush.bf16.msra.mxu0 %v1562
    %2027 = vmatpush.bf16.msra.mxu0 %v1550
    %2028 = vmatpush.bf16.msra.mxu0 %v1538
    %2029 = vmatpush.bf16.msra.mxu0 %v1526
    %2030 = vmatpush.bf16.msra.mxu0 %v1514
    %2031 = vmatpush.bf16.msra.mxu0 %v1502
    %2032 = vmatpush.bf16.msra.mxu0 %v1490
    %2033 = vmatmul.bf16.gmra.mxu0 %v427
    %v2034 = vpop.f32.mrf.mxu0
    %v2035 = vadd.f32 %v2021, %v2034
    %v2036 = vpop.f32.mrf.mxu0
    %v2037 = vadd.f32 %v2023, %v2036
    %2038 = vdwg.mxu0
    %2039 = vmatpush.bf16.msra.mxu0 %v1383
    %2040 = vmatpush.bf16.msra.mxu0 %v1371
    %2041 = vmatpush.bf16.msra.mxu0 %v1359
    %2042 = vmatpush.bf16.msra.mxu0 %v1347
    %2043 = vmatpush.bf16.msra.mxu0 %v1335
    %2044 = vmatpush.bf16.msra.mxu0 %v1323
    %2045 = vmatpush.bf16.msra.mxu0 %v1311
    %2046 = vmatpush.bf16.msra.mxu0 %v1299
    %2047 = vmatmul.bf16.gmra.mxu0 %v425
    %v2048 = vpop.f32.mrf.mxu0
    %v2049 = vadd.f32 %v395, %v2048
    %v2050 = vpop.f32.mrf.mxu0
    %v2051 = vadd.f32 %v395, %v2050
    %2052 = vdwg.mxu0
    %2053 = vmatpush.bf16.msra.mxu0 %v1479
    %2054 = vmatpush.bf16.msra.mxu0 %v1467
    %2055 = vmatpush.bf16.msra.mxu0 %v1455
    %2056 = vmatpush.bf16.msra.mxu0 %v1443
    %2057 = vmatpush.bf16.msra.mxu0 %v1431
    %2058 = vmatpush.bf16.msra.mxu0 %v1419
    %2059 = vmatpush.bf16.msra.mxu0 %v1407
    %2060 = vmatpush.bf16.msra.mxu0 %v1395
    %2061 = vmatmul.bf16.gmra.mxu0 %v426
    %v2062 = vpop.f32.mrf.mxu0
    %v2063 = vadd.f32 %v2049, %v2062
    %v2064 = vpop.f32.mrf.mxu0
    %v2065 = vadd.f32 %v2051, %v2064
    %2066 = vdwg.mxu0
    %2067 = vmatpush.bf16.msra.mxu0 %v1575
    %2068 = vmatpush.bf16.msra.mxu0 %v1563
    %2069 = vmatpush.bf16.msra.mxu0 %v1551
    %2070 = vmatpush.bf16.msra.mxu0 %v1539
    %2071 = vmatpush.bf16.msra.mxu0 %v1527
    %2072 = vmatpush.bf16.msra.mxu0 %v1515
    %2073 = vmatpush.bf16.msra.mxu0 %v1503
    %2074 = vmatpush.bf16.msra.mxu0 %v1491
    %2075 = vmatmul.bf16.gmra.mxu0 %v427
    %v2076 = vpop.f32.mrf.mxu0
    %v2077 = vadd.f32 %v2063, %v2076
    %v2078 = vpop.f32.mrf.mxu0
    %v2079 = vadd.f32 %v2065, %v2078
    %2080 = vdwg.mxu0
    %2081 = vmatpush.bf16.msra.mxu0 %v1384
    %2082 = vmatpush.bf16.msra.mxu0 %v1372
    %2083 = vmatpush.bf16.msra.mxu0 %v1360
    %2084 = vmatpush.bf16.msra.mxu0 %v1348
    %2085 = vmatpush.bf16.msra.mxu0 %v1336
    %2086 = vmatpush.bf16.msra.mxu0 %v1324
    %2087 = vmatpush.bf16.msra.mxu0 %v1312
    %2088 = vmatpush.bf16.msra.mxu0 %v1300
    %2089 = vmatmul.bf16.gmra.mxu0 %v425
    %v2090 = vpop.f32.mrf.mxu0
    %v2091 = vadd.f32 %v396, %v2090
    %v2092 = vpop.f32.mrf.mxu0
    %v2093 = vadd.f32 %v396, %v2092
    %2094 = vdwg.mxu0
    %2095 = vmatpush.bf16.msra.mxu0 %v1480
    %2096 = vmatpush.bf16.msra.mxu0 %v1468
    %2097 = vmatpush.bf16.msra.mxu0 %v1456
    %2098 = vmatpush.bf16.msra.mxu0 %v1444
    %2099 = vmatpush.bf16.msra.mxu0 %v1432
    %2100 = vmatpush.bf16.msra.mxu0 %v1420
    %2101 = vmatpush.bf16.msra.mxu0 %v1408
    %2102 = vmatpush.bf16.msra.mxu0 %v1396
    %2103 = vmatmul.bf16.gmra.mxu0 %v426
    %v2104 = vpop.f32.mrf.mxu0
    %v2105 = vadd.f32 %v2091, %v2104
    %v2106 = vpop.f32.mrf.mxu0
    %v2107 = vadd.f32 %v2093, %v2106
    %2108 = vdwg.mxu0
    %2109 = vmatpush.bf16.msra.mxu0 %v1576
    %2110 = vmatpush.bf16.msra.mxu0 %v1564
    %2111 = vmatpush.bf16.msra.mxu0 %v1552
    %2112 = vmatpush.bf16.msra.mxu0 %v1540
    %2113 = vmatpush.bf16.msra.mxu0 %v1528
    %2114 = vmatpush.bf16.msra.mxu0 %v1516
    %2115 = vmatpush.bf16.msra.mxu0 %v1504
    %2116 = vmatpush.bf16.msra.mxu0 %v1492
    %2117 = vmatmul.bf16.gmra.mxu0 %v427
    %v2118 = vpop.f32.mrf.mxu0
    %v2119 = vadd.f32 %v2105, %v2118
    %v2120 = vpop.f32.mrf.mxu0
    %v2121 = vadd.f32 %v2107, %v2120
    %2122 = vdwg.mxu0
    %2123 = vmatpush.bf16.msra.mxu0 %v1385
    %2124 = vmatpush.bf16.msra.mxu0 %v1373
    %2125 = vmatpush.bf16.msra.mxu0 %v1361
    %2126 = vmatpush.bf16.msra.mxu0 %v1349
    %2127 = vmatpush.bf16.msra.mxu0 %v1337
    %2128 = vmatpush.bf16.msra.mxu0 %v1325
    %2129 = vmatpush.bf16.msra.mxu0 %v1313
    %2130 = vmatpush.bf16.msra.mxu0 %v1301
    %2131 = vmatmul.bf16.gmra.mxu0 %v425
    %v2132 = vpop.f32.mrf.mxu0
    %v2133 = vadd.f32 %v397, %v2132
    %v2134 = vpop.f32.mrf.mxu0
    %v2135 = vadd.f32 %v397, %v2134
    %2136 = vdwg.mxu0
    %2137 = vmatpush.bf16.msra.mxu0 %v1481
    %2138 = vmatpush.bf16.msra.mxu0 %v1469
    %2139 = vmatpush.bf16.msra.mxu0 %v1457
    %2140 = vmatpush.bf16.msra.mxu0 %v1445
    %2141 = vmatpush.bf16.msra.mxu0 %v1433
    %2142 = vmatpush.bf16.msra.mxu0 %v1421
    %2143 = vmatpush.bf16.msra.mxu0 %v1409
    %2144 = vmatpush.bf16.msra.mxu0 %v1397
    %2145 = vmatmul.bf16.gmra.mxu0 %v426
    %v2146 = vpop.f32.mrf.mxu0
    %v2147 = vadd.f32 %v2133, %v2146
    %v2148 = vpop.f32.mrf.mxu0
    %v2149 = vadd.f32 %v2135, %v2148
    %2150 = vdwg.mxu0
    %2151 = vmatpush.bf16.msra.mxu0 %v1577
    %2152 = vmatpush.bf16.msra.mxu0 %v1565
    %2153 = vmatpush.bf16.msra.mxu0 %v1553
    %2154 = vmatpush.bf16.msra.mxu0 %v1541
    %2155 = vmatpush.bf16.msra.mxu0 %v1529
    %2156 = vmatpush.bf16.msra.mxu0 %v1517
    %2157 = vmatpush.bf16.msra.mxu0 %v1505
    %2158 = vmatpush.bf16.msra.mxu0 %v1493
    %2159 = vmatmul.bf16.gmra.mxu0 %v427
    %v2160 = vpop.f32.mrf.mxu0
    %v2161 = vadd.f32 %v2147, %v2160
    %v2162 = vpop.f32.mrf.mxu0
    %v2163 = vadd.f32 %v2149, %v2162
    %2164 = vdwg.mxu0
    %2165 = vmatpush.bf16.msra.mxu0 %v1386
    %2166 = vmatpush.bf16.msra.mxu0 %v1374
    %2167 = vmatpush.bf16.msra.mxu0 %v1362
    %2168 = vmatpush.bf16.msra.mxu0 %v1350
    %2169 = vmatpush.bf16.msra.mxu0 %v1338
    %2170 = vmatpush.bf16.msra.mxu0 %v1326
    %2171 = vmatpush.bf16.msra.mxu0 %v1314
    %2172 = vmatpush.bf16.msra.mxu0 %v1302
    %2173 = vmatmul.bf16.gmra.mxu0 %v425
    %v2174 = vpop.f32.mrf.mxu0
    %v2175 = vadd.f32 %v398, %v2174
    %v2176 = vpop.f32.mrf.mxu0
    %v2177 = vadd.f32 %v398, %v2176
    %2178 = vdwg.mxu0
    %2179 = vmatpush.bf16.msra.mxu0 %v1482
    %2180 = vmatpush.bf16.msra.mxu0 %v1470
    %2181 = vmatpush.bf16.msra.mxu0 %v1458
    %2182 = vmatpush.bf16.msra.mxu0 %v1446
    %2183 = vmatpush.bf16.msra.mxu0 %v1434
    %2184 = vmatpush.bf16.msra.mxu0 %v1422
    %2185 = vmatpush.bf16.msra.mxu0 %v1410
    %2186 = vmatpush.bf16.msra.mxu0 %v1398
    %2187 = vmatmul.bf16.gmra.mxu0 %v426
    %v2188 = vpop.f32.mrf.mxu0
    %v2189 = vadd.f32 %v2175, %v2188
    %v2190 = vpop.f32.mrf.mxu0
    %v2191 = vadd.f32 %v2177, %v2190
    %2192 = vdwg.mxu0
    %2193 = vmatpush.bf16.msra.mxu0 %v1578
    %2194 = vmatpush.bf16.msra.mxu0 %v1566
    %2195 = vmatpush.bf16.msra.mxu0 %v1554
    %2196 = vmatpush.bf16.msra.mxu0 %v1542
    %2197 = vmatpush.bf16.msra.mxu0 %v1530
    %2198 = vmatpush.bf16.msra.mxu0 %v1518
    %2199 = vmatpush.bf16.msra.mxu0 %v1506
    %2200 = vmatpush.bf16.msra.mxu0 %v1494
    %2201 = vmatmul.bf16.gmra.mxu0 %v427
    %v2202 = vpop.f32.mrf.mxu0
    %v2203 = vadd.f32 %v2189, %v2202
    %v2204 = vpop.f32.mrf.mxu0
    %v2205 = vadd.f32 %v2191, %v2204
    %2206 = vdwg.mxu0
    %2207 = vmatpush.bf16.msra.mxu0 %v1387
    %2208 = vmatpush.bf16.msra.mxu0 %v1375
    %2209 = vmatpush.bf16.msra.mxu0 %v1363
    %2210 = vmatpush.bf16.msra.mxu0 %v1351
    %2211 = vmatpush.bf16.msra.mxu0 %v1339
    %2212 = vmatpush.bf16.msra.mxu0 %v1327
    %2213 = vmatpush.bf16.msra.mxu0 %v1315
    %2214 = vmatpush.bf16.msra.mxu0 %v1303
    %2215 = vmatmul.bf16.gmra.mxu0 %v425
    %v2216 = vpop.f32.mrf.mxu0
    %v2217 = vadd.f32 %v399, %v2216
    %v2218 = vpop.f32.mrf.mxu0
    %v2219 = vadd.f32 %v399, %v2218
    %2220 = vdwg.mxu0
    %2221 = vmatpush.bf16.msra.mxu0 %v1483
    %2222 = vmatpush.bf16.msra.mxu0 %v1471
    %2223 = vmatpush.bf16.msra.mxu0 %v1459
    %2224 = vmatpush.bf16.msra.mxu0 %v1447
    %2225 = vmatpush.bf16.msra.mxu0 %v1435
    %2226 = vmatpush.bf16.msra.mxu0 %v1423
    %2227 = vmatpush.bf16.msra.mxu0 %v1411
    %2228 = vmatpush.bf16.msra.mxu0 %v1399
    %2229 = vmatmul.bf16.gmra.mxu0 %v426
    %v2230 = vpop.f32.mrf.mxu0
    %v2231 = vadd.f32 %v2217, %v2230
    %v2232 = vpop.f32.mrf.mxu0
    %v2233 = vadd.f32 %v2219, %v2232
    %2234 = vdwg.mxu0
    %2235 = vmatpush.bf16.msra.mxu0 %v1579
    %2236 = vmatpush.bf16.msra.mxu0 %v1567
    %2237 = vmatpush.bf16.msra.mxu0 %v1555
    %2238 = vmatpush.bf16.msra.mxu0 %v1543
    %2239 = vmatpush.bf16.msra.mxu0 %v1531
    %2240 = vmatpush.bf16.msra.mxu0 %v1519
    %2241 = vmatpush.bf16.msra.mxu0 %v1507
    %2242 = vmatpush.bf16.msra.mxu0 %v1495
    %2243 = vmatmul.bf16.gmra.mxu0 %v427
    %v2244 = vpop.f32.mrf.mxu0
    %v2245 = vadd.f32 %v2231, %v2244
    %v2246 = vpop.f32.mrf.mxu0
    %v2247 = vadd.f32 %v2233, %v2246
    %2248 = vdwg.mxu0
    %2249 = vmatpush.bf16.msra.mxu0 %v1388
    %2250 = vmatpush.bf16.msra.mxu0 %v1376
    %2251 = vmatpush.bf16.msra.mxu0 %v1364
    %2252 = vmatpush.bf16.msra.mxu0 %v1352
    %2253 = vmatpush.bf16.msra.mxu0 %v1340
    %2254 = vmatpush.bf16.msra.mxu0 %v1328
    %2255 = vmatpush.bf16.msra.mxu0 %v1316
    %2256 = vmatpush.bf16.msra.mxu0 %v1304
    %2257 = vmatmul.bf16.gmra.mxu0 %v425
    %v2258 = vpop.f32.mrf.mxu0
    %v2259 = vadd.f32 %v400, %v2258
    %v2260 = vpop.f32.mrf.mxu0
    %v2261 = vadd.f32 %v400, %v2260
    %2262 = vdwg.mxu0
    %2263 = vmatpush.bf16.msra.mxu0 %v1484
    %2264 = vmatpush.bf16.msra.mxu0 %v1472
    %2265 = vmatpush.bf16.msra.mxu0 %v1460
    %2266 = vmatpush.bf16.msra.mxu0 %v1448
    %2267 = vmatpush.bf16.msra.mxu0 %v1436
    %2268 = vmatpush.bf16.msra.mxu0 %v1424
    %2269 = vmatpush.bf16.msra.mxu0 %v1412
    %2270 = vmatpush.bf16.msra.mxu0 %v1400
    %2271 = vmatmul.bf16.gmra.mxu0 %v426
    %v2272 = vpop.f32.mrf.mxu0
    %v2273 = vadd.f32 %v2259, %v2272
    %v2274 = vpop.f32.mrf.mxu0
    %v2275 = vadd.f32 %v2261, %v2274
    %2276 = vdwg.mxu0
    %2277 = vmatpush.bf16.msra.mxu0 %v1580
    %2278 = vmatpush.bf16.msra.mxu0 %v1568
    %2279 = vmatpush.bf16.msra.mxu0 %v1556
    %2280 = vmatpush.bf16.msra.mxu0 %v1544
    %2281 = vmatpush.bf16.msra.mxu0 %v1532
    %2282 = vmatpush.bf16.msra.mxu0 %v1520
    %2283 = vmatpush.bf16.msra.mxu0 %v1508
    %2284 = vmatpush.bf16.msra.mxu0 %v1496
    %2285 = vmatmul.bf16.gmra.mxu0 %v427
    %v2286 = vpop.f32.mrf.mxu0
    %v2287 = vadd.f32 %v2273, %v2286
    %v2288 = vpop.f32.mrf.mxu0
    %v2289 = vadd.f32 %v2275, %v2288
    %2290 = vdwg.mxu0
    %2291 = vmatpush.bf16.msra.mxu0 %v1389
    %2292 = vmatpush.bf16.msra.mxu0 %v1377
    %2293 = vmatpush.bf16.msra.mxu0 %v1365
    %2294 = vmatpush.bf16.msra.mxu0 %v1353
    %2295 = vmatpush.bf16.msra.mxu0 %v1341
    %2296 = vmatpush.bf16.msra.mxu0 %v1329
    %2297 = vmatpush.bf16.msra.mxu0 %v1317
    %2298 = vmatpush.bf16.msra.mxu0 %v1305
    %2299 = vmatmul.bf16.gmra.mxu0 %v425
    %v2300 = vpop.f32.mrf.mxu0
    %v2301 = vadd.f32 %v401, %v2300
    %v2302 = vpop.f32.mrf.mxu0
    %v2303 = vadd.f32 %v401, %v2302
    %2304 = vdwg.mxu0
    %2305 = vmatpush.bf16.msra.mxu0 %v1485
    %2306 = vmatpush.bf16.msra.mxu0 %v1473
    %2307 = vmatpush.bf16.msra.mxu0 %v1461
    %2308 = vmatpush.bf16.msra.mxu0 %v1449
    %2309 = vmatpush.bf16.msra.mxu0 %v1437
    %2310 = vmatpush.bf16.msra.mxu0 %v1425
    %2311 = vmatpush.bf16.msra.mxu0 %v1413
    %2312 = vmatpush.bf16.msra.mxu0 %v1401
    %2313 = vmatmul.bf16.gmra.mxu0 %v426
    %v2314 = vpop.f32.mrf.mxu0
    %v2315 = vadd.f32 %v2301, %v2314
    %v2316 = vpop.f32.mrf.mxu0
    %v2317 = vadd.f32 %v2303, %v2316
    %2318 = vdwg.mxu0
    %2319 = vmatpush.bf16.msra.mxu0 %v1581
    %2320 = vmatpush.bf16.msra.mxu0 %v1569
    %2321 = vmatpush.bf16.msra.mxu0 %v1557
    %2322 = vmatpush.bf16.msra.mxu0 %v1545
    %2323 = vmatpush.bf16.msra.mxu0 %v1533
    %2324 = vmatpush.bf16.msra.mxu0 %v1521
    %2325 = vmatpush.bf16.msra.mxu0 %v1509
    %2326 = vmatpush.bf16.msra.mxu0 %v1497
    %2327 = vmatmul.bf16.gmra.mxu0 %v427
    %v2328 = vpop.f32.mrf.mxu0
    %v2329 = vadd.f32 %v2315, %v2328
    %v2330 = vpop.f32.mrf.mxu0
    %v2331 = vadd.f32 %v2317, %v2330
    %2332 = vdwg.mxu0
    %2333 = vmatpush.bf16.msra.mxu0 %v1390
    %2334 = vmatpush.bf16.msra.mxu0 %v1378
    %2335 = vmatpush.bf16.msra.mxu0 %v1366
    %2336 = vmatpush.bf16.msra.mxu0 %v1354
    %2337 = vmatpush.bf16.msra.mxu0 %v1342
    %2338 = vmatpush.bf16.msra.mxu0 %v1330
    %2339 = vmatpush.bf16.msra.mxu0 %v1318
    %2340 = vmatpush.bf16.msra.mxu0 %v1306
    %2341 = vmatmul.bf16.gmra.mxu0 %v425
    %v2342 = vpop.f32.mrf.mxu0
    %v2343 = vadd.f32 %v402, %v2342
    %v2344 = vpop.f32.mrf.mxu0
    %v2345 = vadd.f32 %v402, %v2344
    %2346 = vdwg.mxu0
    %2347 = vmatpush.bf16.msra.mxu0 %v1486
    %2348 = vmatpush.bf16.msra.mxu0 %v1474
    %2349 = vmatpush.bf16.msra.mxu0 %v1462
    %2350 = vmatpush.bf16.msra.mxu0 %v1450
    %2351 = vmatpush.bf16.msra.mxu0 %v1438
    %2352 = vmatpush.bf16.msra.mxu0 %v1426
    %2353 = vmatpush.bf16.msra.mxu0 %v1414
    %2354 = vmatpush.bf16.msra.mxu0 %v1402
    %2355 = vmatmul.bf16.gmra.mxu0 %v426
    %v2356 = vpop.f32.mrf.mxu0
    %v2357 = vadd.f32 %v2343, %v2356
    %v2358 = vpop.f32.mrf.mxu0
    %v2359 = vadd.f32 %v2345, %v2358
    %2360 = vdwg.mxu0
    %2361 = vmatpush.bf16.msra.mxu0 %v1582
    %2362 = vmatpush.bf16.msra.mxu0 %v1570
    %2363 = vmatpush.bf16.msra.mxu0 %v1558
    %2364 = vmatpush.bf16.msra.mxu0 %v1546
    %2365 = vmatpush.bf16.msra.mxu0 %v1534
    %2366 = vmatpush.bf16.msra.mxu0 %v1522
    %2367 = vmatpush.bf16.msra.mxu0 %v1510
    %2368 = vmatpush.bf16.msra.mxu0 %v1498
    %2369 = vmatmul.bf16.gmra.mxu0 %v427
    %v2370 = vpop.f32.mrf.mxu0
    %v2371 = vadd.f32 %v2357, %v2370
    %v2372 = vpop.f32.mrf.mxu0
    %v2373 = vadd.f32 %v2359, %v2372
    %2374 = vdwg.mxu0
    %v2375 = vmax.f32 %v1909, 0.0
    %v2376 = vmax.f32 %v1951, 0.0
    %v2377 = vmax.f32 %v1993, 0.0
    %v2378 = vmax.f32 %v2035, 0.0
    %v2379 = vmax.f32 %v2077, 0.0
    %v2380 = vmax.f32 %v2119, 0.0
    %v2381 = vmax.f32 %v2161, 0.0
    %v2382 = vmax.f32 %v2203, 0.0
    %v2383 = vmax.f32 %v2245, 0.0
    %v2384 = vmax.f32 %v2287, 0.0
    %v2385 = vmax.f32 %v2329, 0.0
    %v2386 = vmax.f32 %v2371, 0.0
    %v2387 = vmax.f32 %v1911, 0.0
    %v2388 = vmax.f32 %v1953, 0.0
    %v2389 = vmax.f32 %v1995, 0.0
    %v2390 = vmax.f32 %v2037, 0.0
    %v2391 = vmax.f32 %v2079, 0.0
    %v2392 = vmax.f32 %v2121, 0.0
    %v2393 = vmax.f32 %v2163, 0.0
    %v2394 = vmax.f32 %v2205, 0.0
    %v2395 = vmax.f32 %v2247, 0.0
    %v2396 = vmax.f32 %v2289, 0.0
    %v2397 = vmax.f32 %v2331, 0.0
    %v2398 = vmax.f32 %v2373, 0.0
    %v2399 = vpack.c.bf16 %v2387, %v2375
    %v2400 = vpack.c.bf16 %v2388, %v2376
    %v2401 = vpack.c.bf16 %v2389, %v2377
    %v2402 = vpack.c.bf16 %v2390, %v2378
    %v2403 = vpack.c.bf16 %v2391, %v2379
    %v2404 = vpack.c.bf16 %v2392, %v2380
    %v2405 = vpack.c.bf16 %v2393, %v2381
    %v2406 = vpack.c.bf16 %v2394, %v2382
    %v2407 = vpack.c.bf16 %v2395, %v2383
    %v2408 = vpack.c.bf16 %v2396, %v2384
    %v2409 = vpack.c.bf16 %v2397, %v2385
    %v2410 = vpack.c.bf16 %v2398, %v2386
    %v2411 = vld [vmem:[#allocation8] sm:$0xff]
    %v2412 = vld [vmem:[#allocation8 + $0x8] sm:$0xf]
    %v2413 = vld [vmem:[#allocation8 + $0xc] sm:$0xff]
    %v2414 = vld [vmem:[#allocation8 + $0x14] sm:$0xf]
    %v2415 = vld [vmem:[#allocation8 + $0x18] sm:$0xff]
    %v2416 = vld [vmem:[#allocation8 + $0x20] sm:$0xf]
    %v2417 = vld [vmem:[#allocation8 + $0x24] sm:$0xff]
    %v2418 = vld [vmem:[#allocation8 + $0x2c] sm:$0xf]
    %v2419 = vld [vmem:[#allocation8 + $0x30] sm:$0xff]
    %v2420 = vld [vmem:[#allocation8 + $0x38] sm:$0xf]
    %v2421 = vld [vmem:[#allocation8 + $0x3c] sm:$0xff]
    %v2422 = vld [vmem:[#allocation8 + $0x44] sm:$0xf]
    %v2423 = vld [vmem:[#allocation8 + $0x48] sm:$0xff]
    %v2424 = vld [vmem:[#allocation8 + $0x50] sm:$0xf]
    %v2425 = vld [vmem:[#allocation8 + $0x54] sm:$0xff]
    %v2426 = vld [vmem:[#allocation8 + $0x5c] sm:$0xf]
    %v2427 = vld [vmem:[#allocation8 + $0x60] sm:$0xff]
    %v2428 = vld [vmem:[#allocation8 + $0x68] sm:$0xf]
    %v2429 = vld [vmem:[#allocation8 + $0x6c] sm:$0xff]
    %v2430 = vld [vmem:[#allocation8 + $0x74] sm:$0xf]
    %v2431 = vld [vmem:[#allocation8 + $0x78] sm:$0xff]
    %v2432 = vld [vmem:[#allocation8 + $0x80] sm:$0xf]
    %v2433 = vld [vmem:[#allocation8 + $0x84] sm:$0xff]
    %v2434 = vld [vmem:[#allocation8 + $0x8c] sm:$0xf]
    %v2435 = vld [vmem:[#allocation8 + $0x90] sm:$0xff]
    %v2436 = vld [vmem:[#allocation8 + $0x98] sm:$0xf]
    %v2437 = vld [vmem:[#allocation8 + $0x9c] sm:$0xff]
    %v2438 = vld [vmem:[#allocation8 + $0xa4] sm:$0xf]
    %v2439 = vld [vmem:[#allocation8 + $0xa8] sm:$0xff]
    %v2440 = vld [vmem:[#allocation8 + $0xb0] sm:$0xf]
    %v2441 = vld [vmem:[#allocation8 + $0xb4] sm:$0xff]
    %v2442 = vld [vmem:[#allocation8 + $0xbc] sm:$0xf]
    %v2443 = vld [vmem:[#allocation8 + $0xc0] sm:$0xff]
    %v2444 = vld [vmem:[#allocation8 + $0xc8] sm:$0xf]
    %v2445 = vld [vmem:[#allocation8 + $0xcc] sm:$0xff]
    %v2446 = vld [vmem:[#allocation8 + $0xd4] sm:$0xf]
    %v2447 = vld [vmem:[#allocation8 + $0xd8] sm:$0xff]
    %v2448 = vld [vmem:[#allocation8 + $0xe0] sm:$0xf]
    %v2449 = vld [vmem:[#allocation8 + $0xe4] sm:$0xff]
    %v2450 = vld [vmem:[#allocation8 + $0xec] sm:$0xf]
    %v2451 = vld [vmem:[#allocation8 + $0xf0] sm:$0xff]
    %v2452 = vld [vmem:[#allocation8 + $0xf8] sm:$0xf]
    %v2453 = vld [vmem:[#allocation8 + $0xfc] sm:$0xff]
    %v2454 = vld [vmem:[#allocation8 + $0x104] sm:$0xf]
    %v2455 = vld [vmem:[#allocation8 + $0x108] sm:$0xff]
    %v2456 = vld [vmem:[#allocation8 + $0x110] sm:$0xf]
    %v2457 = vld [vmem:[#allocation8 + $0x114] sm:$0xff]
    %v2458 = vld [vmem:[#allocation8 + $0x11c] sm:$0xf]
    %v2459 = vld [vmem:[#allocation8 + $0x120] sm:$0xff]
    %v2460 = vld [vmem:[#allocation8 + $0x128] sm:$0xf]
    %v2461 = vld [vmem:[#allocation8 + $0x12c] sm:$0xff]
    %v2462 = vld [vmem:[#allocation8 + $0x134] sm:$0xf]
    %v2463 = vld [vmem:[#allocation8 + $0x138] sm:$0xff]
    %v2464 = vld [vmem:[#allocation8 + $0x140] sm:$0xf]
    %v2465 = vld [vmem:[#allocation8 + $0x144] sm:$0xff]
    %v2466 = vld [vmem:[#allocation8 + $0x14c] sm:$0xf]
    %v2467 = vld [vmem:[#allocation8 + $0x150] sm:$0xff]
    %v2468 = vld [vmem:[#allocation8 + $0x158] sm:$0xf]
    %v2469 = vld [vmem:[#allocation8 + $0x15c] sm:$0xff]
    %v2470 = vld [vmem:[#allocation8 + $0x164] sm:$0xf]
    %v2471 = vld [vmem:[#allocation8 + $0x168] sm:$0xff]
    %v2472 = vld [vmem:[#allocation8 + $0x170] sm:$0xf]
    %v2473 = vld [vmem:[#allocation8 + $0x174] sm:$0xff]
    %v2474 = vld [vmem:[#allocation8 + $0x17c] sm:$0xf]
    %v2475 = vld [vmem:[#allocation8 + $0x180] sm:$0xff]
    %v2476 = vld [vmem:[#allocation8 + $0x188] sm:$0xf]
    %v2477 = vld [vmem:[#allocation8 + $0x18c] sm:$0xff]
    %v2478 = vld [vmem:[#allocation8 + $0x194] sm:$0xf]
    %v2479 = vld [vmem:[#allocation8 + $0x198] sm:$0xff]
    %v2480 = vld [vmem:[#allocation8 + $0x1a0] sm:$0xf]
    %v2481 = vld [vmem:[#allocation8 + $0x1a4] sm:$0xff]
    %v2482 = vld [vmem:[#allocation8 + $0x1ac] sm:$0xf]
    %v2483 = vld [vmem:[#allocation8 + $0x1b0] sm:$0xff]
    %v2484 = vld [vmem:[#allocation8 + $0x1b8] sm:$0xf]
    %v2485 = vld [vmem:[#allocation8 + $0x1bc] sm:$0xff]
    %v2486 = vld [vmem:[#allocation8 + $0x1c4] sm:$0xf]
    %v2487 = vld [vmem:[#allocation8 + $0x1c8] sm:$0xff]
    %v2488 = vld [vmem:[#allocation8 + $0x1d0] sm:$0xf]
    %v2489 = vld [vmem:[#allocation8 + $0x1d4] sm:$0xff]
    %v2490 = vld [vmem:[#allocation8 + $0x1dc] sm:$0xf]
    %v2491 = vld [vmem:[#allocation8 + $0x1e0] sm:$0xff]
    %v2492 = vld [vmem:[#allocation8 + $0x1e8] sm:$0xf]
    %v2493 = vld [vmem:[#allocation8 + $0x1ec] sm:$0xff]
    %v2494 = vld [vmem:[#allocation8 + $0x1f4] sm:$0xf]
    %v2495 = vld [vmem:[#allocation8 + $0x1f8] sm:$0xff]
    %v2496 = vld [vmem:[#allocation8 + $0x200] sm:$0xf]
    %v2497 = vld [vmem:[#allocation8 + $0x204] sm:$0xff]
    %v2498 = vld [vmem:[#allocation8 + $0x20c] sm:$0xf]
    %v2499 = vld [vmem:[#allocation8 + $0x210] sm:$0xff]
    %v2500 = vld [vmem:[#allocation8 + $0x218] sm:$0xf]
    %v2501 = vld [vmem:[#allocation8 + $0x21c] sm:$0xff]
    %v2502 = vld [vmem:[#allocation8 + $0x224] sm:$0xf]
    %v2503 = vld [vmem:[#allocation8 + $0x228] sm:$0xff]
    %v2504 = vld [vmem:[#allocation8 + $0x230] sm:$0xf]
    %v2505 = vld [vmem:[#allocation8 + $0x234] sm:$0xff]
    %v2506 = vld [vmem:[#allocation8 + $0x23c] sm:$0xf]
    %v2507 = vld [vmem:[#allocation8 + $0x240] sm:$0xff]
    %v2508 = vld [vmem:[#allocation8 + $0x248] sm:$0xf]
    %v2509 = vld [vmem:[#allocation8 + $0x24c] sm:$0xff]
    %v2510 = vld [vmem:[#allocation8 + $0x254] sm:$0xf]
    %v2511 = vld [vmem:[#allocation8 + $0x258] sm:$0xff]
    %v2512 = vld [vmem:[#allocation8 + $0x260] sm:$0xf]
    %v2513 = vld [vmem:[#allocation8 + $0x264] sm:$0xff]
    %v2514 = vld [vmem:[#allocation8 + $0x26c] sm:$0xf]
    %v2515 = vld [vmem:[#allocation8 + $0x270] sm:$0xff]
    %v2516 = vld [vmem:[#allocation8 + $0x278] sm:$0xf]
    %v2517 = vld [vmem:[#allocation8 + $0x27c] sm:$0xff]
    %v2518 = vld [vmem:[#allocation8 + $0x284] sm:$0xf]
    %v2519 = vld [vmem:[#allocation8 + $0x288] sm:$0xff]
    %v2520 = vld [vmem:[#allocation8 + $0x290] sm:$0xf]
    %v2521 = vld [vmem:[#allocation8 + $0x294] sm:$0xff]
    %v2522 = vld [vmem:[#allocation8 + $0x29c] sm:$0xf]
    %v2523 = vld [vmem:[#allocation8 + $0x2a0] sm:$0xff]
    %v2524 = vld [vmem:[#allocation8 + $0x2a8] sm:$0xf]
    %v2525 = vld [vmem:[#allocation8 + $0x2ac] sm:$0xff]
    %v2526 = vld [vmem:[#allocation8 + $0x2b4] sm:$0xf]
    %v2527 = vld [vmem:[#allocation8 + $0x2b8] sm:$0xff]
    %v2528 = vld [vmem:[#allocation8 + $0x2c0] sm:$0xf]
    %v2529 = vld [vmem:[#allocation8 + $0x2c4] sm:$0xff]
    %v2530 = vld [vmem:[#allocation8 + $0x2cc] sm:$0xf]
    %v2531 = vld [vmem:[#allocation8 + $0x2d0] sm:$0xff]
    %v2532 = vld [vmem:[#allocation8 + $0x2d8] sm:$0xf]
    %v2533 = vld [vmem:[#allocation8 + $0x2dc] sm:$0xff]
    %v2534 = vld [vmem:[#allocation8 + $0x2e4] sm:$0xf]
    %v2535 = vld [vmem:[#allocation8 + $0x2e8] sm:$0xff]
    %v2536 = vld [vmem:[#allocation8 + $0x2f0] sm:$0xf]
    %v2537 = vld [vmem:[#allocation8 + $0x2f4] sm:$0xff]
    %v2538 = vld [vmem:[#allocation8 + $0x2fc] sm:$0xf]
    %v2539 = vld [vmem:[#allocation8 + $0x300] sm:$0xff]
    %v2540 = vld [vmem:[#allocation8 + $0x308] sm:$0xf]
    %v2541 = vld [vmem:[#allocation8 + $0x30c] sm:$0xff]
    %v2542 = vld [vmem:[#allocation8 + $0x314] sm:$0xf]
    %v2543 = vld [vmem:[#allocation8 + $0x318] sm:$0xff]
    %v2544 = vld [vmem:[#allocation8 + $0x320] sm:$0xf]
    %v2545 = vld [vmem:[#allocation8 + $0x324] sm:$0xff]
    %v2546 = vld [vmem:[#allocation8 + $0x32c] sm:$0xf]
    %v2547 = vld [vmem:[#allocation8 + $0x330] sm:$0xff]
    %v2548 = vld [vmem:[#allocation8 + $0x338] sm:$0xf]
    %v2549 = vld [vmem:[#allocation8 + $0x33c] sm:$0xff]
    %v2550 = vld [vmem:[#allocation8 + $0x344] sm:$0xf]
    %v2551 = vld [vmem:[#allocation8 + $0x348] sm:$0xff]
    %v2552 = vld [vmem:[#allocation8 + $0x350] sm:$0xf]
    %v2553 = vld [vmem:[#allocation8 + $0x354] sm:$0xff]
    %v2554 = vld [vmem:[#allocation8 + $0x35c] sm:$0xf]
    %v2555 = vld [vmem:[#allocation8 + $0x360] sm:$0xff]
    %v2556 = vld [vmem:[#allocation8 + $0x368] sm:$0xf]
    %v2557 = vld [vmem:[#allocation8 + $0x36c] sm:$0xff]
    %v2558 = vld [vmem:[#allocation8 + $0x374] sm:$0xf]
    %v2559 = vld [vmem:[#allocation8 + $0x378] sm:$0xff]
    %v2560 = vld [vmem:[#allocation8 + $0x380] sm:$0xf]
    %v2561 = vld [vmem:[#allocation8 + $0x384] sm:$0xff]
    %v2562 = vld [vmem:[#allocation8 + $0x38c] sm:$0xf]
    %v2563 = vld [vmem:[#allocation8 + $0x390] sm:$0xff]
    %v2564 = vld [vmem:[#allocation8 + $0x398] sm:$0xf]
    %v2565 = vld [vmem:[#allocation8 + $0x39c] sm:$0xff]
    %v2566 = vld [vmem:[#allocation8 + $0x3a4] sm:$0xf]
    %v2567 = vld [vmem:[#allocation8 + $0x3a8] sm:$0xff]
    %v2568 = vld [vmem:[#allocation8 + $0x3b0] sm:$0xf]
    %v2569 = vld [vmem:[#allocation8 + $0x3b4] sm:$0xff]
    %v2570 = vld [vmem:[#allocation8 + $0x3bc] sm:$0xf]
    %v2571 = vld [vmem:[#allocation8 + $0x3c0] sm:$0xff]
    %v2572 = vld [vmem:[#allocation8 + $0x3c8] sm:$0xf]
    %v2573 = vld [vmem:[#allocation8 + $0x3cc] sm:$0xff]
    %v2574 = vld [vmem:[#allocation8 + $0x3d4] sm:$0xf]
    %v2575 = vld [vmem:[#allocation8 + $0x3d8] sm:$0xff]
    %v2576 = vld [vmem:[#allocation8 + $0x3e0] sm:$0xf]
    %v2577 = vld [vmem:[#allocation8 + $0x3e4] sm:$0xff]
    %v2578 = vld [vmem:[#allocation8 + $0x3ec] sm:$0xf]
    %v2579 = vld [vmem:[#allocation8 + $0x3f0] sm:$0xff]
    %v2580 = vld [vmem:[#allocation8 + $0x3f8] sm:$0xf]
    %v2581 = vld [vmem:[#allocation8 + $0x3fc] sm:$0xff]
    %v2582 = vld [vmem:[#allocation8 + $0x404] sm:$0xf]
    %v2583 = vld [vmem:[#allocation8 + $0x408] sm:$0xff]
    %v2584 = vld [vmem:[#allocation8 + $0x410] sm:$0xf]
    %v2585 = vld [vmem:[#allocation8 + $0x414] sm:$0xff]
    %v2586 = vld [vmem:[#allocation8 + $0x41c] sm:$0xf]
    %v2587 = vld [vmem:[#allocation8 + $0x420] sm:$0xff]
    %v2588 = vld [vmem:[#allocation8 + $0x428] sm:$0xf]
    %v2589 = vld [vmem:[#allocation8 + $0x42c] sm:$0xff]
    %v2590 = vld [vmem:[#allocation8 + $0x434] sm:$0xf]
    %v2591 = vld [vmem:[#allocation8 + $0x438] sm:$0xff]
    %v2592 = vld [vmem:[#allocation8 + $0x440] sm:$0xf]
    %v2593 = vld [vmem:[#allocation8 + $0x444] sm:$0xff]
    %v2594 = vld [vmem:[#allocation8 + $0x44c] sm:$0xf]
    %v2595 = vld [vmem:[#allocation8 + $0x450] sm:$0xff]
    %v2596 = vld [vmem:[#allocation8 + $0x458] sm:$0xf]
    %v2597 = vld [vmem:[#allocation8 + $0x45c] sm:$0xff]
    %v2598 = vld [vmem:[#allocation8 + $0x464] sm:$0xf]
    %v2599 = vld [vmem:[#allocation8 + $0x468] sm:$0xff]
    %v2600 = vld [vmem:[#allocation8 + $0x470] sm:$0xf]
    %v2601 = vld [vmem:[#allocation8 + $0x474] sm:$0xff]
    %v2602 = vld [vmem:[#allocation8 + $0x47c] sm:$0xf]
    %v2603 = vld [vmem:[#allocation8 + $0x480] sm:$0xff]
    %v2604 = vld [vmem:[#allocation8 + $0x488] sm:$0xf]
    %v2605 = vld [vmem:[#allocation8 + $0x48c] sm:$0xff]
    %v2606 = vld [vmem:[#allocation8 + $0x494] sm:$0xf]
    %v2607 = vld [vmem:[#allocation8 + $0x498] sm:$0xff]
    %v2608 = vld [vmem:[#allocation8 + $0x4a0] sm:$0xf]
    %v2609 = vld [vmem:[#allocation8 + $0x4a4] sm:$0xff]
    %v2610 = vld [vmem:[#allocation8 + $0x4ac] sm:$0xf]
    %v2611 = vld [vmem:[#allocation8 + $0x4b0] sm:$0xff]
    %v2612 = vld [vmem:[#allocation8 + $0x4b8] sm:$0xf]
    %v2613 = vld [vmem:[#allocation8 + $0x4bc] sm:$0xff]
    %v2614 = vld [vmem:[#allocation8 + $0x4c4] sm:$0xf]
    %v2615 = vld [vmem:[#allocation8 + $0x4c8] sm:$0xff]
    %v2616 = vld [vmem:[#allocation8 + $0x4d0] sm:$0xf]
    %v2617 = vld [vmem:[#allocation8 + $0x4d4] sm:$0xff]
    %v2618 = vld [vmem:[#allocation8 + $0x4dc] sm:$0xf]
    %v2619 = vld [vmem:[#allocation8 + $0x4e0] sm:$0xff]
    %v2620 = vld [vmem:[#allocation8 + $0x4e8] sm:$0xf]
    %v2621 = vld [vmem:[#allocation8 + $0x4ec] sm:$0xff]
    %v2622 = vld [vmem:[#allocation8 + $0x4f4] sm:$0xf]
    %v2623 = vld [vmem:[#allocation8 + $0x4f8] sm:$0xff]
    %v2624 = vld [vmem:[#allocation8 + $0x500] sm:$0xf]
    %v2625 = vld [vmem:[#allocation8 + $0x504] sm:$0xff]
    %v2626 = vld [vmem:[#allocation8 + $0x50c] sm:$0xf]
    %v2627 = vld [vmem:[#allocation8 + $0x510] sm:$0xff]
    %v2628 = vld [vmem:[#allocation8 + $0x518] sm:$0xf]
    %v2629 = vld [vmem:[#allocation8 + $0x51c] sm:$0xff]
    %v2630 = vld [vmem:[#allocation8 + $0x524] sm:$0xf]
    %v2631 = vld [vmem:[#allocation8 + $0x528] sm:$0xff]
    %v2632 = vld [vmem:[#allocation8 + $0x530] sm:$0xf]
    %v2633 = vld [vmem:[#allocation8 + $0x534] sm:$0xff]
    %v2634 = vld [vmem:[#allocation8 + $0x53c] sm:$0xf]
    %v2635 = vld [vmem:[#allocation8 + $0x540] sm:$0xff]
    %v2636 = vld [vmem:[#allocation8 + $0x548] sm:$0xf]
    %v2637 = vld [vmem:[#allocation8 + $0x54c] sm:$0xff]
    %v2638 = vld [vmem:[#allocation8 + $0x554] sm:$0xf]
    %v2639 = vld [vmem:[#allocation8 + $0x558] sm:$0xff]
    %v2640 = vld [vmem:[#allocation8 + $0x560] sm:$0xf]
    %v2641 = vld [vmem:[#allocation8 + $0x564] sm:$0xff]
    %v2642 = vld [vmem:[#allocation8 + $0x56c] sm:$0xf]
    %v2643 = vld [vmem:[#allocation8 + $0x570] sm:$0xff]
    %v2644 = vld [vmem:[#allocation8 + $0x578] sm:$0xf]
    %v2645 = vld [vmem:[#allocation8 + $0x57c] sm:$0xff]
    %v2646 = vld [vmem:[#allocation8 + $0x584] sm:$0xf]
    %v2647 = vld [vmem:[#allocation8 + $0x588] sm:$0xff]
    %v2648 = vld [vmem:[#allocation8 + $0x590] sm:$0xf]
    %v2649 = vld [vmem:[#allocation8 + $0x594] sm:$0xff]
    %v2650 = vld [vmem:[#allocation8 + $0x59c] sm:$0xf]
    %v2651 = vld [vmem:[#allocation8 + $0x5a0] sm:$0xff]
    %v2652 = vld [vmem:[#allocation8 + $0x5a8] sm:$0xf]
    %v2653 = vld [vmem:[#allocation8 + $0x5ac] sm:$0xff]
    %v2654 = vld [vmem:[#allocation8 + $0x5b4] sm:$0xf]
    %v2655 = vld [vmem:[#allocation8 + $0x5b8] sm:$0xff]
    %v2656 = vld [vmem:[#allocation8 + $0x5c0] sm:$0xf]
    %v2657 = vld [vmem:[#allocation8 + $0x5c4] sm:$0xff]
    %v2658 = vld [vmem:[#allocation8 + $0x5cc] sm:$0xf]
    %v2659 = vld [vmem:[#allocation8 + $0x5d0] sm:$0xff]
    %v2660 = vld [vmem:[#allocation8 + $0x5d8] sm:$0xf]
    %v2661 = vld [vmem:[#allocation8 + $0x5dc] sm:$0xff]
    %v2662 = vld [vmem:[#allocation8 + $0x5e4] sm:$0xf]
    %v2663 = vld [vmem:[#allocation8 + $0x5e8] sm:$0xff]
    %v2664 = vld [vmem:[#allocation8 + $0x5f0] sm:$0xf]
    %v2665 = vld [vmem:[#allocation8 + $0x5f4] sm:$0xff]
    %v2666 = vld [vmem:[#allocation8 + $0x5fc] sm:$0xf]
    %v2667 = vld [vmem:[#allocation8 + $0x600] sm:$0xff]
    %v2668 = vld [vmem:[#allocation8 + $0x608] sm:$0xf]
    %v2669 = vld [vmem:[#allocation8 + $0x60c] sm:$0xff]
    %v2670 = vld [vmem:[#allocation8 + $0x614] sm:$0xf]
    %v2671 = vld [vmem:[#allocation8 + $0x618] sm:$0xff]
    %v2672 = vld [vmem:[#allocation8 + $0x620] sm:$0xf]
    %v2673 = vld [vmem:[#allocation8 + $0x624] sm:$0xff]
    %v2674 = vld [vmem:[#allocation8 + $0x62c] sm:$0xf]
    %v2675 = vld [vmem:[#allocation8 + $0x630] sm:$0xff]
    %v2676 = vld [vmem:[#allocation8 + $0x638] sm:$0xf]
    %v2677 = vld [vmem:[#allocation8 + $0x63c] sm:$0xff]
    %v2678 = vld [vmem:[#allocation8 + $0x644] sm:$0xf]
    %v2679 = vld [vmem:[#allocation8 + $0x648] sm:$0xff]
    %v2680 = vld [vmem:[#allocation8 + $0x650] sm:$0xf]
    %v2681 = vld [vmem:[#allocation8 + $0x654] sm:$0xff]
    %v2682 = vld [vmem:[#allocation8 + $0x65c] sm:$0xf]
    %v2683 = vld [vmem:[#allocation8 + $0x660] sm:$0xff]
    %v2684 = vld [vmem:[#allocation8 + $0x668] sm:$0xf]
    %v2685 = vld [vmem:[#allocation8 + $0x66c] sm:$0xff]
    %v2686 = vld [vmem:[#allocation8 + $0x674] sm:$0xf]
    %v2687 = vld [vmem:[#allocation8 + $0x678] sm:$0xff]
    %v2688 = vld [vmem:[#allocation8 + $0x680] sm:$0xf]
    %v2689 = vld [vmem:[#allocation8 + $0x684] sm:$0xff]
    %v2690 = vld [vmem:[#allocation8 + $0x68c] sm:$0xf]
    %v2691 = vld [vmem:[#allocation8 + $0x690] sm:$0xff]
    %v2692 = vld [vmem:[#allocation8 + $0x698] sm:$0xf]
    %v2693 = vld [vmem:[#allocation8 + $0x69c] sm:$0xff]
    %v2694 = vld [vmem:[#allocation8 + $0x6a4] sm:$0xf]
    %v2695 = vld [vmem:[#allocation8 + $0x6a8] sm:$0xff]
    %v2696 = vld [vmem:[#allocation8 + $0x6b0] sm:$0xf]
    %v2697 = vld [vmem:[#allocation8 + $0x6b4] sm:$0xff]
    %v2698 = vld [vmem:[#allocation8 + $0x6bc] sm:$0xf]
    %v2699 = vld [vmem:[#allocation8 + $0x6c0] sm:$0xff]
    %v2700 = vld [vmem:[#allocation8 + $0x6c8] sm:$0xf]
    %v2701 = vld [vmem:[#allocation8 + $0x6cc] sm:$0xff]
    %v2702 = vld [vmem:[#allocation8 + $0x6d4] sm:$0xf]
    %v2703 = vld [vmem:[#allocation8 + $0x6d8] sm:$0xff]
    %v2704 = vld [vmem:[#allocation8 + $0x6e0] sm:$0xf]
    %v2705 = vld [vmem:[#allocation8 + $0x6e4] sm:$0xff]
    %v2706 = vld [vmem:[#allocation8 + $0x6ec] sm:$0xf]
    %v2707 = vld [vmem:[#allocation8 + $0x6f0] sm:$0xff]
    %v2708 = vld [vmem:[#allocation8 + $0x6f8] sm:$0xf]
    %v2709 = vld [vmem:[#allocation8 + $0x6fc] sm:$0xff]
    %v2710 = vld [vmem:[#allocation8 + $0x704] sm:$0xf]
    %v2711 = vld [vmem:[#allocation8 + $0x708] sm:$0xff]
    %v2712 = vld [vmem:[#allocation8 + $0x710] sm:$0xf]
    %v2713 = vld [vmem:[#allocation8 + $0x714] sm:$0xff]
    %v2714 = vld [vmem:[#allocation8 + $0x71c] sm:$0xf]
    %v2715 = vld [vmem:[#allocation8 + $0x720] sm:$0xff]
    %v2716 = vld [vmem:[#allocation8 + $0x728] sm:$0xf]
    %v2717 = vld [vmem:[#allocation8 + $0x72c] sm:$0xff]
    %v2718 = vld [vmem:[#allocation8 + $0x734] sm:$0xf]
    %v2719 = vld [vmem:[#allocation8 + $0x738] sm:$0xff]
    %v2720 = vld [vmem:[#allocation8 + $0x740] sm:$0xf]
    %v2721 = vld [vmem:[#allocation8 + $0x744] sm:$0xff]
    %v2722 = vld [vmem:[#allocation8 + $0x74c] sm:$0xf]
    %v2723 = vld [vmem:[#allocation8 + $0x750] sm:$0xff]
    %v2724 = vld [vmem:[#allocation8 + $0x758] sm:$0xf]
    %v2725 = vld [vmem:[#allocation8 + $0x75c] sm:$0xff]
    %v2726 = vld [vmem:[#allocation8 + $0x764] sm:$0xf]
    %v2727 = vld [vmem:[#allocation8 + $0x768] sm:$0xff]
    %v2728 = vld [vmem:[#allocation8 + $0x770] sm:$0xf]
    %v2729 = vld [vmem:[#allocation8 + $0x774] sm:$0xff]
    %v2730 = vld [vmem:[#allocation8 + $0x77c] sm:$0xf]
    %v2731 = vld [vmem:[#allocation8 + $0x780] sm:$0xff]
    %v2732 = vld [vmem:[#allocation8 + $0x788] sm:$0xf]
    %v2733 = vld [vmem:[#allocation8 + $0x78c] sm:$0xff]
    %v2734 = vld [vmem:[#allocation8 + $0x794] sm:$0xf]
    %v2735 = vld [vmem:[#allocation8 + $0x798] sm:$0xff]
    %v2736 = vld [vmem:[#allocation8 + $0x7a0] sm:$0xf]
    %v2737 = vld [vmem:[#allocation8 + $0x7a4] sm:$0xff]
    %v2738 = vld [vmem:[#allocation8 + $0x7ac] sm:$0xf]
    %v2739 = vld [vmem:[#allocation8 + $0x7b0] sm:$0xff]
    %v2740 = vld [vmem:[#allocation8 + $0x7b8] sm:$0xf]
    %v2741 = vld [vmem:[#allocation8 + $0x7bc] sm:$0xff]
    %v2742 = vld [vmem:[#allocation8 + $0x7c4] sm:$0xf]
    %v2743 = vld [vmem:[#allocation8 + $0x7c8] sm:$0xff]
    %v2744 = vld [vmem:[#allocation8 + $0x7d0] sm:$0xf]
    %v2745 = vld [vmem:[#allocation8 + $0x7d4] sm:$0xff]
    %v2746 = vld [vmem:[#allocation8 + $0x7dc] sm:$0xf]
    %v2747 = vld [vmem:[#allocation8 + $0x7e0] sm:$0xff]
    %v2748 = vld [vmem:[#allocation8 + $0x7e8] sm:$0xf]
    %v2749 = vld [vmem:[#allocation8 + $0x7ec] sm:$0xff]
    %v2750 = vld [vmem:[#allocation8 + $0x7f4] sm:$0xf]
    %v2751 = vld [vmem:[#allocation8 + $0x7f8] sm:$0xff]
    %v2752 = vld [vmem:[#allocation8 + $0x800] sm:$0xf]
    %v2753 = vld [vmem:[#allocation8 + $0x804] sm:$0xff]
    %v2754 = vld [vmem:[#allocation8 + $0x80c] sm:$0xf]
    %v2755 = vld [vmem:[#allocation8 + $0x810] sm:$0xff]
    %v2756 = vld [vmem:[#allocation8 + $0x818] sm:$0xf]
    %v2757 = vld [vmem:[#allocation8 + $0x81c] sm:$0xff]
    %v2758 = vld [vmem:[#allocation8 + $0x824] sm:$0xf]
    %v2759 = vld [vmem:[#allocation8 + $0x828] sm:$0xff]
    %v2760 = vld [vmem:[#allocation8 + $0x830] sm:$0xf]
    %v2761 = vld [vmem:[#allocation8 + $0x834] sm:$0xff]
    %v2762 = vld [vmem:[#allocation8 + $0x83c] sm:$0xf]
    %v2763 = vld [vmem:[#allocation8 + $0x840] sm:$0xff]
    %v2764 = vld [vmem:[#allocation8 + $0x848] sm:$0xf]
    %v2765 = vld [vmem:[#allocation8 + $0x84c] sm:$0xff]
    %v2766 = vld [vmem:[#allocation8 + $0x854] sm:$0xf]
    %v2767 = vld [vmem:[#allocation8 + $0x858] sm:$0xff]
    %v2768 = vld [vmem:[#allocation8 + $0x860] sm:$0xf]
    %v2769 = vld [vmem:[#allocation8 + $0x864] sm:$0xff]
    %v2770 = vld [vmem:[#allocation8 + $0x86c] sm:$0xf]
    %v2771 = vld [vmem:[#allocation8 + $0x870] sm:$0xff]
    %v2772 = vld [vmem:[#allocation8 + $0x878] sm:$0xf]
    %v2773 = vld [vmem:[#allocation8 + $0x87c] sm:$0xff]
    %v2774 = vld [vmem:[#allocation8 + $0x884] sm:$0xf]
    %v2775 = vld [vmem:[#allocation8 + $0x888] sm:$0xff]
    %v2776 = vld [vmem:[#allocation8 + $0x890] sm:$0xf]
    %v2777 = vld [vmem:[#allocation8 + $0x894] sm:$0xff]
    %v2778 = vld [vmem:[#allocation8 + $0x89c] sm:$0xf]
    %v2779 = vld [vmem:[#allocation8 + $0x8a0] sm:$0xff]
    %v2780 = vld [vmem:[#allocation8 + $0x8a8] sm:$0xf]
    %v2781 = vld [vmem:[#allocation8 + $0x8ac] sm:$0xff]
    %v2782 = vld [vmem:[#allocation8 + $0x8b4] sm:$0xf]
    %v2783 = vld [vmem:[#allocation8 + $0x8b8] sm:$0xff]
    %v2784 = vld [vmem:[#allocation8 + $0x8c0] sm:$0xf]
    %v2785 = vld [vmem:[#allocation8 + $0x8c4] sm:$0xff]
    %v2786 = vld [vmem:[#allocation8 + $0x8cc] sm:$0xf]
    %v2787 = vld [vmem:[#allocation8 + $0x8d0] sm:$0xff]
    %v2788 = vld [vmem:[#allocation8 + $0x8d8] sm:$0xf]
    %v2789 = vld [vmem:[#allocation8 + $0x8dc] sm:$0xff]
    %v2790 = vld [vmem:[#allocation8 + $0x8e4] sm:$0xf]
    %v2791 = vld [vmem:[#allocation8 + $0x8e8] sm:$0xff]
    %v2792 = vld [vmem:[#allocation8 + $0x8f0] sm:$0xf]
    %v2793 = vld [vmem:[#allocation8 + $0x8f4] sm:$0xff]
    %v2794 = vld [vmem:[#allocation8 + $0x8fc] sm:$0xf]
    %v2795 = vld [vmem:[#allocation10] sm:$0x7]
    %v2797 = vperm.slane %v2795, 0
    %v2798 = vperm.slane %v2795, 1
    %v2799 = vperm.slane %v2795, 2
    %v3187 = vunpack.c.l.b16 %v2411
    %v3188 = vunpack.c.h.b16 %v2411
    %v3189 = vunpack.c.l.b16 %v2412
    %v3190 = vunpack.c.l.b16 %v2413
    %v3191 = vunpack.c.h.b16 %v2413
    %v3192 = vunpack.c.l.b16 %v2414
    %v3193 = vunpack.c.l.b16 %v2415
    %v3194 = vunpack.c.h.b16 %v2415
    %v3195 = vunpack.c.l.b16 %v2416
    %v3196 = vunpack.c.l.b16 %v2417
    %v3197 = vunpack.c.h.b16 %v2417
    %v3198 = vunpack.c.l.b16 %v2418
    %v3199 = vunpack.c.l.b16 %v2419
    %v3200 = vunpack.c.h.b16 %v2419
    %v3201 = vunpack.c.l.b16 %v2420
    %v3202 = vunpack.c.l.b16 %v2421
    %v3203 = vunpack.c.h.b16 %v2421
    %v3204 = vunpack.c.l.b16 %v2422
    %v3205 = vunpack.c.l.b16 %v2423
    %v3206 = vunpack.c.h.b16 %v2423
    %v3207 = vunpack.c.l.b16 %v2424
    %v3208 = vunpack.c.l.b16 %v2425
    %v3209 = vunpack.c.h.b16 %v2425
    %v3210 = vunpack.c.l.b16 %v2426
    %v3211 = vunpack.c.l.b16 %v2427
    %v3212 = vunpack.c.h.b16 %v2427
    %v3213 = vunpack.c.l.b16 %v2428
    %v3214 = vunpack.c.l.b16 %v2429
    %v3215 = vunpack.c.h.b16 %v2429
    %v3216 = vunpack.c.l.b16 %v2430
    %v3217 = vunpack.c.l.b16 %v2431
    %v3218 = vunpack.c.h.b16 %v2431
    %v3219 = vunpack.c.l.b16 %v2432
    %v3220 = vunpack.c.l.b16 %v2433
    %v3221 = vunpack.c.h.b16 %v2433
    %v3222 = vunpack.c.l.b16 %v2434
    %v3223 = vunpack.c.l.b16 %v2435
    %v3224 = vunpack.c.h.b16 %v2435
    %v3225 = vunpack.c.l.b16 %v2436
    %v3226 = vunpack.c.l.b16 %v2437
    %v3227 = vunpack.c.h.b16 %v2437
    %v3228 = vunpack.c.l.b16 %v2438
    %v3229 = vunpack.c.l.b16 %v2439
    %v3230 = vunpack.c.h.b16 %v2439
    %v3231 = vunpack.c.l.b16 %v2440
    %v3232 = vunpack.c.l.b16 %v2441
    %v3233 = vunpack.c.h.b16 %v2441
    %v3234 = vunpack.c.l.b16 %v2442
    %v3235 = vunpack.c.l.b16 %v2443
    %v3236 = vunpack.c.h.b16 %v2443
    %v3237 = vunpack.c.l.b16 %v2444
    %v3238 = vunpack.c.l.b16 %v2445
    %v3239 = vunpack.c.h.b16 %v2445
    %v3240 = vunpack.c.l.b16 %v2446
    %v3241 = vunpack.c.l.b16 %v2447
    %v3242 = vunpack.c.h.b16 %v2447
    %v3243 = vunpack.c.l.b16 %v2448
    %v3244 = vunpack.c.l.b16 %v2449
    %v3245 = vunpack.c.h.b16 %v2449
    %v3246 = vunpack.c.l.b16 %v2450
    %v3247 = vunpack.c.l.b16 %v2451
    %v3248 = vunpack.c.h.b16 %v2451
    %v3249 = vunpack.c.l.b16 %v2452
    %v3250 = vunpack.c.l.b16 %v2453
    %v3251 = vunpack.c.h.b16 %v2453
    %v3252 = vunpack.c.l.b16 %v2454
    %v3253 = vunpack.c.l.b16 %v2455
    %v3254 = vunpack.c.h.b16 %v2455
    %v3255 = vunpack.c.l.b16 %v2456
    %v3256 = vunpack.c.l.b16 %v2457
    %v3257 = vunpack.c.h.b16 %v2457
    %v3258 = vunpack.c.l.b16 %v2458
    %v3259 = vunpack.c.l.b16 %v2459
    %v3260 = vunpack.c.h.b16 %v2459
    %v3261 = vunpack.c.l.b16 %v2460
    %v3262 = vunpack.c.l.b16 %v2461
    %v3263 = vunpack.c.h.b16 %v2461
    %v3264 = vunpack.c.l.b16 %v2462
    %v3265 = vunpack.c.l.b16 %v2463
    %v3266 = vunpack.c.h.b16 %v2463
    %v3267 = vunpack.c.l.b16 %v2464
    %v3268 = vunpack.c.l.b16 %v2465
    %v3269 = vunpack.c.h.b16 %v2465
    %v3270 = vunpack.c.l.b16 %v2466
    %v3271 = vunpack.c.l.b16 %v2467
    %v3272 = vunpack.c.h.b16 %v2467
    %v3273 = vunpack.c.l.b16 %v2468
    %v3274 = vunpack.c.l.b16 %v2469
    %v3275 = vunpack.c.h.b16 %v2469
    %v3276 = vunpack.c.l.b16 %v2470
    %v3277 = vunpack.c.l.b16 %v2471
    %v3278 = vunpack.c.h.b16 %v2471
    %v3279 = vunpack.c.l.b16 %v2472
    %v3280 = vunpack.c.l.b16 %v2473
    %v3281 = vunpack.c.h.b16 %v2473
    %v3282 = vunpack.c.l.b16 %v2474
    %v3283 = vunpack.c.l.b16 %v2475
    %v3284 = vunpack.c.h.b16 %v2475
    %v3285 = vunpack.c.l.b16 %v2476
    %v3286 = vunpack.c.l.b16 %v2477
    %v3287 = vunpack.c.h.b16 %v2477
    %v3288 = vunpack.c.l.b16 %v2478
    %v3289 = vunpack.c.l.b16 %v2479
    %v3290 = vunpack.c.h.b16 %v2479
    %v3291 = vunpack.c.l.b16 %v2480
    %v3292 = vunpack.c.l.b16 %v2481
    %v3293 = vunpack.c.h.b16 %v2481
    %v3294 = vunpack.c.l.b16 %v2482
    %v3295 = vunpack.c.l.b16 %v2483
    %v3296 = vunpack.c.h.b16 %v2483
    %v3297 = vunpack.c.l.b16 %v2484
    %v3298 = vunpack.c.l.b16 %v2485
    %v3299 = vunpack.c.h.b16 %v2485
    %v3300 = vunpack.c.l.b16 %v2486
    %v3301 = vunpack.c.l.b16 %v2487
    %v3302 = vunpack.c.h.b16 %v2487
    %v3303 = vunpack.c.l.b16 %v2488
    %v3304 = vunpack.c.l.b16 %v2489
    %v3305 = vunpack.c.h.b16 %v2489
    %v3306 = vunpack.c.l.b16 %v2490
    %v3307 = vunpack.c.l.b16 %v2491
    %v3308 = vunpack.c.h.b16 %v2491
    %v3309 = vunpack.c.l.b16 %v2492
    %v3310 = vunpack.c.l.b16 %v2493
    %v3311 = vunpack.c.h.b16 %v2493
    %v3312 = vunpack.c.l.b16 %v2494
    %v3313 = vunpack.c.l.b16 %v2495
    %v3314 = vunpack.c.h.b16 %v2495
    %v3315 = vunpack.c.l.b16 %v2496
    %v3316 = vunpack.c.l.b16 %v2497
    %v3317 = vunpack.c.h.b16 %v2497
    %v3318 = vunpack.c.l.b16 %v2498
    %v3319 = vunpack.c.l.b16 %v2499
    %v3320 = vunpack.c.h.b16 %v2499
    %v3321 = vunpack.c.l.b16 %v2500
    %v3322 = vunpack.c.l.b16 %v2501
    %v3323 = vunpack.c.h.b16 %v2501
    %v3324 = vunpack.c.l.b16 %v2502
    %v3325 = vunpack.c.l.b16 %v2503
    %v3326 = vunpack.c.h.b16 %v2503
    %v3327 = vunpack.c.l.b16 %v2504
    %v3328 = vunpack.c.l.b16 %v2505
    %v3329 = vunpack.c.h.b16 %v2505
    %v3330 = vunpack.c.l.b16 %v2506
    %v3331 = vunpack.c.l.b16 %v2507
    %v3332 = vunpack.c.h.b16 %v2507
    %v3333 = vunpack.c.l.b16 %v2508
    %v3334 = vunpack.c.l.b16 %v2509
    %v3335 = vunpack.c.h.b16 %v2509
    %v3336 = vunpack.c.l.b16 %v2510
    %v3337 = vunpack.c.l.b16 %v2511
    %v3338 = vunpack.c.h.b16 %v2511
    %v3339 = vunpack.c.l.b16 %v2512
    %v3340 = vunpack.c.l.b16 %v2513
    %v3341 = vunpack.c.h.b16 %v2513
    %v3342 = vunpack.c.l.b16 %v2514
    %v3343 = vunpack.c.l.b16 %v2515
    %v3344 = vunpack.c.h.b16 %v2515
    %v3345 = vunpack.c.l.b16 %v2516
    %v3346 = vunpack.c.l.b16 %v2517
    %v3347 = vunpack.c.h.b16 %v2517
    %v3348 = vunpack.c.l.b16 %v2518
    %v3349 = vunpack.c.l.b16 %v2519
    %v3350 = vunpack.c.h.b16 %v2519
    %v3351 = vunpack.c.l.b16 %v2520
    %v3352 = vunpack.c.l.b16 %v2521
    %v3353 = vunpack.c.h.b16 %v2521
    %v3354 = vunpack.c.l.b16 %v2522
    %v3355 = vunpack.c.l.b16 %v2523
    %v3356 = vunpack.c.h.b16 %v2523
    %v3357 = vunpack.c.l.b16 %v2524
    %v3358 = vunpack.c.l.b16 %v2525
    %v3359 = vunpack.c.h.b16 %v2525
    %v3360 = vunpack.c.l.b16 %v2526
    %v3361 = vunpack.c.l.b16 %v2527
    %v3362 = vunpack.c.h.b16 %v2527
    %v3363 = vunpack.c.l.b16 %v2528
    %v3364 = vunpack.c.l.b16 %v2529
    %v3365 = vunpack.c.h.b16 %v2529
    %v3366 = vunpack.c.l.b16 %v2530
    %v3367 = vunpack.c.l.b16 %v2531
    %v3368 = vunpack.c.h.b16 %v2531
    %v3369 = vunpack.c.l.b16 %v2532
    %v3370 = vunpack.c.l.b16 %v2533
    %v3371 = vunpack.c.h.b16 %v2533
    %v3372 = vunpack.c.l.b16 %v2534
    %v3373 = vunpack.c.l.b16 %v2535
    %v3374 = vunpack.c.h.b16 %v2535
    %v3375 = vunpack.c.l.b16 %v2536
    %v3376 = vunpack.c.l.b16 %v2537
    %v3377 = vunpack.c.h.b16 %v2537
    %v3378 = vunpack.c.l.b16 %v2538
    %v3379 = vunpack.c.l.b16 %v2539
    %v3380 = vunpack.c.h.b16 %v2539
    %v3381 = vunpack.c.l.b16 %v2540
    %v3382 = vunpack.c.l.b16 %v2541
    %v3383 = vunpack.c.h.b16 %v2541
    %v3384 = vunpack.c.l.b16 %v2542
    %v3385 = vunpack.c.l.b16 %v2543
    %v3386 = vunpack.c.h.b16 %v2543
    %v3387 = vunpack.c.l.b16 %v2544
    %v3388 = vunpack.c.l.b16 %v2545
    %v3389 = vunpack.c.h.b16 %v2545
    %v3390 = vunpack.c.l.b16 %v2546
    %v3391 = vunpack.c.l.b16 %v2547
    %v3392 = vunpack.c.h.b16 %v2547
    %v3393 = vunpack.c.l.b16 %v2548
    %v3394 = vunpack.c.l.b16 %v2549
    %v3395 = vunpack.c.h.b16 %v2549
    %v3396 = vunpack.c.l.b16 %v2550
    %v3397 = vunpack.c.l.b16 %v2551
    %v3398 = vunpack.c.h.b16 %v2551
    %v3399 = vunpack.c.l.b16 %v2552
    %v3400 = vunpack.c.l.b16 %v2553
    %v3401 = vunpack.c.h.b16 %v2553
    %v3402 = vunpack.c.l.b16 %v2554
    %v3403 = vunpack.c.l.b16 %v2555
    %v3404 = vunpack.c.h.b16 %v2555
    %v3405 = vunpack.c.l.b16 %v2556
    %v3406 = vunpack.c.l.b16 %v2557
    %v3407 = vunpack.c.h.b16 %v2557
    %v3408 = vunpack.c.l.b16 %v2558
    %v3409 = vunpack.c.l.b16 %v2559
    %v3410 = vunpack.c.h.b16 %v2559
    %v3411 = vunpack.c.l.b16 %v2560
    %v3412 = vunpack.c.l.b16 %v2561
    %v3413 = vunpack.c.h.b16 %v2561
    %v3414 = vunpack.c.l.b16 %v2562
    %v3415 = vunpack.c.l.b16 %v2563
    %v3416 = vunpack.c.h.b16 %v2563
    %v3417 = vunpack.c.l.b16 %v2564
    %v3418 = vunpack.c.l.b16 %v2565
    %v3419 = vunpack.c.h.b16 %v2565
    %v3420 = vunpack.c.l.b16 %v2566
    %v3421 = vunpack.c.l.b16 %v2567
    %v3422 = vunpack.c.h.b16 %v2567
    %v3423 = vunpack.c.l.b16 %v2568
    %v3424 = vunpack.c.l.b16 %v2569
    %v3425 = vunpack.c.h.b16 %v2569
    %v3426 = vunpack.c.l.b16 %v2570
    %v3427 = vunpack.c.l.b16 %v2571
    %v3428 = vunpack.c.h.b16 %v2571
    %v3429 = vunpack.c.l.b16 %v2572
    %v3430 = vunpack.c.l.b16 %v2573
    %v3431 = vunpack.c.h.b16 %v2573
    %v3432 = vunpack.c.l.b16 %v2574
    %v3433 = vunpack.c.l.b16 %v2575
    %v3434 = vunpack.c.h.b16 %v2575
    %v3435 = vunpack.c.l.b16 %v2576
    %v3436 = vunpack.c.l.b16 %v2577
    %v3437 = vunpack.c.h.b16 %v2577
    %v3438 = vunpack.c.l.b16 %v2578
    %v3439 = vunpack.c.l.b16 %v2579
    %v3440 = vunpack.c.h.b16 %v2579
    %v3441 = vunpack.c.l.b16 %v2580
    %v3442 = vunpack.c.l.b16 %v2581
    %v3443 = vunpack.c.h.b16 %v2581
    %v3444 = vunpack.c.l.b16 %v2582
    %v3445 = vunpack.c.l.b16 %v2583
    %v3446 = vunpack.c.h.b16 %v2583
    %v3447 = vunpack.c.l.b16 %v2584
    %v3448 = vunpack.c.l.b16 %v2585
    %v3449 = vunpack.c.h.b16 %v2585
    %v3450 = vunpack.c.l.b16 %v2586
    %v3451 = vunpack.c.l.b16 %v2587
    %v3452 = vunpack.c.h.b16 %v2587
    %v3453 = vunpack.c.l.b16 %v2588
    %v3454 = vunpack.c.l.b16 %v2589
    %v3455 = vunpack.c.h.b16 %v2589
    %v3456 = vunpack.c.l.b16 %v2590
    %v3457 = vunpack.c.l.b16 %v2591
    %v3458 = vunpack.c.h.b16 %v2591
    %v3459 = vunpack.c.l.b16 %v2592
    %v3460 = vunpack.c.l.b16 %v2593
    %v3461 = vunpack.c.h.b16 %v2593
    %v3462 = vunpack.c.l.b16 %v2594
    %v3463 = vunpack.c.l.b16 %v2595
    %v3464 = vunpack.c.h.b16 %v2595
    %v3465 = vunpack.c.l.b16 %v2596
    %v3466 = vunpack.c.l.b16 %v2597
    %v3467 = vunpack.c.h.b16 %v2597
    %v3468 = vunpack.c.l.b16 %v2598
    %v3469 = vunpack.c.l.b16 %v2599
    %v3470 = vunpack.c.h.b16 %v2599
    %v3471 = vunpack.c.l.b16 %v2600
    %v3472 = vunpack.c.l.b16 %v2601
    %v3473 = vunpack.c.h.b16 %v2601
    %v3474 = vunpack.c.l.b16 %v2602
    %v3475 = vunpack.c.l.b16 %v2603
    %v3476 = vunpack.c.h.b16 %v2603
    %v3477 = vunpack.c.l.b16 %v2604
    %v3478 = vunpack.c.l.b16 %v2605
    %v3479 = vunpack.c.h.b16 %v2605
    %v3480 = vunpack.c.l.b16 %v2606
    %v3481 = vunpack.c.l.b16 %v2607
    %v3482 = vunpack.c.h.b16 %v2607
    %v3483 = vunpack.c.l.b16 %v2608
    %v3484 = vunpack.c.l.b16 %v2609
    %v3485 = vunpack.c.h.b16 %v2609
    %v3486 = vunpack.c.l.b16 %v2610
    %v3487 = vunpack.c.l.b16 %v2611
    %v3488 = vunpack.c.h.b16 %v2611
    %v3489 = vunpack.c.l.b16 %v2612
    %v3490 = vunpack.c.l.b16 %v2613
    %v3491 = vunpack.c.h.b16 %v2613
    %v3492 = vunpack.c.l.b16 %v2614
    %v3493 = vunpack.c.l.b16 %v2615
    %v3494 = vunpack.c.h.b16 %v2615
    %v3495 = vunpack.c.l.b16 %v2616
    %v3496 = vunpack.c.l.b16 %v2617
    %v3497 = vunpack.c.h.b16 %v2617
    %v3498 = vunpack.c.l.b16 %v2618
    %v3499 = vunpack.c.l.b16 %v2619
    %v3500 = vunpack.c.h.b16 %v2619
    %v3501 = vunpack.c.l.b16 %v2620
    %v3502 = vunpack.c.l.b16 %v2621
    %v3503 = vunpack.c.h.b16 %v2621
    %v3504 = vunpack.c.l.b16 %v2622
    %v3505 = vunpack.c.l.b16 %v2623
    %v3506 = vunpack.c.h.b16 %v2623
    %v3507 = vunpack.c.l.b16 %v2624
    %v3508 = vunpack.c.l.b16 %v2625
    %v3509 = vunpack.c.h.b16 %v2625
    %v3510 = vunpack.c.l.b16 %v2626
    %v3511 = vunpack.c.l.b16 %v2627
    %v3512 = vunpack.c.h.b16 %v2627
    %v3513 = vunpack.c.l.b16 %v2628
    %v3514 = vunpack.c.l.b16 %v2629
    %v3515 = vunpack.c.h.b16 %v2629
    %v3516 = vunpack.c.l.b16 %v2630
    %v3517 = vunpack.c.l.b16 %v2631
    %v3518 = vunpack.c.h.b16 %v2631
    %v3519 = vunpack.c.l.b16 %v2632
    %v3520 = vunpack.c.l.b16 %v2633
    %v3521 = vunpack.c.h.b16 %v2633
    %v3522 = vunpack.c.l.b16 %v2634
    %v3523 = vunpack.c.l.b16 %v2635
    %v3524 = vunpack.c.h.b16 %v2635
    %v3525 = vunpack.c.l.b16 %v2636
    %v3526 = vunpack.c.l.b16 %v2637
    %v3527 = vunpack.c.h.b16 %v2637
    %v3528 = vunpack.c.l.b16 %v2638
    %v3529 = vunpack.c.l.b16 %v2639
    %v3530 = vunpack.c.h.b16 %v2639
    %v3531 = vunpack.c.l.b16 %v2640
    %v3532 = vunpack.c.l.b16 %v2641
    %v3533 = vunpack.c.h.b16 %v2641
    %v3534 = vunpack.c.l.b16 %v2642
    %v3535 = vunpack.c.l.b16 %v2643
    %v3536 = vunpack.c.h.b16 %v2643
    %v3537 = vunpack.c.l.b16 %v2644
    %v3538 = vunpack.c.l.b16 %v2645
    %v3539 = vunpack.c.h.b16 %v2645
    %v3540 = vunpack.c.l.b16 %v2646
    %v3541 = vunpack.c.l.b16 %v2647
    %v3542 = vunpack.c.h.b16 %v2647
    %v3543 = vunpack.c.l.b16 %v2648
    %v3544 = vunpack.c.l.b16 %v2649
    %v3545 = vunpack.c.h.b16 %v2649
    %v3546 = vunpack.c.l.b16 %v2650
    %v3547 = vunpack.c.l.b16 %v2651
    %v3548 = vunpack.c.h.b16 %v2651
    %v3549 = vunpack.c.l.b16 %v2652
    %v3550 = vunpack.c.l.b16 %v2653
    %v3551 = vunpack.c.h.b16 %v2653
    %v3552 = vunpack.c.l.b16 %v2654
    %v3553 = vunpack.c.l.b16 %v2655
    %v3554 = vunpack.c.h.b16 %v2655
    %v3555 = vunpack.c.l.b16 %v2656
    %v3556 = vunpack.c.l.b16 %v2657
    %v3557 = vunpack.c.h.b16 %v2657
    %v3558 = vunpack.c.l.b16 %v2658
    %v3559 = vunpack.c.l.b16 %v2659
    %v3560 = vunpack.c.h.b16 %v2659
    %v3561 = vunpack.c.l.b16 %v2660
    %v3562 = vunpack.c.l.b16 %v2661
    %v3563 = vunpack.c.h.b16 %v2661
    %v3564 = vunpack.c.l.b16 %v2662
    %v3565 = vunpack.c.l.b16 %v2663
    %v3566 = vunpack.c.h.b16 %v2663
    %v3567 = vunpack.c.l.b16 %v2664
    %v3568 = vunpack.c.l.b16 %v2665
    %v3569 = vunpack.c.h.b16 %v2665
    %v3570 = vunpack.c.l.b16 %v2666
    %v3571 = vunpack.c.l.b16 %v2667
    %v3572 = vunpack.c.h.b16 %v2667
    %v3573 = vunpack.c.l.b16 %v2668
    %v3574 = vunpack.c.l.b16 %v2669
    %v3575 = vunpack.c.h.b16 %v2669
    %v3576 = vunpack.c.l.b16 %v2670
    %v3577 = vunpack.c.l.b16 %v2671
    %v3578 = vunpack.c.h.b16 %v2671
    %v3579 = vunpack.c.l.b16 %v2672
    %v3580 = vunpack.c.l.b16 %v2673
    %v3581 = vunpack.c.h.b16 %v2673
    %v3582 = vunpack.c.l.b16 %v2674
    %v3583 = vunpack.c.l.b16 %v2675
    %v3584 = vunpack.c.h.b16 %v2675
    %v3585 = vunpack.c.l.b16 %v2676
    %v3586 = vunpack.c.l.b16 %v2677
    %v3587 = vunpack.c.h.b16 %v2677
    %v3588 = vunpack.c.l.b16 %v2678
    %v3589 = vunpack.c.l.b16 %v2679
    %v3590 = vunpack.c.h.b16 %v2679
    %v3591 = vunpack.c.l.b16 %v2680
    %v3592 = vunpack.c.l.b16 %v2681
    %v3593 = vunpack.c.h.b16 %v2681
    %v3594 = vunpack.c.l.b16 %v2682
    %v3595 = vunpack.c.l.b16 %v2683
    %v3596 = vunpack.c.h.b16 %v2683
    %v3597 = vunpack.c.l.b16 %v2684
    %v3598 = vunpack.c.l.b16 %v2685
    %v3599 = vunpack.c.h.b16 %v2685
    %v3600 = vunpack.c.l.b16 %v2686
    %v3601 = vunpack.c.l.b16 %v2687
    %v3602 = vunpack.c.h.b16 %v2687
    %v3603 = vunpack.c.l.b16 %v2688
    %v3604 = vunpack.c.l.b16 %v2689
    %v3605 = vunpack.c.h.b16 %v2689
    %v3606 = vunpack.c.l.b16 %v2690
    %v3607 = vunpack.c.l.b16 %v2691
    %v3608 = vunpack.c.h.b16 %v2691
    %v3609 = vunpack.c.l.b16 %v2692
    %v3610 = vunpack.c.l.b16 %v2693
    %v3611 = vunpack.c.h.b16 %v2693
    %v3612 = vunpack.c.l.b16 %v2694
    %v3613 = vunpack.c.l.b16 %v2695
    %v3614 = vunpack.c.h.b16 %v2695
    %v3615 = vunpack.c.l.b16 %v2696
    %v3616 = vunpack.c.l.b16 %v2697
    %v3617 = vunpack.c.h.b16 %v2697
    %v3618 = vunpack.c.l.b16 %v2698
    %v3619 = vunpack.c.l.b16 %v2699
    %v3620 = vunpack.c.h.b16 %v2699
    %v3621 = vunpack.c.l.b16 %v2700
    %v3622 = vunpack.c.l.b16 %v2701
    %v3623 = vunpack.c.h.b16 %v2701
    %v3624 = vunpack.c.l.b16 %v2702
    %v3625 = vunpack.c.l.b16 %v2703
    %v3626 = vunpack.c.h.b16 %v2703
    %v3627 = vunpack.c.l.b16 %v2704
    %v3628 = vunpack.c.l.b16 %v2705
    %v3629 = vunpack.c.h.b16 %v2705
    %v3630 = vunpack.c.l.b16 %v2706
    %v3631 = vunpack.c.l.b16 %v2707
    %v3632 = vunpack.c.h.b16 %v2707
    %v3633 = vunpack.c.l.b16 %v2708
    %v3634 = vunpack.c.l.b16 %v2709
    %v3635 = vunpack.c.h.b16 %v2709
    %v3636 = vunpack.c.l.b16 %v2710
    %v3637 = vunpack.c.l.b16 %v2711
    %v3638 = vunpack.c.h.b16 %v2711
    %v3639 = vunpack.c.l.b16 %v2712
    %v3640 = vunpack.c.l.b16 %v2713
    %v3641 = vunpack.c.h.b16 %v2713
    %v3642 = vunpack.c.l.b16 %v2714
    %v3643 = vunpack.c.l.b16 %v2715
    %v3644 = vunpack.c.h.b16 %v2715
    %v3645 = vunpack.c.l.b16 %v2716
    %v3646 = vunpack.c.l.b16 %v2717
    %v3647 = vunpack.c.h.b16 %v2717
    %v3648 = vunpack.c.l.b16 %v2718
    %v3649 = vunpack.c.l.b16 %v2719
    %v3650 = vunpack.c.h.b16 %v2719
    %v3651 = vunpack.c.l.b16 %v2720
    %v3652 = vunpack.c.l.b16 %v2721
    %v3653 = vunpack.c.h.b16 %v2721
    %v3654 = vunpack.c.l.b16 %v2722
    %v3655 = vunpack.c.l.b16 %v2723
    %v3656 = vunpack.c.h.b16 %v2723
    %v3657 = vunpack.c.l.b16 %v2724
    %v3658 = vunpack.c.l.b16 %v2725
    %v3659 = vunpack.c.h.b16 %v2725
    %v3660 = vunpack.c.l.b16 %v2726
    %v3661 = vunpack.c.l.b16 %v2727
    %v3662 = vunpack.c.h.b16 %v2727
    %v3663 = vunpack.c.l.b16 %v2728
    %v3664 = vunpack.c.l.b16 %v2729
    %v3665 = vunpack.c.h.b16 %v2729
    %v3666 = vunpack.c.l.b16 %v2730
    %v3667 = vunpack.c.l.b16 %v2731
    %v3668 = vunpack.c.h.b16 %v2731
    %v3669 = vunpack.c.l.b16 %v2732
    %v3670 = vunpack.c.l.b16 %v2733
    %v3671 = vunpack.c.h.b16 %v2733
    %v3672 = vunpack.c.l.b16 %v2734
    %v3673 = vunpack.c.l.b16 %v2735
    %v3674 = vunpack.c.h.b16 %v2735
    %v3675 = vunpack.c.l.b16 %v2736
    %v3676 = vunpack.c.l.b16 %v2737
    %v3677 = vunpack.c.h.b16 %v2737
    %v3678 = vunpack.c.l.b16 %v2738
    %v3679 = vunpack.c.l.b16 %v2739
    %v3680 = vunpack.c.h.b16 %v2739
    %v3681 = vunpack.c.l.b16 %v2740
    %v3682 = vunpack.c.l.b16 %v2741
    %v3683 = vunpack.c.h.b16 %v2741
    %v3684 = vunpack.c.l.b16 %v2742
    %v3685 = vunpack.c.l.b16 %v2743
    %v3686 = vunpack.c.h.b16 %v2743
    %v3687 = vunpack.c.l.b16 %v2744
    %v3688 = vunpack.c.l.b16 %v2745
    %v3689 = vunpack.c.h.b16 %v2745
    %v3690 = vunpack.c.l.b16 %v2746
    %v3691 = vunpack.c.l.b16 %v2747
    %v3692 = vunpack.c.h.b16 %v2747
    %v3693 = vunpack.c.l.b16 %v2748
    %v3694 = vunpack.c.l.b16 %v2749
    %v3695 = vunpack.c.h.b16 %v2749
    %v3696 = vunpack.c.l.b16 %v2750
    %v3697 = vunpack.c.l.b16 %v2751
    %v3698 = vunpack.c.h.b16 %v2751
    %v3699 = vunpack.c.l.b16 %v2752
    %v3700 = vunpack.c.l.b16 %v2753
    %v3701 = vunpack.c.h.b16 %v2753
    %v3702 = vunpack.c.l.b16 %v2754
    %v3703 = vunpack.c.l.b16 %v2755
    %v3704 = vunpack.c.h.b16 %v2755
    %v3705 = vunpack.c.l.b16 %v2756
    %v3706 = vunpack.c.l.b16 %v2757
    %v3707 = vunpack.c.h.b16 %v2757
    %v3708 = vunpack.c.l.b16 %v2758
    %v3709 = vunpack.c.l.b16 %v2759
    %v3710 = vunpack.c.h.b16 %v2759
    %v3711 = vunpack.c.l.b16 %v2760
    %v3712 = vunpack.c.l.b16 %v2761
    %v3713 = vunpack.c.h.b16 %v2761
    %v3714 = vunpack.c.l.b16 %v2762
    %v3715 = vunpack.c.l.b16 %v2763
    %v3716 = vunpack.c.h.b16 %v2763
    %v3717 = vunpack.c.l.b16 %v2764
    %v3718 = vunpack.c.l.b16 %v2765
    %v3719 = vunpack.c.h.b16 %v2765
    %v3720 = vunpack.c.l.b16 %v2766
    %v3721 = vunpack.c.l.b16 %v2767
    %v3722 = vunpack.c.h.b16 %v2767
    %v3723 = vunpack.c.l.b16 %v2768
    %v3724 = vunpack.c.l.b16 %v2769
    %v3725 = vunpack.c.h.b16 %v2769
    %v3726 = vunpack.c.l.b16 %v2770
    %v3727 = vunpack.c.l.b16 %v2771
    %v3728 = vunpack.c.h.b16 %v2771
    %v3729 = vunpack.c.l.b16 %v2772
    %v3730 = vunpack.c.l.b16 %v2773
    %v3731 = vunpack.c.h.b16 %v2773
    %v3732 = vunpack.c.l.b16 %v2774
    %v3733 = vunpack.c.l.b16 %v2775
    %v3734 = vunpack.c.h.b16 %v2775
    %v3735 = vunpack.c.l.b16 %v2776
    %v3736 = vunpack.c.l.b16 %v2777
    %v3737 = vunpack.c.h.b16 %v2777
    %v3738 = vunpack.c.l.b16 %v2778
    %v3739 = vunpack.c.l.b16 %v2779
    %v3740 = vunpack.c.h.b16 %v2779
    %v3741 = vunpack.c.l.b16 %v2780
    %v3742 = vunpack.c.l.b16 %v2781
    %v3743 = vunpack.c.h.b16 %v2781
    %v3744 = vunpack.c.l.b16 %v2782
    %v3745 = vunpack.c.l.b16 %v2783
    %v3746 = vunpack.c.h.b16 %v2783
    %v3747 = vunpack.c.l.b16 %v2784
    %v3748 = vunpack.c.l.b16 %v2785
    %v3749 = vunpack.c.h.b16 %v2785
    %v3750 = vunpack.c.l.b16 %v2786
    %v3751 = vunpack.c.l.b16 %v2787
    %v3752 = vunpack.c.h.b16 %v2787
    %v3753 = vunpack.c.l.b16 %v2788
    %v3754 = vunpack.c.l.b16 %v2789
    %v3755 = vunpack.c.h.b16 %v2789
    %v3756 = vunpack.c.l.b16 %v2790
    %v3757 = vunpack.c.l.b16 %v2791
    %v3758 = vunpack.c.h.b16 %v2791
    %v3759 = vunpack.c.l.b16 %v2792
    %v3760 = vunpack.c.l.b16 %v2793
    %v3761 = vunpack.c.h.b16 %v2793
    %v3762 = vunpack.c.l.b16 %v2794
    %v3763 = vpack.c.b16 %v3190, %v3187
    %v3764 = vpack.c.b16 %v3191, %v3188
    %v3765 = vpack.c.b16 %v3192, %v3189
    %v3766 = vpack.c.b16 %v3196, %v3193
    %v3767 = vpack.c.b16 %v3197, %v3194
    %v3768 = vpack.c.b16 %v3198, %v3195
    %v3769 = vpack.c.b16 %v3202, %v3199
    %v3770 = vpack.c.b16 %v3203, %v3200
    %v3771 = vpack.c.b16 %v3204, %v3201
    %v3772 = vpack.c.b16 %v3208, %v3205
    %v3773 = vpack.c.b16 %v3209, %v3206
    %v3774 = vpack.c.b16 %v3210, %v3207
    %v3775 = vpack.c.b16 %v3214, %v3211
    %v3776 = vpack.c.b16 %v3215, %v3212
    %v3777 = vpack.c.b16 %v3216, %v3213
    %v3778 = vpack.c.b16 %v3220, %v3217
    %v3779 = vpack.c.b16 %v3221, %v3218
    %v3780 = vpack.c.b16 %v3222, %v3219
    %v3781 = vpack.c.b16 %v3226, %v3223
    %v3782 = vpack.c.b16 %v3227, %v3224
    %v3783 = vpack.c.b16 %v3228, %v3225
    %v3784 = vpack.c.b16 %v3232, %v3229
    %v3785 = vpack.c.b16 %v3233, %v3230
    %v3786 = vpack.c.b16 %v3234, %v3231
    %v3787 = vpack.c.b16 %v3238, %v3235
    %v3788 = vpack.c.b16 %v3239, %v3236
    %v3789 = vpack.c.b16 %v3240, %v3237
    %v3790 = vpack.c.b16 %v3244, %v3241
    %v3791 = vpack.c.b16 %v3245, %v3242
    %v3792 = vpack.c.b16 %v3246, %v3243
    %v3793 = vpack.c.b16 %v3250, %v3247
    %v3794 = vpack.c.b16 %v3251, %v3248
    %v3795 = vpack.c.b16 %v3252, %v3249
    %v3796 = vpack.c.b16 %v3256, %v3253
    %v3797 = vpack.c.b16 %v3257, %v3254
    %v3798 = vpack.c.b16 %v3258, %v3255
    %v3799 = vpack.c.b16 %v3262, %v3259
    %v3800 = vpack.c.b16 %v3263, %v3260
    %v3801 = vpack.c.b16 %v3264, %v3261
    %v3802 = vpack.c.b16 %v3268, %v3265
    %v3803 = vpack.c.b16 %v3269, %v3266
    %v3804 = vpack.c.b16 %v3270, %v3267
    %v3805 = vpack.c.b16 %v3274, %v3271
    %v3806 = vpack.c.b16 %v3275, %v3272
    %v3807 = vpack.c.b16 %v3276, %v3273
    %v3808 = vpack.c.b16 %v3280, %v3277
    %v3809 = vpack.c.b16 %v3281, %v3278
    %v3810 = vpack.c.b16 %v3282, %v3279
    %v3811 = vpack.c.b16 %v3286, %v3283
    %v3812 = vpack.c.b16 %v3287, %v3284
    %v3813 = vpack.c.b16 %v3288, %v3285
    %v3814 = vpack.c.b16 %v3292, %v3289
    %v3815 = vpack.c.b16 %v3293, %v3290
    %v3816 = vpack.c.b16 %v3294, %v3291
    %v3817 = vpack.c.b16 %v3298, %v3295
    %v3818 = vpack.c.b16 %v3299, %v3296
    %v3819 = vpack.c.b16 %v3300, %v3297
    %v3820 = vpack.c.b16 %v3304, %v3301
    %v3821 = vpack.c.b16 %v3305, %v3302
    %v3822 = vpack.c.b16 %v3306, %v3303
    %v3823 = vpack.c.b16 %v3310, %v3307
    %v3824 = vpack.c.b16 %v3311, %v3308
    %v3825 = vpack.c.b16 %v3312, %v3309
    %v3826 = vpack.c.b16 %v3316, %v3313
    %v3827 = vpack.c.b16 %v3317, %v3314
    %v3828 = vpack.c.b16 %v3318, %v3315
    %v3829 = vpack.c.b16 %v3322, %v3319
    %v3830 = vpack.c.b16 %v3323, %v3320
    %v3831 = vpack.c.b16 %v3324, %v3321
    %v3832 = vpack.c.b16 %v3328, %v3325
    %v3833 = vpack.c.b16 %v3329, %v3326
    %v3834 = vpack.c.b16 %v3330, %v3327
    %v3835 = vpack.c.b16 %v3334, %v3331
    %v3836 = vpack.c.b16 %v3335, %v3332
    %v3837 = vpack.c.b16 %v3336, %v3333
    %v3838 = vpack.c.b16 %v3340, %v3337
    %v3839 = vpack.c.b16 %v3341, %v3338
    %v3840 = vpack.c.b16 %v3342, %v3339
    %v3841 = vpack.c.b16 %v3346, %v3343
    %v3842 = vpack.c.b16 %v3347, %v3344
    %v3843 = vpack.c.b16 %v3348, %v3345
    %v3844 = vpack.c.b16 %v3352, %v3349
    %v3845 = vpack.c.b16 %v3353, %v3350
    %v3846 = vpack.c.b16 %v3354, %v3351
    %v3847 = vpack.c.b16 %v3358, %v3355
    %v3848 = vpack.c.b16 %v3359, %v3356
    %v3849 = vpack.c.b16 %v3360, %v3357
    %v3850 = vpack.c.b16 %v3364, %v3361
    %v3851 = vpack.c.b16 %v3365, %v3362
    %v3852 = vpack.c.b16 %v3366, %v3363
    %v3853 = vpack.c.b16 %v3370, %v3367
    %v3854 = vpack.c.b16 %v3371, %v3368
    %v3855 = vpack.c.b16 %v3372, %v3369
    %v3856 = vpack.c.b16 %v3376, %v3373
    %v3857 = vpack.c.b16 %v3377, %v3374
    %v3858 = vpack.c.b16 %v3378, %v3375
    %v3859 = vpack.c.b16 %v3382, %v3379
    %v3860 = vpack.c.b16 %v3383, %v3380
    %v3861 = vpack.c.b16 %v3384, %v3381
    %v3862 = vpack.c.b16 %v3388, %v3385
    %v3863 = vpack.c.b16 %v3389, %v3386
    %v3864 = vpack.c.b16 %v3390, %v3387
    %v3865 = vpack.c.b16 %v3394, %v3391
    %v3866 = vpack.c.b16 %v3395, %v3392
    %v3867 = vpack.c.b16 %v3396, %v3393
    %v3868 = vpack.c.b16 %v3400, %v3397
    %v3869 = vpack.c.b16 %v3401, %v3398
    %v3870 = vpack.c.b16 %v3402, %v3399
    %v3871 = vpack.c.b16 %v3406, %v3403
    %v3872 = vpack.c.b16 %v3407, %v3404
    %v3873 = vpack.c.b16 %v3408, %v3405
    %v3874 = vpack.c.b16 %v3412, %v3409
    %v3875 = vpack.c.b16 %v3413, %v3410
    %v3876 = vpack.c.b16 %v3414, %v3411
    %v3877 = vpack.c.b16 %v3418, %v3415
    %v3878 = vpack.c.b16 %v3419, %v3416
    %v3879 = vpack.c.b16 %v3420, %v3417
    %v3880 = vpack.c.b16 %v3424, %v3421
    %v3881 = vpack.c.b16 %v3425, %v3422
    %v3882 = vpack.c.b16 %v3426, %v3423
    %v3883 = vpack.c.b16 %v3430, %v3427
    %v3884 = vpack.c.b16 %v3431, %v3428
    %v3885 = vpack.c.b16 %v3432, %v3429
    %v3886 = vpack.c.b16 %v3436, %v3433
    %v3887 = vpack.c.b16 %v3437, %v3434
    %v3888 = vpack.c.b16 %v3438, %v3435
    %v3889 = vpack.c.b16 %v3442, %v3439
    %v3890 = vpack.c.b16 %v3443, %v3440
    %v3891 = vpack.c.b16 %v3444, %v3441
    %v3892 = vpack.c.b16 %v3448, %v3445
    %v3893 = vpack.c.b16 %v3449, %v3446
    %v3894 = vpack.c.b16 %v3450, %v3447
    %v3895 = vpack.c.b16 %v3454, %v3451
    %v3896 = vpack.c.b16 %v3455, %v3452
    %v3897 = vpack.c.b16 %v3456, %v3453
    %v3898 = vpack.c.b16 %v3460, %v3457
    %v3899 = vpack.c.b16 %v3461, %v3458
    %v3900 = vpack.c.b16 %v3462, %v3459
    %v3901 = vpack.c.b16 %v3466, %v3463
    %v3902 = vpack.c.b16 %v3467, %v3464
    %v3903 = vpack.c.b16 %v3468, %v3465
    %v3904 = vpack.c.b16 %v3472, %v3469
    %v3905 = vpack.c.b16 %v3473, %v3470
    %v3906 = vpack.c.b16 %v3474, %v3471
    %v3907 = vpack.c.b16 %v3478, %v3475
    %v3908 = vpack.c.b16 %v3479, %v3476
    %v3909 = vpack.c.b16 %v3480, %v3477
    %v3910 = vpack.c.b16 %v3484, %v3481
    %v3911 = vpack.c.b16 %v3485, %v3482
    %v3912 = vpack.c.b16 %v3486, %v3483
    %v3913 = vpack.c.b16 %v3490, %v3487
    %v3914 = vpack.c.b16 %v3491, %v3488
    %v3915 = vpack.c.b16 %v3492, %v3489
    %v3916 = vpack.c.b16 %v3496, %v3493
    %v3917 = vpack.c.b16 %v3497, %v3494
    %v3918 = vpack.c.b16 %v3498, %v3495
    %v3919 = vpack.c.b16 %v3502, %v3499
    %v3920 = vpack.c.b16 %v3503, %v3500
    %v3921 = vpack.c.b16 %v3504, %v3501
    %v3922 = vpack.c.b16 %v3508, %v3505
    %v3923 = vpack.c.b16 %v3509, %v3506
    %v3924 = vpack.c.b16 %v3510, %v3507
    %v3925 = vpack.c.b16 %v3514, %v3511
    %v3926 = vpack.c.b16 %v3515, %v3512
    %v3927 = vpack.c.b16 %v3516, %v3513
    %v3928 = vpack.c.b16 %v3520, %v3517
    %v3929 = vpack.c.b16 %v3521, %v3518
    %v3930 = vpack.c.b16 %v3522, %v3519
    %v3931 = vpack.c.b16 %v3526, %v3523
    %v3932 = vpack.c.b16 %v3527, %v3524
    %v3933 = vpack.c.b16 %v3528, %v3525
    %v3934 = vpack.c.b16 %v3532, %v3529
    %v3935 = vpack.c.b16 %v3533, %v3530
    %v3936 = vpack.c.b16 %v3534, %v3531
    %v3937 = vpack.c.b16 %v3538, %v3535
    %v3938 = vpack.c.b16 %v3539, %v3536
    %v3939 = vpack.c.b16 %v3540, %v3537
    %v3940 = vpack.c.b16 %v3544, %v3541
    %v3941 = vpack.c.b16 %v3545, %v3542
    %v3942 = vpack.c.b16 %v3546, %v3543
    %v3943 = vpack.c.b16 %v3550, %v3547
    %v3944 = vpack.c.b16 %v3551, %v3548
    %v3945 = vpack.c.b16 %v3552, %v3549
    %v3946 = vpack.c.b16 %v3556, %v3553
    %v3947 = vpack.c.b16 %v3557, %v3554
    %v3948 = vpack.c.b16 %v3558, %v3555
    %v3949 = vpack.c.b16 %v3562, %v3559
    %v3950 = vpack.c.b16 %v3563, %v3560
    %v3951 = vpack.c.b16 %v3564, %v3561
    %v3952 = vpack.c.b16 %v3568, %v3565
    %v3953 = vpack.c.b16 %v3569, %v3566
    %v3954 = vpack.c.b16 %v3570, %v3567
    %v3955 = vpack.c.b16 %v3574, %v3571
    %v3956 = vpack.c.b16 %v3575, %v3572
    %v3957 = vpack.c.b16 %v3576, %v3573
    %v3958 = vpack.c.b16 %v3580, %v3577
    %v3959 = vpack.c.b16 %v3581, %v3578
    %v3960 = vpack.c.b16 %v3582, %v3579
    %v3961 = vpack.c.b16 %v3586, %v3583
    %v3962 = vpack.c.b16 %v3587, %v3584
    %v3963 = vpack.c.b16 %v3588, %v3585
    %v3964 = vpack.c.b16 %v3592, %v3589
    %v3965 = vpack.c.b16 %v3593, %v3590
    %v3966 = vpack.c.b16 %v3594, %v3591
    %v3967 = vpack.c.b16 %v3598, %v3595
    %v3968 = vpack.c.b16 %v3599, %v3596
    %v3969 = vpack.c.b16 %v3600, %v3597
    %v3970 = vpack.c.b16 %v3604, %v3601
    %v3971 = vpack.c.b16 %v3605, %v3602
    %v3972 = vpack.c.b16 %v3606, %v3603
    %v3973 = vpack.c.b16 %v3610, %v3607
    %v3974 = vpack.c.b16 %v3611, %v3608
    %v3975 = vpack.c.b16 %v3612, %v3609
    %v3976 = vpack.c.b16 %v3616, %v3613
    %v3977 = vpack.c.b16 %v3617, %v3614
    %v3978 = vpack.c.b16 %v3618, %v3615
    %v3979 = vpack.c.b16 %v3622, %v3619
    %v3980 = vpack.c.b16 %v3623, %v3620
    %v3981 = vpack.c.b16 %v3624, %v3621
    %v3982 = vpack.c.b16 %v3628, %v3625
    %v3983 = vpack.c.b16 %v3629, %v3626
    %v3984 = vpack.c.b16 %v3630, %v3627
    %v3985 = vpack.c.b16 %v3634, %v3631
    %v3986 = vpack.c.b16 %v3635, %v3632
    %v3987 = vpack.c.b16 %v3636, %v3633
    %v3988 = vpack.c.b16 %v3640, %v3637
    %v3989 = vpack.c.b16 %v3641, %v3638
    %v3990 = vpack.c.b16 %v3642, %v3639
    %v3991 = vpack.c.b16 %v3646, %v3643
    %v3992 = vpack.c.b16 %v3647, %v3644
    %v3993 = vpack.c.b16 %v3648, %v3645
    %v3994 = vpack.c.b16 %v3652, %v3649
    %v3995 = vpack.c.b16 %v3653, %v3650
    %v3996 = vpack.c.b16 %v3654, %v3651
    %v3997 = vpack.c.b16 %v3658, %v3655
    %v3998 = vpack.c.b16 %v3659, %v3656
    %v3999 = vpack.c.b16 %v3660, %v3657
    %v4000 = vpack.c.b16 %v3664, %v3661
    %v4001 = vpack.c.b16 %v3665, %v3662
    %v4002 = vpack.c.b16 %v3666, %v3663
    %v4003 = vpack.c.b16 %v3670, %v3667
    %v4004 = vpack.c.b16 %v3671, %v3668
    %v4005 = vpack.c.b16 %v3672, %v3669
    %v4006 = vpack.c.b16 %v3676, %v3673
    %v4007 = vpack.c.b16 %v3677, %v3674
    %v4008 = vpack.c.b16 %v3678, %v3675
    %v4009 = vpack.c.b16 %v3682, %v3679
    %v4010 = vpack.c.b16 %v3683, %v3680
    %v4011 = vpack.c.b16 %v3684, %v3681
    %v4012 = vpack.c.b16 %v3688, %v3685
    %v4013 = vpack.c.b16 %v3689, %v3686
    %v4014 = vpack.c.b16 %v3690, %v3687
    %v4015 = vpack.c.b16 %v3694, %v3691
    %v4016 = vpack.c.b16 %v3695, %v3692
    %v4017 = vpack.c.b16 %v3696, %v3693
    %v4018 = vpack.c.b16 %v3700, %v3697
    %v4019 = vpack.c.b16 %v3701, %v3698
    %v4020 = vpack.c.b16 %v3702, %v3699
    %v4021 = vpack.c.b16 %v3706, %v3703
    %v4022 = vpack.c.b16 %v3707, %v3704
    %v4023 = vpack.c.b16 %v3708, %v3705
    %v4024 = vpack.c.b16 %v3712, %v3709
    %v4025 = vpack.c.b16 %v3713, %v3710
    %v4026 = vpack.c.b16 %v3714, %v3711
    %v4027 = vpack.c.b16 %v3718, %v3715
    %v4028 = vpack.c.b16 %v3719, %v3716
    %v4029 = vpack.c.b16 %v3720, %v3717
    %v4030 = vpack.c.b16 %v3724, %v3721
    %v4031 = vpack.c.b16 %v3725, %v3722
    %v4032 = vpack.c.b16 %v3726, %v3723
    %v4033 = vpack.c.b16 %v3730, %v3727
    %v4034 = vpack.c.b16 %v3731, %v3728
    %v4035 = vpack.c.b16 %v3732, %v3729
    %v4036 = vpack.c.b16 %v3736, %v3733
    %v4037 = vpack.c.b16 %v3737, %v3734
    %v4038 = vpack.c.b16 %v3738, %v3735
    %v4039 = vpack.c.b16 %v3742, %v3739
    %v4040 = vpack.c.b16 %v3743, %v3740
    %v4041 = vpack.c.b16 %v3744, %v3741
    %v4042 = vpack.c.b16 %v3748, %v3745
    %v4043 = vpack.c.b16 %v3749, %v3746
    %v4044 = vpack.c.b16 %v3750, %v3747
    %v4045 = vpack.c.b16 %v3754, %v3751
    %v4046 = vpack.c.b16 %v3755, %v3752
    %v4047 = vpack.c.b16 %v3756, %v3753
    %v4048 = vpack.c.b16 %v3760, %v3757
    %v4049 = vpack.c.b16 %v3761, %v3758
    %v4050 = vpack.c.b16 %v3762, %v3759
    %4339 = vmatpush.bf16.msra.mxu0 %v3784
    %4340 = vmatpush.bf16.msra.mxu0 %v3781
    %4341 = vmatpush.bf16.msra.mxu0 %v3778
    %4342 = vmatpush.bf16.msra.mxu0 %v3775
    %4343 = vmatpush.bf16.msra.mxu0 %v3772
    %4344 = vmatpush.bf16.msra.mxu0 %v3769
    %4345 = vmatpush.bf16.msra.mxu0 %v3766
    %4346 = vmatpush.bf16.msra.mxu0 %v3763
    %4347 = vmatmul.bf16.gmra.mxu0 %v2399
    %v4348 = vpop.f32.mrf.mxu0
    %v4349 = vadd.f32 %v2797, %v4348
    %v4350 = vpop.f32.mrf.mxu0
    %v4351 = vadd.f32 %v2797, %v4350
    %4352 = vdwg.mxu0
    %4353 = vmatpush.bf16.msra.mxu0 %v3808
    %4354 = vmatpush.bf16.msra.mxu0 %v3805
    %4355 = vmatpush.bf16.msra.mxu0 %v3802
    %4356 = vmatpush.bf16.msra.mxu0 %v3799
    %4357 = vmatpush.bf16.msra.mxu0 %v3796
    %4358 = vmatpush.bf16.msra.mxu0 %v3793
    %4359 = vmatpush.bf16.msra.mxu0 %v3790
    %4360 = vmatpush.bf16.msra.mxu0 %v3787
    %4361 = vmatmul.bf16.gmra.mxu0 %v2400
    %v4362 = vpop.f32.mrf.mxu0
    %v4363 = vadd.f32 %v4349, %v4362
    %v4364 = vpop.f32.mrf.mxu0
    %v4365 = vadd.f32 %v4351, %v4364
    %4366 = vdwg.mxu0
    %4367 = vmatpush.bf16.msra.mxu0 %v3832
    %4368 = vmatpush.bf16.msra.mxu0 %v3829
    %4369 = vmatpush.bf16.msra.mxu0 %v3826
    %4370 = vmatpush.bf16.msra.mxu0 %v3823
    %4371 = vmatpush.bf16.msra.mxu0 %v3820
    %4372 = vmatpush.bf16.msra.mxu0 %v3817
    %4373 = vmatpush.bf16.msra.mxu0 %v3814
    %4374 = vmatpush.bf16.msra.mxu0 %v3811
    %4375 = vmatmul.bf16.gmra.mxu0 %v2401
    %v4376 = vpop.f32.mrf.mxu0
    %v4377 = vadd.f32 %v4363, %v4376
    %v4378 = vpop.f32.mrf.mxu0
    %v4379 = vadd.f32 %v4365, %v4378
    %4380 = vdwg.mxu0
    %4381 = vmatpush.bf16.msra.mxu0 %v3856
    %4382 = vmatpush.bf16.msra.mxu0 %v3853
    %4383 = vmatpush.bf16.msra.mxu0 %v3850
    %4384 = vmatpush.bf16.msra.mxu0 %v3847
    %4385 = vmatpush.bf16.msra.mxu0 %v3844
    %4386 = vmatpush.bf16.msra.mxu0 %v3841
    %4387 = vmatpush.bf16.msra.mxu0 %v3838
    %4388 = vmatpush.bf16.msra.mxu0 %v3835
    %4389 = vmatmul.bf16.gmra.mxu0 %v2402
    %v4390 = vpop.f32.mrf.mxu0
    %v4391 = vadd.f32 %v4377, %v4390
    %v4392 = vpop.f32.mrf.mxu0
    %v4393 = vadd.f32 %v4379, %v4392
    %4394 = vdwg.mxu0
    %4395 = vmatpush.bf16.msra.mxu0 %v3880
    %4396 = vmatpush.bf16.msra.mxu0 %v3877
    %4397 = vmatpush.bf16.msra.mxu0 %v3874
    %4398 = vmatpush.bf16.msra.mxu0 %v3871
    %4399 = vmatpush.bf16.msra.mxu0 %v3868
    %4400 = vmatpush.bf16.msra.mxu0 %v3865
    %4401 = vmatpush.bf16.msra.mxu0 %v3862
    %4402 = vmatpush.bf16.msra.mxu0 %v3859
    %4403 = vmatmul.bf16.gmra.mxu0 %v2403
    %v4404 = vpop.f32.mrf.mxu0
    %v4405 = vadd.f32 %v4391, %v4404
    %v4406 = vpop.f32.mrf.mxu0
    %v4407 = vadd.f32 %v4393, %v4406
    %4408 = vdwg.mxu0
    %4409 = vmatpush.bf16.msra.mxu0 %v3904
    %4410 = vmatpush.bf16.msra.mxu0 %v3901
    %4411 = vmatpush.bf16.msra.mxu0 %v3898
    %4412 = vmatpush.bf16.msra.mxu0 %v3895
    %4413 = vmatpush.bf16.msra.mxu0 %v3892
    %4414 = vmatpush.bf16.msra.mxu0 %v3889
    %4415 = vmatpush.bf16.msra.mxu0 %v3886
    %4416 = vmatpush.bf16.msra.mxu0 %v3883
    %4417 = vmatmul.bf16.gmra.mxu0 %v2404
    %v4418 = vpop.f32.mrf.mxu0
    %v4419 = vadd.f32 %v4405, %v4418
    %v4420 = vpop.f32.mrf.mxu0
    %v4421 = vadd.f32 %v4407, %v4420
    %4422 = vdwg.mxu0
    %4423 = vmatpush.bf16.msra.mxu0 %v3928
    %4424 = vmatpush.bf16.msra.mxu0 %v3925
    %4425 = vmatpush.bf16.msra.mxu0 %v3922
    %4426 = vmatpush.bf16.msra.mxu0 %v3919
    %4427 = vmatpush.bf16.msra.mxu0 %v3916
    %4428 = vmatpush.bf16.msra.mxu0 %v3913
    %4429 = vmatpush.bf16.msra.mxu0 %v3910
    %4430 = vmatpush.bf16.msra.mxu0 %v3907
    %4431 = vmatmul.bf16.gmra.mxu0 %v2405
    %v4432 = vpop.f32.mrf.mxu0
    %v4433 = vadd.f32 %v4419, %v4432
    %v4434 = vpop.f32.mrf.mxu0
    %v4435 = vadd.f32 %v4421, %v4434
    %4436 = vdwg.mxu0
    %4437 = vmatpush.bf16.msra.mxu0 %v3952
    %4438 = vmatpush.bf16.msra.mxu0 %v3949
    %4439 = vmatpush.bf16.msra.mxu0 %v3946
    %4440 = vmatpush.bf16.msra.mxu0 %v3943
    %4441 = vmatpush.bf16.msra.mxu0 %v3940
    %4442 = vmatpush.bf16.msra.mxu0 %v3937
    %4443 = vmatpush.bf16.msra.mxu0 %v3934
    %4444 = vmatpush.bf16.msra.mxu0 %v3931
    %4445 = vmatmul.bf16.gmra.mxu0 %v2406
    %v4446 = vpop.f32.mrf.mxu0
    %v4447 = vadd.f32 %v4433, %v4446
    %v4448 = vpop.f32.mrf.mxu0
    %v4449 = vadd.f32 %v4435, %v4448
    %4450 = vdwg.mxu0
    %4451 = vmatpush.bf16.msra.mxu0 %v3976
    %4452 = vmatpush.bf16.msra.mxu0 %v3973
    %4453 = vmatpush.bf16.msra.mxu0 %v3970
    %4454 = vmatpush.bf16.msra.mxu0 %v3967
    %4455 = vmatpush.bf16.msra.mxu0 %v3964
    %4456 = vmatpush.bf16.msra.mxu0 %v3961
    %4457 = vmatpush.bf16.msra.mxu0 %v3958
    %4458 = vmatpush.bf16.msra.mxu0 %v3955
    %4459 = vmatmul.bf16.gmra.mxu0 %v2407
    %v4460 = vpop.f32.mrf.mxu0
    %v4461 = vadd.f32 %v4447, %v4460
    %v4462 = vpop.f32.mrf.mxu0
    %v4463 = vadd.f32 %v4449, %v4462
    %4464 = vdwg.mxu0
    %4465 = vmatpush.bf16.msra.mxu0 %v4000
    %4466 = vmatpush.bf16.msra.mxu0 %v3997
    %4467 = vmatpush.bf16.msra.mxu0 %v3994
    %4468 = vmatpush.bf16.msra.mxu0 %v3991
    %4469 = vmatpush.bf16.msra.mxu0 %v3988
    %4470 = vmatpush.bf16.msra.mxu0 %v3985
    %4471 = vmatpush.bf16.msra.mxu0 %v3982
    %4472 = vmatpush.bf16.msra.mxu0 %v3979
    %4473 = vmatmul.bf16.gmra.mxu0 %v2408
    %v4474 = vpop.f32.mrf.mxu0
    %v4475 = vadd.f32 %v4461, %v4474
    %v4476 = vpop.f32.mrf.mxu0
    %v4477 = vadd.f32 %v4463, %v4476
    %4478 = vdwg.mxu0
    %4479 = vmatpush.bf16.msra.mxu0 %v4024
    %4480 = vmatpush.bf16.msra.mxu0 %v4021
    %4481 = vmatpush.bf16.msra.mxu0 %v4018
    %4482 = vmatpush.bf16.msra.mxu0 %v4015
    %4483 = vmatpush.bf16.msra.mxu0 %v4012
    %4484 = vmatpush.bf16.msra.mxu0 %v4009
    %4485 = vmatpush.bf16.msra.mxu0 %v4006
    %4486 = vmatpush.bf16.msra.mxu0 %v4003
    %4487 = vmatmul.bf16.gmra.mxu0 %v2409
    %v4488 = vpop.f32.mrf.mxu0
    %v4489 = vadd.f32 %v4475, %v4488
    %v4490 = vpop.f32.mrf.mxu0
    %v4491 = vadd.f32 %v4477, %v4490
    %4492 = vdwg.mxu0
    %4493 = vmatpush.bf16.msra.mxu0 %v4048
    %4494 = vmatpush.bf16.msra.mxu0 %v4045
    %4495 = vmatpush.bf16.msra.mxu0 %v4042
    %4496 = vmatpush.bf16.msra.mxu0 %v4039
    %4497 = vmatpush.bf16.msra.mxu0 %v4036
    %4498 = vmatpush.bf16.msra.mxu0 %v4033
    %4499 = vmatpush.bf16.msra.mxu0 %v4030
    %4500 = vmatpush.bf16.msra.mxu0 %v4027
    %4501 = vmatmul.bf16.gmra.mxu0 %v2410
    %v4502 = vpop.f32.mrf.mxu0
    %v4503 = vadd.f32 %v4489, %v4502
    %v4504 = vpop.f32.mrf.mxu0
    %v4505 = vadd.f32 %v4491, %v4504
    %4506 = vdwg.mxu0
    %4507 = vmatpush.bf16.msra.mxu0 %v3785
    %4508 = vmatpush.bf16.msra.mxu0 %v3782
    %4509 = vmatpush.bf16.msra.mxu0 %v3779
    %4510 = vmatpush.bf16.msra.mxu0 %v3776
    %4511 = vmatpush.bf16.msra.mxu0 %v3773
    %4512 = vmatpush.bf16.msra.mxu0 %v3770
    %4513 = vmatpush.bf16.msra.mxu0 %v3767
    %4514 = vmatpush.bf16.msra.mxu0 %v3764
    %4515 = vmatmul.bf16.gmra.mxu0 %v2399
    %v4516 = vpop.f32.mrf.mxu0
    %v4517 = vadd.f32 %v2798, %v4516
    %v4518 = vpop.f32.mrf.mxu0
    %v4519 = vadd.f32 %v2798, %v4518
    %4520 = vdwg.mxu0
    %4521 = vmatpush.bf16.msra.mxu0 %v3809
    %4522 = vmatpush.bf16.msra.mxu0 %v3806
    %4523 = vmatpush.bf16.msra.mxu0 %v3803
    %4524 = vmatpush.bf16.msra.mxu0 %v3800
    %4525 = vmatpush.bf16.msra.mxu0 %v3797
    %4526 = vmatpush.bf16.msra.mxu0 %v3794
    %4527 = vmatpush.bf16.msra.mxu0 %v3791
    %4528 = vmatpush.bf16.msra.mxu0 %v3788
    %4529 = vmatmul.bf16.gmra.mxu0 %v2400
    %v4530 = vpop.f32.mrf.mxu0
    %v4531 = vadd.f32 %v4517, %v4530
    %v4532 = vpop.f32.mrf.mxu0
    %v4533 = vadd.f32 %v4519, %v4532
    %4534 = vdwg.mxu0
    %4535 = vmatpush.bf16.msra.mxu0 %v3833
    %4536 = vmatpush.bf16.msra.mxu0 %v3830
    %4537 = vmatpush.bf16.msra.mxu0 %v3827
    %4538 = vmatpush.bf16.msra.mxu0 %v3824
    %4539 = vmatpush.bf16.msra.mxu0 %v3821
    %4540 = vmatpush.bf16.msra.mxu0 %v3818
    %4541 = vmatpush.bf16.msra.mxu0 %v3815
    %4542 = vmatpush.bf16.msra.mxu0 %v3812
    %4543 = vmatmul.bf16.gmra.mxu0 %v2401
    %v4544 = vpop.f32.mrf.mxu0
    %v4545 = vadd.f32 %v4531, %v4544
    %v4546 = vpop.f32.mrf.mxu0
    %v4547 = vadd.f32 %v4533, %v4546
    %4548 = vdwg.mxu0
    %4549 = vmatpush.bf16.msra.mxu0 %v3857
    %4550 = vmatpush.bf16.msra.mxu0 %v3854
    %4551 = vmatpush.bf16.msra.mxu0 %v3851
    %4552 = vmatpush.bf16.msra.mxu0 %v3848
    %4553 = vmatpush.bf16.msra.mxu0 %v3845
    %4554 = vmatpush.bf16.msra.mxu0 %v3842
    %4555 = vmatpush.bf16.msra.mxu0 %v3839
    %4556 = vmatpush.bf16.msra.mxu0 %v3836
    %4557 = vmatmul.bf16.gmra.mxu0 %v2402
    %v4558 = vpop.f32.mrf.mxu0
    %v4559 = vadd.f32 %v4545, %v4558
    %v4560 = vpop.f32.mrf.mxu0
    %v4561 = vadd.f32 %v4547, %v4560
    %4562 = vdwg.mxu0
    %4563 = vmatpush.bf16.msra.mxu0 %v3881
    %4564 = vmatpush.bf16.msra.mxu0 %v3878
    %4565 = vmatpush.bf16.msra.mxu0 %v3875
    %4566 = vmatpush.bf16.msra.mxu0 %v3872
    %4567 = vmatpush.bf16.msra.mxu0 %v3869
    %4568 = vmatpush.bf16.msra.mxu0 %v3866
    %4569 = vmatpush.bf16.msra.mxu0 %v3863
    %4570 = vmatpush.bf16.msra.mxu0 %v3860
    %4571 = vmatmul.bf16.gmra.mxu0 %v2403
    %v4572 = vpop.f32.mrf.mxu0
    %v4573 = vadd.f32 %v4559, %v4572
    %v4574 = vpop.f32.mrf.mxu0
    %v4575 = vadd.f32 %v4561, %v4574
    %4576 = vdwg.mxu0
    %4577 = vmatpush.bf16.msra.mxu0 %v3905
    %4578 = vmatpush.bf16.msra.mxu0 %v3902
    %4579 = vmatpush.bf16.msra.mxu0 %v3899
    %4580 = vmatpush.bf16.msra.mxu0 %v3896
    %4581 = vmatpush.bf16.msra.mxu0 %v3893
    %4582 = vmatpush.bf16.msra.mxu0 %v3890
    %4583 = vmatpush.bf16.msra.mxu0 %v3887
    %4584 = vmatpush.bf16.msra.mxu0 %v3884
    %4585 = vmatmul.bf16.gmra.mxu0 %v2404
    %v4586 = vpop.f32.mrf.mxu0
    %v4587 = vadd.f32 %v4573, %v4586
    %v4588 = vpop.f32.mrf.mxu0
    %v4589 = vadd.f32 %v4575, %v4588
    %4590 = vdwg.mxu0
    %4591 = vmatpush.bf16.msra.mxu0 %v3929
    %4592 = vmatpush.bf16.msra.mxu0 %v3926
    %4593 = vmatpush.bf16.msra.mxu0 %v3923
    %4594 = vmatpush.bf16.msra.mxu0 %v3920
    %4595 = vmatpush.bf16.msra.mxu0 %v3917
    %4596 = vmatpush.bf16.msra.mxu0 %v3914
    %4597 = vmatpush.bf16.msra.mxu0 %v3911
    %4598 = vmatpush.bf16.msra.mxu0 %v3908
    %4599 = vmatmul.bf16.gmra.mxu0 %v2405
    %v4600 = vpop.f32.mrf.mxu0
    %v4601 = vadd.f32 %v4587, %v4600
    %v4602 = vpop.f32.mrf.mxu0
    %v4603 = vadd.f32 %v4589, %v4602
    %4604 = vdwg.mxu0
    %4605 = vmatpush.bf16.msra.mxu0 %v3953
    %4606 = vmatpush.bf16.msra.mxu0 %v3950
    %4607 = vmatpush.bf16.msra.mxu0 %v3947
    %4608 = vmatpush.bf16.msra.mxu0 %v3944
    %4609 = vmatpush.bf16.msra.mxu0 %v3941
    %4610 = vmatpush.bf16.msra.mxu0 %v3938
    %4611 = vmatpush.bf16.msra.mxu0 %v3935
    %4612 = vmatpush.bf16.msra.mxu0 %v3932
    %4613 = vmatmul.bf16.gmra.mxu0 %v2406
    %v4614 = vpop.f32.mrf.mxu0
    %v4615 = vadd.f32 %v4601, %v4614
    %v4616 = vpop.f32.mrf.mxu0
    %v4617 = vadd.f32 %v4603, %v4616
    %4618 = vdwg.mxu0
    %4619 = vmatpush.bf16.msra.mxu0 %v3977
    %4620 = vmatpush.bf16.msra.mxu0 %v3974
    %4621 = vmatpush.bf16.msra.mxu0 %v3971
    %4622 = vmatpush.bf16.msra.mxu0 %v3968
    %4623 = vmatpush.bf16.msra.mxu0 %v3965
    %4624 = vmatpush.bf16.msra.mxu0 %v3962
    %4625 = vmatpush.bf16.msra.mxu0 %v3959
    %4626 = vmatpush.bf16.msra.mxu0 %v3956
    %4627 = vmatmul.bf16.gmra.mxu0 %v2407
    %v4628 = vpop.f32.mrf.mxu0
    %v4629 = vadd.f32 %v4615, %v4628
    %v4630 = vpop.f32.mrf.mxu0
    %v4631 = vadd.f32 %v4617, %v4630
    %4632 = vdwg.mxu0
    %4633 = vmatpush.bf16.msra.mxu0 %v4001
    %4634 = vmatpush.bf16.msra.mxu0 %v3998
    %4635 = vmatpush.bf16.msra.mxu0 %v3995
    %4636 = vmatpush.bf16.msra.mxu0 %v3992
    %4637 = vmatpush.bf16.msra.mxu0 %v3989
    %4638 = vmatpush.bf16.msra.mxu0 %v3986
    %4639 = vmatpush.bf16.msra.mxu0 %v3983
    %4640 = vmatpush.bf16.msra.mxu0 %v3980
    %4641 = vmatmul.bf16.gmra.mxu0 %v2408
    %v4642 = vpop.f32.mrf.mxu0
    %v4643 = vadd.f32 %v4629, %v4642
    %v4644 = vpop.f32.mrf.mxu0
    %v4645 = vadd.f32 %v4631, %v4644
    %4646 = vdwg.mxu0
    %4647 = vmatpush.bf16.msra.mxu0 %v4025
    %4648 = vmatpush.bf16.msra.mxu0 %v4022
    %4649 = vmatpush.bf16.msra.mxu0 %v4019
    %4650 = vmatpush.bf16.msra.mxu0 %v4016
    %4651 = vmatpush.bf16.msra.mxu0 %v4013
    %4652 = vmatpush.bf16.msra.mxu0 %v4010
    %4653 = vmatpush.bf16.msra.mxu0 %v4007
    %4654 = vmatpush.bf16.msra.mxu0 %v4004
    %4655 = vmatmul.bf16.gmra.mxu0 %v2409
    %v4656 = vpop.f32.mrf.mxu0
    %v4657 = vadd.f32 %v4643, %v4656
    %v4658 = vpop.f32.mrf.mxu0
    %v4659 = vadd.f32 %v4645, %v4658
    %4660 = vdwg.mxu0
    %4661 = vmatpush.bf16.msra.mxu0 %v4049
    %4662 = vmatpush.bf16.msra.mxu0 %v4046
    %4663 = vmatpush.bf16.msra.mxu0 %v4043
    %4664 = vmatpush.bf16.msra.mxu0 %v4040
    %4665 = vmatpush.bf16.msra.mxu0 %v4037
    %4666 = vmatpush.bf16.msra.mxu0 %v4034
    %4667 = vmatpush.bf16.msra.mxu0 %v4031
    %4668 = vmatpush.bf16.msra.mxu0 %v4028
    %4669 = vmatmul.bf16.gmra.mxu0 %v2410
    %v4670 = vpop.f32.mrf.mxu0
    %v4671 = vadd.f32 %v4657, %v4670
    %v4672 = vpop.f32.mrf.mxu0
    %v4673 = vadd.f32 %v4659, %v4672
    %4674 = vdwg.mxu0
    %4675 = vmatpush.bf16.msra.mxu0 %v3786
    %4676 = vmatpush.bf16.msra.mxu0 %v3783
    %4677 = vmatpush.bf16.msra.mxu0 %v3780
    %4678 = vmatpush.bf16.msra.mxu0 %v3777
    %4679 = vmatpush.bf16.msra.mxu0 %v3774
    %4680 = vmatpush.bf16.msra.mxu0 %v3771
    %4681 = vmatpush.bf16.msra.mxu0 %v3768
    %4682 = vmatpush.bf16.msra.mxu0 %v3765
    %4683 = vmatmul.bf16.gmra.mxu0 %v2399
    %v4684 = vpop.f32.mrf.mxu0
    %v4685 = vadd.f32 %v2799, %v4684
    %v4686 = vpop.f32.mrf.mxu0
    %v4687 = vadd.f32 %v2799, %v4686
    %4688 = vdwg.mxu0
    %4689 = vmatpush.bf16.msra.mxu0 %v3810
    %4690 = vmatpush.bf16.msra.mxu0 %v3807
    %4691 = vmatpush.bf16.msra.mxu0 %v3804
    %4692 = vmatpush.bf16.msra.mxu0 %v3801
    %4693 = vmatpush.bf16.msra.mxu0 %v3798
    %4694 = vmatpush.bf16.msra.mxu0 %v3795
    %4695 = vmatpush.bf16.msra.mxu0 %v3792
    %4696 = vmatpush.bf16.msra.mxu0 %v3789
    %4697 = vmatmul.bf16.gmra.mxu0 %v2400
    %v4698 = vpop.f32.mrf.mxu0
    %v4699 = vadd.f32 %v4685, %v4698
    %v4700 = vpop.f32.mrf.mxu0
    %v4701 = vadd.f32 %v4687, %v4700
    %4702 = vdwg.mxu0
    %4703 = vmatpush.bf16.msra.mxu0 %v3834
    %4704 = vmatpush.bf16.msra.mxu0 %v3831
    %4705 = vmatpush.bf16.msra.mxu0 %v3828
    %4706 = vmatpush.bf16.msra.mxu0 %v3825
    %4707 = vmatpush.bf16.msra.mxu0 %v3822
    %4708 = vmatpush.bf16.msra.mxu0 %v3819
    %4709 = vmatpush.bf16.msra.mxu0 %v3816
    %4710 = vmatpush.bf16.msra.mxu0 %v3813
    %4711 = vmatmul.bf16.gmra.mxu0 %v2401
    %v4712 = vpop.f32.mrf.mxu0
    %v4713 = vadd.f32 %v4699, %v4712
    %v4714 = vpop.f32.mrf.mxu0
    %v4715 = vadd.f32 %v4701, %v4714
    %4716 = vdwg.mxu0
    %4717 = vmatpush.bf16.msra.mxu0 %v3858
    %4718 = vmatpush.bf16.msra.mxu0 %v3855
    %4719 = vmatpush.bf16.msra.mxu0 %v3852
    %4720 = vmatpush.bf16.msra.mxu0 %v3849
    %4721 = vmatpush.bf16.msra.mxu0 %v3846
    %4722 = vmatpush.bf16.msra.mxu0 %v3843
    %4723 = vmatpush.bf16.msra.mxu0 %v3840
    %4724 = vmatpush.bf16.msra.mxu0 %v3837
    %4725 = vmatmul.bf16.gmra.mxu0 %v2402
    %v4726 = vpop.f32.mrf.mxu0
    %v4727 = vadd.f32 %v4713, %v4726
    %v4728 = vpop.f32.mrf.mxu0
    %v4729 = vadd.f32 %v4715, %v4728
    %4730 = vdwg.mxu0
    %4731 = vmatpush.bf16.msra.mxu0 %v3882
    %4732 = vmatpush.bf16.msra.mxu0 %v3879
    %4733 = vmatpush.bf16.msra.mxu0 %v3876
    %4734 = vmatpush.bf16.msra.mxu0 %v3873
    %4735 = vmatpush.bf16.msra.mxu0 %v3870
    %4736 = vmatpush.bf16.msra.mxu0 %v3867
    %4737 = vmatpush.bf16.msra.mxu0 %v3864
    %4738 = vmatpush.bf16.msra.mxu0 %v3861
    %4739 = vmatmul.bf16.gmra.mxu0 %v2403
    %v4740 = vpop.f32.mrf.mxu0
    %v4741 = vadd.f32 %v4727, %v4740
    %v4742 = vpop.f32.mrf.mxu0
    %v4743 = vadd.f32 %v4729, %v4742
    %4744 = vdwg.mxu0
    %4745 = vmatpush.bf16.msra.mxu0 %v3906
    %4746 = vmatpush.bf16.msra.mxu0 %v3903
    %4747 = vmatpush.bf16.msra.mxu0 %v3900
    %4748 = vmatpush.bf16.msra.mxu0 %v3897
    %4749 = vmatpush.bf16.msra.mxu0 %v3894
    %4750 = vmatpush.bf16.msra.mxu0 %v3891
    %4751 = vmatpush.bf16.msra.mxu0 %v3888
    %4752 = vmatpush.bf16.msra.mxu0 %v3885
    %4753 = vmatmul.bf16.gmra.mxu0 %v2404
    %v4754 = vpop.f32.mrf.mxu0
    %v4755 = vadd.f32 %v4741, %v4754
    %v4756 = vpop.f32.mrf.mxu0
    %v4757 = vadd.f32 %v4743, %v4756
    %4758 = vdwg.mxu0
    %4759 = vmatpush.bf16.msra.mxu0 %v3930
    %4760 = vmatpush.bf16.msra.mxu0 %v3927
    %4761 = vmatpush.bf16.msra.mxu0 %v3924
    %4762 = vmatpush.bf16.msra.mxu0 %v3921
    %4763 = vmatpush.bf16.msra.mxu0 %v3918
    %4764 = vmatpush.bf16.msra.mxu0 %v3915
    %4765 = vmatpush.bf16.msra.mxu0 %v3912
    %4766 = vmatpush.bf16.msra.mxu0 %v3909
    %4767 = vmatmul.bf16.gmra.mxu0 %v2405
    %v4768 = vpop.f32.mrf.mxu0
    %v4769 = vadd.f32 %v4755, %v4768
    %v4770 = vpop.f32.mrf.mxu0
    %v4771 = vadd.f32 %v4757, %v4770
    %4772 = vdwg.mxu0
    %4773 = vmatpush.bf16.msra.mxu0 %v3954
    %4774 = vmatpush.bf16.msra.mxu0 %v3951
    %4775 = vmatpush.bf16.msra.mxu0 %v3948
    %4776 = vmatpush.bf16.msra.mxu0 %v3945
    %4777 = vmatpush.bf16.msra.mxu0 %v3942
    %4778 = vmatpush.bf16.msra.mxu0 %v3939
    %4779 = vmatpush.bf16.msra.mxu0 %v3936
    %4780 = vmatpush.bf16.msra.mxu0 %v3933
    %4781 = vmatmul.bf16.gmra.mxu0 %v2406
    %v4782 = vpop.f32.mrf.mxu0
    %v4783 = vadd.f32 %v4769, %v4782
    %v4784 = vpop.f32.mrf.mxu0
    %v4785 = vadd.f32 %v4771, %v4784
    %4786 = vdwg.mxu0
    %4787 = vmatpush.bf16.msra.mxu0 %v3978
    %4788 = vmatpush.bf16.msra.mxu0 %v3975
    %4789 = vmatpush.bf16.msra.mxu0 %v3972
    %4790 = vmatpush.bf16.msra.mxu0 %v3969
    %4791 = vmatpush.bf16.msra.mxu0 %v3966
    %4792 = vmatpush.bf16.msra.mxu0 %v3963
    %4793 = vmatpush.bf16.msra.mxu0 %v3960
    %4794 = vmatpush.bf16.msra.mxu0 %v3957
    %4795 = vmatmul.bf16.gmra.mxu0 %v2407
    %v4796 = vpop.f32.mrf.mxu0
    %v4797 = vadd.f32 %v4783, %v4796
    %v4798 = vpop.f32.mrf.mxu0
    %v4799 = vadd.f32 %v4785, %v4798
    %4800 = vdwg.mxu0
    %4801 = vmatpush.bf16.msra.mxu0 %v4002
    %4802 = vmatpush.bf16.msra.mxu0 %v3999
    %4803 = vmatpush.bf16.msra.mxu0 %v3996
    %4804 = vmatpush.bf16.msra.mxu0 %v3993
    %4805 = vmatpush.bf16.msra.mxu0 %v3990
    %4806 = vmatpush.bf16.msra.mxu0 %v3987
    %4807 = vmatpush.bf16.msra.mxu0 %v3984
    %4808 = vmatpush.bf16.msra.mxu0 %v3981
    %4809 = vmatmul.bf16.gmra.mxu0 %v2408
    %v4810 = vpop.f32.mrf.mxu0
    %v4811 = vadd.f32 %v4797, %v4810
    %v4812 = vpop.f32.mrf.mxu0
    %v4813 = vadd.f32 %v4799, %v4812
    %4814 = vdwg.mxu0
    %4815 = vmatpush.bf16.msra.mxu0 %v4026
    %4816 = vmatpush.bf16.msra.mxu0 %v4023
    %4817 = vmatpush.bf16.msra.mxu0 %v4020
    %4818 = vmatpush.bf16.msra.mxu0 %v4017
    %4819 = vmatpush.bf16.msra.mxu0 %v4014
    %4820 = vmatpush.bf16.msra.mxu0 %v4011
    %4821 = vmatpush.bf16.msra.mxu0 %v4008
    %4822 = vmatpush.bf16.msra.mxu0 %v4005
    %4823 = vmatmul.bf16.gmra.mxu0 %v2409
    %v4824 = vpop.f32.mrf.mxu0
    %v4825 = vadd.f32 %v4811, %v4824
    %v4826 = vpop.f32.mrf.mxu0
    %v4827 = vadd.f32 %v4813, %v4826
    %4828 = vdwg.mxu0
    %4829 = vmatpush.bf16.msra.mxu0 %v4050
    %4830 = vmatpush.bf16.msra.mxu0 %v4047
    %4831 = vmatpush.bf16.msra.mxu0 %v4044
    %4832 = vmatpush.bf16.msra.mxu0 %v4041
    %4833 = vmatpush.bf16.msra.mxu0 %v4038
    %4834 = vmatpush.bf16.msra.mxu0 %v4035
    %4835 = vmatpush.bf16.msra.mxu0 %v4032
    %4836 = vmatpush.bf16.msra.mxu0 %v4029
    %4837 = vmatmul.bf16.gmra.mxu0 %v2410
    %v4838 = vpop.f32.mrf.mxu0
    %v4839 = vadd.f32 %v4825, %v4838
    %v4840 = vpop.f32.mrf.mxu0
    %v4841 = vadd.f32 %v4827, %v4840
    %4842 = vdwg.mxu0
    %4843 = vst [vmem:[#allocation11] sm:$0xff] %v4503
    %4844 = vst [vmem:[#allocation11 + $0x8] sm:$0xff] %v4671
    %4845 = vst [vmem:[#allocation11 + $0x10] sm:$0xff] %v4839
    %4846 = vst [vmem:[#allocation11 + $0x18] sm:$0xff] %v4505
    %4847 = vst [vmem:[#allocation11 + $0x20] sm:$0xff] %v4673
    %4848 = vst [vmem:[#allocation11 + $0x28] sm:$0xff] %v4841
    // Predicated region
    $region42: #{tpu_custom_call.1} parent=1 // pred_check
      _
    $region43: #{tpu_custom_call.1} parent=1 // pred_check_branch
      %4850 = sbr.rel (0) target = $region45
    $region44: #{tpu_custom_call.1} parent=1 // pred_region
      %4852 = vsyncadd [#allocation4], 0
      %s4853 = sshll.u32 [#allocation11], 4
      %s4854 = int_to_ptr.vmem [resolvable:$true] %s4853
      %s4855 = sshll.u32 %s5, 4
      %s4856 = int_to_ptr.hbm [resolvable:$true] %s4855
      %4861 = dma.vmem_to_hbm [thread:$0]  %s4854, 768, %s4856, [#allocation4], 384, 384, 24
    $region45: #{tpu_custom_call.1} parent=1 // pred_fallthru
      _
    // Predicated region
    $region46: #{tpu_custom_call.1} parent=1 // pred_check
      _
    $region47: #{tpu_custom_call.1} parent=1 // pred_check_branch
      %4863 = sbr.rel (0) target = $region49
    $region48: #{tpu_custom_call.1} parent=1 // pred_region
      %4865 = dma.done [#allocation4], 768
    $region49: #{tpu_custom_call.1} parent=1 // pred_fallthru
      _
    %4866 = vsyncpa [#allocation3], 1
    %4867 = vsyncpa [#allocation6], 1
    %4868 = vsyncpa [#allocation9], 1
    %4869 = vsyncpa [#allocation4], 1

</llo_original>
